<compile_context>
chip_gen: v5e
topology: v5e:2x2
jax: 0.10.0
libtpu: 0.0.40
codegen_flags: <defaults>
</compile_context>

<pallas_src>
import math

import jax
import jax.numpy as jnp
from jax.experimental import pallas as pl
from jax.experimental.pallas import tpu as pltpu  # noqa: F401  (kept for TPU-specific tuning hooks)


# ----------------------------------------------------------------------------
# Fused forward-pass kernel
# ----------------------------------------------------------------------------

def _mcan_kernel(left_ref, right_ref,
                 gwi_ref, gwh_ref, gbi_ref, gbh_ref,
                 bil_ref, wf_w_ref, wf_b_ref,
                 gate_w_ref, gate_b_ref, glob_ref,
                 tf_w_ref, tf_b_ref, cls_w_ref, cls_b_ref,
                 o_ref):
    """Whole MCAN forward for all batch rows and both entities.

    left_ref / right_ref : (B, T, H)   raw word embeddings
    gwi_ref              : (2, H, 3*Hd)   GRU input weights  [fwd, bwd], gates r|z|n
    gwh_ref              : (2, Hd, 3*Hd)  GRU hidden weights
    gbi_ref / gbh_ref    : (2, 1, 3*Hd)   GRU biases
    bil_ref              : (H, H)         PairAttention bilinear W
    wf_w_ref / wf_b_ref  : (4H, H), (1, H)  word Fusion
    gate_w_ref/gate_b_ref: (2H, H), (1, H)  GatingMechanism
    glob_ref             : (1, H)          GlobalAttention query vector
    tf_w_ref / tf_b_ref  : (4H, H), (1, H)  text Fusion
    cls_w_ref / cls_b_ref: (H, 2), (1, 2)   classifier
    o_ref                : (B, 2)           log-probabilities
    """
    B, TL, H = left_ref.shape
    TR = right_ref.shape[1]
    Hd = gwh_ref.shape[1]
    f32 = jnp.float32

    def mm(a, b):
        return jnp.dot(a, b, preferred_element_type=f32)

    def mm_nt(a, b):  # a @ b.T without an explicit transpose (MXU handles it)
        return jax.lax.dot_general(a, b, (((1,), (1,)), ((), ())),
                                   preferred_element_type=f32)

    def softmax_last(s):
        s = s - jnp.max(s, axis=-1, keepdims=True)
        p = jnp.exp(s)
        return p / jnp.sum(p, axis=-1, keepdims=True)

    # Raw embedding rows, ordering: [left b=0..B-1, right b=0..B-1].
    emb_rows = [left_ref[b] for b in range(B)] + [right_ref[b] for b in range(B)]
    Ts = [TL] * B + [TR] * B
    n_rows = 2 * B

    # -------------------- BiGRU (RNN('gru', hidden_size)) --------------------
    wi_f, wi_b = gwi_ref[0], gwi_ref[1]
    wh_f, wh_b = gwh_ref[0], gwh_ref[1]
    bi_f, bi_b = gbi_ref[0], gbi_ref[1]
    bh_f, bh_b = gbh_ref[0], gbh_ref[1]

    def gru_step(gi_t, h, wh, bh):
        gh = mm(h, wh) + bh                                        # (n, 3Hd)
        r = jax.nn.sigmoid(gi_t[:, 0:Hd] + gh[:, 0:Hd])
        z = jax.nn.sigmoid(gi_t[:, Hd:2 * Hd] + gh[:, Hd:2 * Hd])
        c = jnp.tanh(gi_t[:, 2 * Hd:3 * Hd] + r * gh[:, 2 * Hd:3 * Hd])
        return (1.0 - z) * c + z * h                               # PyTorch GRU form

    def bigru(rows):
        """rows: list of (T, H) sequences of equal length -> list of (T, 2*Hd)."""
        n = len(rows)
        T = rows[0].shape[0]
        # Time-major stack: row t*n + i holds token t of sequence i.
        x_tm = jnp.concatenate(
            [rows[i][t:t + 1, :] for t in range(T) for i in range(n)], axis=0)
        # Hoisted input-gate matmuls (one per direction, M = T*n).
        gi_f = mm(x_tm, wi_f) + bi_f
        gi_b = mm(x_tm, wi_b) + bi_b

        h = jnp.zeros((n, Hd), f32)
        h_fwd = []
        for t in range(T):                                         # unrolled
            h = gru_step(gi_f[t * n:(t + 1) * n, :], h, wh_f, bh_f)
            h_fwd.append(h)

        h = jnp.zeros((n, Hd), f32)
        h_bwd = [None] * T
        for s in range(T):                                         # reversed time, unrolled
            t = T - 1 - s
            h = gru_step(gi_b[t * n:(t + 1) * n, :], h, wh_b, bh_b)
            h_bwd[t] = h

        ct = [jnp.concatenate([h_fwd[t], h_bwd[t]], axis=-1) for t in range(T)]  # (n, H)
        return [jnp.concatenate([ct[t][i:i + 1, :] for t in range(T)], axis=0)
                for i in range(n)]                                 # each (T, H)

    if TL == TR:
        ctx_rows = bigru(emb_rows)                 # batch + both entities together
    else:
        ctx_rows = bigru(emb_rows[:B]) + bigru(emb_rows[B:])

    # -------------------- SelfAttention (dot alignment) --------------------
    scale = 1.0 / math.sqrt(H)
    sa_rows = []
    for r in range(n_rows):
        c = ctx_rows[r]
        p = softmax_last(mm_nt(c, c) * scale)
        sa_rows.append(mm(p, c))

    # ---- PairAttention (bilinear; values = raw embeddings of other entity) ----
    bil = bil_ref[...]
    pa_rows = []
    for r in range(n_rows):
        partner = r + B if r < B else r - B
        q = mm(sa_rows[r], bil)                    # bilinear projection fused here
        p = softmax_last(mm_nt(q, sa_rows[partner]))
        pa_rows.append(mm(p, emb_rows[partner]))

    # ------- word Fusion + GatingMechanism (batched over all tokens) -------
    A = jnp.concatenate(sa_rows, axis=0)           # (sum_T, H)
    Bm = jnp.concatenate(pa_rows, axis=0)
    RAW = jnp.concatenate(emb_rows, axis=0)
    Z = jnp.concatenate([A, Bm, A - Bm, A * Bm], axis=-1)          # (sum_T, 4H)
    FUSED = jnp.maximum(mm(Z, wf_w_ref[...]) + wf_b_ref[...], 0.0)
    G = jax.nn.sigmoid(mm(jnp.concatenate([RAW, FUSED], axis=-1), gate_w_ref[...])
                       + gate_b_ref[...])
    # TODO(synk): dropout(p=0.1) in GatingMechanism / GlobalAttention is identity (eval mode).
    GATED = G * FUSED + (1.0 - G) * RAW

    # -------------- GlobalAttention (dot) -> per-sequence summary --------------
    glob = glob_ref[...]                           # (1, H)
    offs, o = [], 0
    for r in range(n_rows):
        offs.append(o)
        o += Ts[r]
    summaries = []
    for r in range(n_rows):
        g = GATED[offs[r]:offs[r] + Ts[r], :]
        p = softmax_last(mm_nt(glob, g))           # (1, T)
        summaries.append(mm(p, g))                 # (1, H)

    # -------------- text Fusion of the two entity summaries --------------
    SL = jnp.concatenate(summaries[:B], axis=0)    # (B, H)
    SR = jnp.concatenate(summaries[B:], axis=0)
    Z2 = jnp.concatenate([SL, SR, SL - SR, SL * SR], axis=-1)
    EC = jnp.maximum(mm(Z2, tf_w_ref[...]) + tf_b_ref[...], 0.0)

    # ---------- classifier: Transform('1-layer', out=2) + LogSoftmax ----------
    logits = mm(EC, cls_w_ref[...]) + cls_b_ref[...]
    m = jnp.max(logits, axis=-1, keepdims=True)
    lse = jnp.log(jnp.sum(jnp.exp(logits - m), axis=-1, keepdims=True))
    o_ref[...] = (logits - m - lse).astype(o_ref.dtype)
    # TODO(synk): on v7x the two entity pipelines could be split across the two
    # TensorCores via pl.core_map; left as a single-core fused kernel here.


# ----------------------------------------------------------------------------
# Parameters (deterministic synthetic init — module __init__ shapes, scaled down)
# ----------------------------------------------------------------------------

def init_params(key, vocab_size=50, hidden=32):
    H = hidden
    Hd = H // 2                      # per-direction GRU hidden (BiGRU concat -> H)
    ks = jax.random.split(key, 12)

    def uni(k, shape, fan_in):
        return (jax.random.uniform(k, shape, jnp.float32, -1.0, 1.0)
                / jnp.sqrt(jnp.float32(fan_in)))

    return {
        # frozen word vectors (fastText-like in the original, requires_grad=False)
        "embed": uni(ks[0], (vocab_size, H), H),
        # GRU weights: index 0 = forward, 1 = backward; gates packed r|z|n.
        "gru": dict(wi=uni(ks[1], (2, H, 3 * Hd), H),
                    wh=uni(ks[2], (2, Hd, 3 * Hd), Hd),
                    bi=jnp.zeros((2, 1, 3 * Hd), jnp.float32),
                    bh=jnp.zeros((2, 1, 3 * Hd), jnp.float32)),
        "bilinear": uni(ks[3], (H, H), H),                 # PairAttention bilinear W
        "word_fusion": dict(w=uni(ks[4], (4 * H, H), 4 * H),   # rows: [a; b; a-b; a*b]
                            b=jnp.zeros((1, H), jnp.float32)),
        "gate": dict(w=uni(ks[5], (2 * H, H), 2 * H),           # rows: [raw; fused]
                     b=jnp.zeros((1, H), jnp.float32)),
        "global_ctx": uni(ks[6], (1, H), H),               # GlobalAttention query vector
        "text_fusion": dict(w=uni(ks[7], (4 * H, H), 4 * H),
                            b=jnp.zeros((1, H), jnp.float32)),
        "classifier": dict(w=uni(ks[8], (H, 2), H),        # Transform('1-layer', out=2)
                           b=jnp.zeros((1, 2), jnp.float32)),
    }


# ----------------------------------------------------------------------------
# MCANModel.forward
# ----------------------------------------------------------------------------

@jax.jit
def mcan_forward(params, left_tokens, right_tokens):
    # --- embedding lookup (glue, outside the kernel) ---
    left_emb = jnp.take(params["embed"], left_tokens, axis=0)     # (B, TL, H)
    right_emb = jnp.take(params["embed"], right_tokens, axis=0)   # (B, TR, H)
    B = left_emb.shape[0]

    # Whole forward pass in ONE pallas_call; all operands live in VMEM
    # (tiny working set), all intermediates stay on-chip.
    return pl.pallas_call(
        _mcan_kernel,
        out_shape=jax.ShapeDtypeStruct((B, 2), jnp.float32),
    )(left_emb, right_emb,
      params["gru"]["wi"], params["gru"]["wh"],
      params["gru"]["bi"], params["gru"]["bh"],
      params["bilinear"],
      params["word_fusion"]["w"], params["word_fusion"]["b"],
      params["gate"]["w"], params["gate"]["b"],
      params["global_ctx"],
      params["text_fusion"]["w"], params["text_fusion"]["b"],
      params["classifier"]["w"], params["classifier"]["b"])


# ----------------------------------------------------------------------------
# Example run
# ----------------------------------------------------------------------------

if __name__ == "__main__":
    key = jax.random.PRNGKey(0)
    pkey, lkey, rkey = jax.random.split(key, 3)

    VOCAB, HIDDEN = 50, 32          # original model uses hidden_size=300
    B, TL, TR = 2, 8, 8

    params = init_params(pkey, vocab_size=VOCAB, hidden=HIDDEN)
    left_tokens = jax.random.randint(lkey, (B, TL), 0, VOCAB, dtype=jnp.int32)
    right_tokens = jax.random.randint(rkey, (B, TR), 0, VOCAB, dtype=jnp.int32)

    out = mcan_forward(params, left_tokens, right_tokens)
    out = jax.block_until_ready(out)

    assert out.shape == (B, 2), out.shape
    # log-softmax rows must exponentiate to probability distributions
    assert bool(jnp.allclose(jnp.exp(out).sum(axis=1), 1.0, atol=1e-4))
    assert bool(jnp.all(jnp.isfinite(out)))
    print("KERNEL_OK")
</pallas_src>

<mosaic_0001>
module attributes {stable_mosaic.version = 11 : i64} {
  func.func @_mcan_kernel(%arg0: memref<2x8x32xf32, #tpu.memory_space<vmem>>, %arg1: memref<2x8x32xf32, #tpu.memory_space<vmem>>, %arg2: memref<2x32x48xf32, #tpu.memory_space<vmem>>, %arg3: memref<2x16x48xf32, #tpu.memory_space<vmem>>, %arg4: memref<2x1x48xf32, #tpu.memory_space<vmem>>, %arg5: memref<2x1x48xf32, #tpu.memory_space<vmem>>, %arg6: memref<32x32xf32, #tpu.memory_space<vmem>>, %arg7: memref<128x32xf32, #tpu.memory_space<vmem>>, %arg8: memref<1x32xf32, #tpu.memory_space<vmem>>, %arg9: memref<64x32xf32, #tpu.memory_space<vmem>>, %arg10: memref<1x32xf32, #tpu.memory_space<vmem>>, %arg11: memref<1x32xf32, #tpu.memory_space<vmem>>, %arg12: memref<128x32xf32, #tpu.memory_space<vmem>>, %arg13: memref<1x32xf32, #tpu.memory_space<vmem>>, %arg14: memref<32x2xf32, #tpu.memory_space<vmem>>, %arg15: memref<1x2xf32, #tpu.memory_space<vmem>>, %arg16: memref<2x2xf32, #tpu.memory_space<vmem>>) attributes {dimension_semantics = [], scalar_prefetch = 0 : i64, scratch_operands = 0 : i64, tpu.core_type = #tpu.core_type<tc>} {
    %c0 = arith.constant 0 : index
    %c0_0 = arith.constant 0 : index
    %c0_1 = arith.constant 0 : index
    %0 = vector.load %arg0[%c0, %c0_0, %c0_1] : memref<2x8x32xf32, #tpu.memory_space<vmem>>, vector<1x8x32xf32>
    %1 = vector.shape_cast %0 : vector<1x8x32xf32> to vector<8x32xf32>
    %c1 = arith.constant 1 : index
    %c0_2 = arith.constant 0 : index
    %c0_3 = arith.constant 0 : index
    %2 = vector.load %arg0[%c1, %c0_2, %c0_3] : memref<2x8x32xf32, #tpu.memory_space<vmem>>, vector<1x8x32xf32>
    %3 = vector.shape_cast %2 : vector<1x8x32xf32> to vector<8x32xf32>
    %c0_4 = arith.constant 0 : index
    %c0_5 = arith.constant 0 : index
    %c0_6 = arith.constant 0 : index
    %4 = vector.load %arg1[%c0_4, %c0_5, %c0_6] : memref<2x8x32xf32, #tpu.memory_space<vmem>>, vector<1x8x32xf32>
    %5 = vector.shape_cast %4 : vector<1x8x32xf32> to vector<8x32xf32>
    %c1_7 = arith.constant 1 : index
    %c0_8 = arith.constant 0 : index
    %c0_9 = arith.constant 0 : index
    %6 = vector.load %arg1[%c1_7, %c0_8, %c0_9] : memref<2x8x32xf32, #tpu.memory_space<vmem>>, vector<1x8x32xf32>
    %7 = vector.shape_cast %6 : vector<1x8x32xf32> to vector<8x32xf32>
    %c0_10 = arith.constant 0 : index
    %c0_11 = arith.constant 0 : index
    %c0_12 = arith.constant 0 : index
    %8 = vector.load %arg2[%c0_10, %c0_11, %c0_12] : memref<2x32x48xf32, #tpu.memory_space<vmem>>, vector<1x32x48xf32>
    %9 = vector.shape_cast %8 : vector<1x32x48xf32> to vector<32x48xf32>
    %c1_13 = arith.constant 1 : index
    %c0_14 = arith.constant 0 : index
    %c0_15 = arith.constant 0 : index
    %10 = vector.load %arg2[%c1_13, %c0_14, %c0_15] : memref<2x32x48xf32, #tpu.memory_space<vmem>>, vector<1x32x48xf32>
    %11 = vector.shape_cast %10 : vector<1x32x48xf32> to vector<32x48xf32>
    %c0_16 = arith.constant 0 : index
    %c0_17 = arith.constant 0 : index
    %c0_18 = arith.constant 0 : index
    %12 = vector.load %arg3[%c0_16, %c0_17, %c0_18] : memref<2x16x48xf32, #tpu.memory_space<vmem>>, vector<1x16x48xf32>
    %13 = vector.shape_cast %12 : vector<1x16x48xf32> to vector<16x48xf32>
    %c1_19 = arith.constant 1 : index
    %c0_20 = arith.constant 0 : index
    %c0_21 = arith.constant 0 : index
    %14 = vector.load %arg3[%c1_19, %c0_20, %c0_21] : memref<2x16x48xf32, #tpu.memory_space<vmem>>, vector<1x16x48xf32>
    %15 = vector.shape_cast %14 : vector<1x16x48xf32> to vector<16x48xf32>
    %c0_22 = arith.constant 0 : index
    %c0_23 = arith.constant 0 : index
    %c0_24 = arith.constant 0 : index
    %16 = vector.load %arg4[%c0_22, %c0_23, %c0_24] : memref<2x1x48xf32, #tpu.memory_space<vmem>>, vector<1x1x48xf32>
    %17 = vector.shape_cast %16 : vector<1x1x48xf32> to vector<1x48xf32>
    %c1_25 = arith.constant 1 : index
    %c0_26 = arith.constant 0 : index
    %c0_27 = arith.constant 0 : index
    %18 = vector.load %arg4[%c1_25, %c0_26, %c0_27] : memref<2x1x48xf32, #tpu.memory_space<vmem>>, vector<1x1x48xf32>
    %19 = vector.shape_cast %18 : vector<1x1x48xf32> to vector<1x48xf32>
    %c0_28 = arith.constant 0 : index
    %c0_29 = arith.constant 0 : index
    %c0_30 = arith.constant 0 : index
    %20 = vector.load %arg5[%c0_28, %c0_29, %c0_30] : memref<2x1x48xf32, #tpu.memory_space<vmem>>, vector<1x1x48xf32>
    %21 = vector.shape_cast %20 : vector<1x1x48xf32> to vector<1x48xf32>
    %c1_31 = arith.constant 1 : index
    %c0_32 = arith.constant 0 : index
    %c0_33 = arith.constant 0 : index
    %22 = vector.load %arg5[%c1_31, %c0_32, %c0_33] : memref<2x1x48xf32, #tpu.memory_space<vmem>>, vector<1x1x48xf32>
    %23 = vector.shape_cast %22 : vector<1x1x48xf32> to vector<1x48xf32>
    %24 = vector.extract_strided_slice %1 {offsets = [0, 0], sizes = [1, 32], strides = [1, 1]} : vector<8x32xf32> to vector<1x32xf32>
    %25 = vector.extract_strided_slice %3 {offsets = [0, 0], sizes = [1, 32], strides = [1, 1]} : vector<8x32xf32> to vector<1x32xf32>
    %26 = vector.extract_strided_slice %5 {offsets = [0, 0], sizes = [1, 32], strides = [1, 1]} : vector<8x32xf32> to vector<1x32xf32>
    %27 = vector.extract_strided_slice %7 {offsets = [0, 0], sizes = [1, 32], strides = [1, 1]} : vector<8x32xf32> to vector<1x32xf32>
    %28 = vector.extract_strided_slice %1 {offsets = [1, 0], sizes = [1, 32], strides = [1, 1]} : vector<8x32xf32> to vector<1x32xf32>
    %29 = vector.extract_strided_slice %3 {offsets = [1, 0], sizes = [1, 32], strides = [1, 1]} : vector<8x32xf32> to vector<1x32xf32>
    %30 = vector.extract_strided_slice %5 {offsets = [1, 0], sizes = [1, 32], strides = [1, 1]} : vector<8x32xf32> to vector<1x32xf32>
    %31 = vector.extract_strided_slice %7 {offsets = [1, 0], sizes = [1, 32], strides = [1, 1]} : vector<8x32xf32> to vector<1x32xf32>
    %32 = vector.extract_strided_slice %1 {offsets = [2, 0], sizes = [1, 32], strides = [1, 1]} : vector<8x32xf32> to vector<1x32xf32>
    %33 = vector.extract_strided_slice %3 {offsets = [2, 0], sizes = [1, 32], strides = [1, 1]} : vector<8x32xf32> to vector<1x32xf32>
    %34 = vector.extract_strided_slice %5 {offsets = [2, 0], sizes = [1, 32], strides = [1, 1]} : vector<8x32xf32> to vector<1x32xf32>
    %35 = vector.extract_strided_slice %7 {offsets = [2, 0], sizes = [1, 32], strides = [1, 1]} : vector<8x32xf32> to vector<1x32xf32>
    %36 = vector.extract_strided_slice %1 {offsets = [3, 0], sizes = [1, 32], strides = [1, 1]} : vector<8x32xf32> to vector<1x32xf32>
    %37 = vector.extract_strided_slice %3 {offsets = [3, 0], sizes = [1, 32], strides = [1, 1]} : vector<8x32xf32> to vector<1x32xf32>
    %38 = vector.extract_strided_slice %5 {offsets = [3, 0], sizes = [1, 32], strides = [1, 1]} : vector<8x32xf32> to vector<1x32xf32>
    %39 = vector.extract_strided_slice %7 {offsets = [3, 0], sizes = [1, 32], strides = [1, 1]} : vector<8x32xf32> to vector<1x32xf32>
    %40 = vector.extract_strided_slice %1 {offsets = [4, 0], sizes = [1, 32], strides = [1, 1]} : vector<8x32xf32> to vector<1x32xf32>
    %41 = vector.extract_strided_slice %3 {offsets = [4, 0], sizes = [1, 32], strides = [1, 1]} : vector<8x32xf32> to vector<1x32xf32>
    %42 = vector.extract_strided_slice %5 {offsets = [4, 0], sizes = [1, 32], strides = [1, 1]} : vector<8x32xf32> to vector<1x32xf32>
    %43 = vector.extract_strided_slice %7 {offsets = [4, 0], sizes = [1, 32], strides = [1, 1]} : vector<8x32xf32> to vector<1x32xf32>
    %44 = vector.extract_strided_slice %1 {offsets = [5, 0], sizes = [1, 32], strides = [1, 1]} : vector<8x32xf32> to vector<1x32xf32>
    %45 = vector.extract_strided_slice %3 {offsets = [5, 0], sizes = [1, 32], strides = [1, 1]} : vector<8x32xf32> to vector<1x32xf32>
    %46 = vector.extract_strided_slice %5 {offsets = [5, 0], sizes = [1, 32], strides = [1, 1]} : vector<8x32xf32> to vector<1x32xf32>
    %47 = vector.extract_strided_slice %7 {offsets = [5, 0], sizes = [1, 32], strides = [1, 1]} : vector<8x32xf32> to vector<1x32xf32>
    %48 = vector.extract_strided_slice %1 {offsets = [6, 0], sizes = [1, 32], strides = [1, 1]} : vector<8x32xf32> to vector<1x32xf32>
    %49 = vector.extract_strided_slice %3 {offsets = [6, 0], sizes = [1, 32], strides = [1, 1]} : vector<8x32xf32> to vector<1x32xf32>
    %50 = vector.extract_strided_slice %5 {offsets = [6, 0], sizes = [1, 32], strides = [1, 1]} : vector<8x32xf32> to vector<1x32xf32>
    %51 = vector.extract_strided_slice %7 {offsets = [6, 0], sizes = [1, 32], strides = [1, 1]} : vector<8x32xf32> to vector<1x32xf32>
    %52 = vector.extract_strided_slice %1 {offsets = [7, 0], sizes = [1, 32], strides = [1, 1]} : vector<8x32xf32> to vector<1x32xf32>
    %53 = vector.extract_strided_slice %3 {offsets = [7, 0], sizes = [1, 32], strides = [1, 1]} : vector<8x32xf32> to vector<1x32xf32>
    %54 = vector.extract_strided_slice %5 {offsets = [7, 0], sizes = [1, 32], strides = [1, 1]} : vector<8x32xf32> to vector<1x32xf32>
    %55 = vector.extract_strided_slice %7 {offsets = [7, 0], sizes = [1, 32], strides = [1, 1]} : vector<8x32xf32> to vector<1x32xf32>
    %56 = tpu.concatenate %24, %25, %26, %27, %28, %29, %30, %31, %32, %33, %34, %35, %36, %37, %38, %39 in 0 : vector<1x32xf32>, vector<1x32xf32>, vector<1x32xf32>, vector<1x32xf32>, vector<1x32xf32>, vector<1x32xf32>, vector<1x32xf32>, vector<1x32xf32>, vector<1x32xf32>, vector<1x32xf32>, vector<1x32xf32>, vector<1x32xf32>, vector<1x32xf32>, vector<1x32xf32>, vector<1x32xf32>, vector<1x32xf32> -> vector<16x32xf32>
    %57 = tpu.concatenate %40, %41, %42, %43, %44, %45, %46, %47, %48, %49, %50, %51, %52, %53, %54, %55 in 0 : vector<1x32xf32>, vector<1x32xf32>, vector<1x32xf32>, vector<1x32xf32>, vector<1x32xf32>, vector<1x32xf32>, vector<1x32xf32>, vector<1x32xf32>, vector<1x32xf32>, vector<1x32xf32>, vector<1x32xf32>, vector<1x32xf32>, vector<1x32xf32>, vector<1x32xf32>, vector<1x32xf32>, vector<1x32xf32> -> vector<16x32xf32>
    %58 = tpu.concatenate %56, %57 in 0 : vector<16x32xf32>, vector<16x32xf32> -> vector<32x32xf32>
    %cst = arith.constant dense<0.000000e+00> : vector<32x48xf32>
    %59 = tpu.matmul %58, %9, %cst {dimension_numbers = #tpu.dot_dimension_numbers<[1], [0], [0], [1], [0, 0, 1, 1], [], []>} : vector<32x32xf32>, vector<32x48xf32>, vector<32x48xf32> -> vector<32x48xf32>
    %60 = vector.broadcast %17 : vector<1x48xf32> to vector<32x48xf32>
    %61 = arith.addf %59, %60 : vector<32x48xf32>
    %cst_34 = arith.constant dense<0.000000e+00> : vector<32x48xf32>
    %62 = tpu.matmul %58, %11, %cst_34 {dimension_numbers = #tpu.dot_dimension_numbers<[1], [0], [0], [1], [0, 0, 1, 1], [], []>} : vector<32x32xf32>, vector<32x48xf32>, vector<32x48xf32> -> vector<32x48xf32>
    %63 = vector.broadcast %19 : vector<1x48xf32> to vector<32x48xf32>
    %64 = arith.addf %62, %63 : vector<32x48xf32>
    %cst_35 = arith.constant 0.000000e+00 : f32
    %65 = vector.broadcast %cst_35 : f32 to vector<4x16xf32>
    %66 = vector.extract_strided_slice %61 {offsets = [0, 0], sizes = [4, 48], strides = [1, 1]} : vector<32x48xf32> to vector<4x48xf32>
    %cst_36 = arith.constant dense<0.000000e+00> : vector<4x48xf32>
    %67 = tpu.matmul %65, %13, %cst_36 {dimension_numbers = #tpu.dot_dimension_numbers<[1], [0], [0], [1], [0, 0, 1, 1], [], []>} : vector<4x16xf32>, vector<16x48xf32>, vector<4x48xf32> -> vector<4x48xf32>
    %68 = vector.broadcast %21 : vector<1x48xf32> to vector<4x48xf32>
    %69 = arith.addf %67, %68 : vector<4x48xf32>
    %70 = vector.extract_strided_slice %66 {offsets = [0, 0], sizes = [4, 16], strides = [1, 1]} : vector<4x48xf32> to vector<4x16xf32>
    %71 = vector.extract_strided_slice %69 {offsets = [0, 0], sizes = [4, 16], strides = [1, 1]} : vector<4x48xf32> to vector<4x16xf32>
    %72 = arith.addf %70, %71 : vector<4x16xf32>
    %73 = arith.negf %72 : vector<4x16xf32>
    %74 = math.exp %73 : vector<4x16xf32>
    %cst_37 = arith.constant 1.000000e+00 : f32
    %75 = vector.broadcast %cst_37 : f32 to vector<4x16xf32>
    %76 = arith.addf %75, %74 : vector<4x16xf32>
    %77 = arith.divf %75, %76 : vector<4x16xf32>
    %78 = vector.extract_strided_slice %66 {offsets = [0, 16], sizes = [4, 16], strides = [1, 1]} : vector<4x48xf32> to vector<4x16xf32>
    %79 = vector.extract_strided_slice %69 {offsets = [0, 16], sizes = [4, 16], strides = [1, 1]} : vector<4x48xf32> to vector<4x16xf32>
    %80 = arith.addf %78, %79 : vector<4x16xf32>
    %81 = arith.negf %80 : vector<4x16xf32>
    %82 = math.exp %81 : vector<4x16xf32>
    %cst_38 = arith.constant 1.000000e+00 : f32
    %83 = vector.broadcast %cst_38 : f32 to vector<4x16xf32>
    %84 = arith.addf %83, %82 : vector<4x16xf32>
    %85 = arith.divf %83, %84 : vector<4x16xf32>
    %86 = vector.extract_strided_slice %66 {offsets = [0, 32], sizes = [4, 16], strides = [1, 1]} : vector<4x48xf32> to vector<4x16xf32>
    %87 = vector.extract_strided_slice %69 {offsets = [0, 32], sizes = [4, 16], strides = [1, 1]} : vector<4x48xf32> to vector<4x16xf32>
    %88 = arith.mulf %77, %87 : vector<4x16xf32>
    %89 = arith.addf %86, %88 : vector<4x16xf32>
    %90 = math.tanh %89 : vector<4x16xf32>
    %cst_39 = arith.constant 1.000000e+00 : f32
    %91 = vector.broadcast %cst_39 : f32 to vector<4x16xf32>
    %92 = arith.subf %91, %85 : vector<4x16xf32>
    %93 = arith.mulf %92, %90 : vector<4x16xf32>
    %94 = arith.mulf %85, %65 : vector<4x16xf32>
    %95 = arith.addf %93, %94 : vector<4x16xf32>
    %96 = vector.extract_strided_slice %61 {offsets = [4, 0], sizes = [4, 48], strides = [1, 1]} : vector<32x48xf32> to vector<4x48xf32>
    %cst_40 = arith.constant dense<0.000000e+00> : vector<4x48xf32>
    %97 = tpu.matmul %95, %13, %cst_40 {dimension_numbers = #tpu.dot_dimension_numbers<[1], [0], [0], [1], [0, 0, 1, 1], [], []>} : vector<4x16xf32>, vector<16x48xf32>, vector<4x48xf32> -> vector<4x48xf32>
    %98 = vector.broadcast %21 : vector<1x48xf32> to vector<4x48xf32>
    %99 = arith.addf %97, %98 : vector<4x48xf32>
    %100 = vector.extract_strided_slice %96 {offsets = [0, 0], sizes = [4, 16], strides = [1, 1]} : vector<4x48xf32> to vector<4x16xf32>
    %101 = vector.extract_strided_slice %99 {offsets = [0, 0], sizes = [4, 16], strides = [1, 1]} : vector<4x48xf32> to vector<4x16xf32>
    %102 = arith.addf %100, %101 : vector<4x16xf32>
    %103 = arith.negf %102 : vector<4x16xf32>
    %104 = math.exp %103 : vector<4x16xf32>
    %cst_41 = arith.constant 1.000000e+00 : f32
    %105 = vector.broadcast %cst_41 : f32 to vector<4x16xf32>
    %106 = arith.addf %105, %104 : vector<4x16xf32>
    %107 = arith.divf %105, %106 : vector<4x16xf32>
    %108 = vector.extract_strided_slice %96 {offsets = [0, 16], sizes = [4, 16], strides = [1, 1]} : vector<4x48xf32> to vector<4x16xf32>
    %109 = vector.extract_strided_slice %99 {offsets = [0, 16], sizes = [4, 16], strides = [1, 1]} : vector<4x48xf32> to vector<4x16xf32>
    %110 = arith.addf %108, %109 : vector<4x16xf32>
    %111 = arith.negf %110 : vector<4x16xf32>
    %112 = math.exp %111 : vector<4x16xf32>
    %cst_42 = arith.constant 1.000000e+00 : f32
    %113 = vector.broadcast %cst_42 : f32 to vector<4x16xf32>
    %114 = arith.addf %113, %112 : vector<4x16xf32>
    %115 = arith.divf %113, %114 : vector<4x16xf32>
    %116 = vector.extract_strided_slice %96 {offsets = [0, 32], sizes = [4, 16], strides = [1, 1]} : vector<4x48xf32> to vector<4x16xf32>
    %117 = vector.extract_strided_slice %99 {offsets = [0, 32], sizes = [4, 16], strides = [1, 1]} : vector<4x48xf32> to vector<4x16xf32>
    %118 = arith.mulf %107, %117 : vector<4x16xf32>
    %119 = arith.addf %116, %118 : vector<4x16xf32>
    %120 = math.tanh %119 : vector<4x16xf32>
    %cst_43 = arith.constant 1.000000e+00 : f32
    %121 = vector.broadcast %cst_43 : f32 to vector<4x16xf32>
    %122 = arith.subf %121, %115 : vector<4x16xf32>
    %123 = arith.mulf %122, %120 : vector<4x16xf32>
    %124 = arith.mulf %115, %95 : vector<4x16xf32>
    %125 = arith.addf %123, %124 : vector<4x16xf32>
    %126 = vector.extract_strided_slice %61 {offsets = [8, 0], sizes = [4, 48], strides = [1, 1]} : vector<32x48xf32> to vector<4x48xf32>
    %cst_44 = arith.constant dense<0.000000e+00> : vector<4x48xf32>
    %127 = tpu.matmul %125, %13, %cst_44 {dimension_numbers = #tpu.dot_dimension_numbers<[1], [0], [0], [1], [0, 0, 1, 1], [], []>} : vector<4x16xf32>, vector<16x48xf32>, vector<4x48xf32> -> vector<4x48xf32>
    %128 = vector.broadcast %21 : vector<1x48xf32> to vector<4x48xf32>
    %129 = arith.addf %127, %128 : vector<4x48xf32>
    %130 = vector.extract_strided_slice %126 {offsets = [0, 0], sizes = [4, 16], strides = [1, 1]} : vector<4x48xf32> to vector<4x16xf32>
    %131 = vector.extract_strided_slice %129 {offsets = [0, 0], sizes = [4, 16], strides = [1, 1]} : vector<4x48xf32> to vector<4x16xf32>
    %132 = arith.addf %130, %131 : vector<4x16xf32>
    %133 = arith.negf %132 : vector<4x16xf32>
    %134 = math.exp %133 : vector<4x16xf32>
    %cst_45 = arith.constant 1.000000e+00 : f32
    %135 = vector.broadcast %cst_45 : f32 to vector<4x16xf32>
    %136 = arith.addf %135, %134 : vector<4x16xf32>
    %137 = arith.divf %135, %136 : vector<4x16xf32>
    %138 = vector.extract_strided_slice %126 {offsets = [0, 16], sizes = [4, 16], strides = [1, 1]} : vector<4x48xf32> to vector<4x16xf32>
    %139 = vector.extract_strided_slice %129 {offsets = [0, 16], sizes = [4, 16], strides = [1, 1]} : vector<4x48xf32> to vector<4x16xf32>
    %140 = arith.addf %138, %139 : vector<4x16xf32>
    %141 = arith.negf %140 : vector<4x16xf32>
    %142 = math.exp %141 : vector<4x16xf32>
    %cst_46 = arith.constant 1.000000e+00 : f32
    %143 = vector.broadcast %cst_46 : f32 to vector<4x16xf32>
    %144 = arith.addf %143, %142 : vector<4x16xf32>
    %145 = arith.divf %143, %144 : vector<4x16xf32>
    %146 = vector.extract_strided_slice %126 {offsets = [0, 32], sizes = [4, 16], strides = [1, 1]} : vector<4x48xf32> to vector<4x16xf32>
    %147 = vector.extract_strided_slice %129 {offsets = [0, 32], sizes = [4, 16], strides = [1, 1]} : vector<4x48xf32> to vector<4x16xf32>
    %148 = arith.mulf %137, %147 : vector<4x16xf32>
    %149 = arith.addf %146, %148 : vector<4x16xf32>
    %150 = math.tanh %149 : vector<4x16xf32>
    %cst_47 = arith.constant 1.000000e+00 : f32
    %151 = vector.broadcast %cst_47 : f32 to vector<4x16xf32>
    %152 = arith.subf %151, %145 : vector<4x16xf32>
    %153 = arith.mulf %152, %150 : vector<4x16xf32>
    %154 = arith.mulf %145, %125 : vector<4x16xf32>
    %155 = arith.addf %153, %154 : vector<4x16xf32>
    %156 = vector.extract_strided_slice %61 {offsets = [12, 0], sizes = [4, 48], strides = [1, 1]} : vector<32x48xf32> to vector<4x48xf32>
    %cst_48 = arith.constant dense<0.000000e+00> : vector<4x48xf32>
    %157 = tpu.matmul %155, %13, %cst_48 {dimension_numbers = #tpu.dot_dimension_numbers<[1], [0], [0], [1], [0, 0, 1, 1], [], []>} : vector<4x16xf32>, vector<16x48xf32>, vector<4x48xf32> -> vector<4x48xf32>
    %158 = vector.broadcast %21 : vector<1x48xf32> to vector<4x48xf32>
    %159 = arith.addf %157, %158 : vector<4x48xf32>
    %160 = vector.extract_strided_slice %156 {offsets = [0, 0], sizes = [4, 16], strides = [1, 1]} : vector<4x48xf32> to vector<4x16xf32>
    %161 = vector.extract_strided_slice %159 {offsets = [0, 0], sizes = [4, 16], strides = [1, 1]} : vector<4x48xf32> to vector<4x16xf32>
    %162 = arith.addf %160, %161 : vector<4x16xf32>
    %163 = arith.negf %162 : vector<4x16xf32>
    %164 = math.exp %163 : vector<4x16xf32>
    %cst_49 = arith.constant 1.000000e+00 : f32
    %165 = vector.broadcast %cst_49 : f32 to vector<4x16xf32>
    %166 = arith.addf %165, %164 : vector<4x16xf32>
    %167 = arith.divf %165, %166 : vector<4x16xf32>
    %168 = vector.extract_strided_slice %156 {offsets = [0, 16], sizes = [4, 16], strides = [1, 1]} : vector<4x48xf32> to vector<4x16xf32>
    %169 = vector.extract_strided_slice %159 {offsets = [0, 16], sizes = [4, 16], strides = [1, 1]} : vector<4x48xf32> to vector<4x16xf32>
    %170 = arith.addf %168, %169 : vector<4x16xf32>
    %171 = arith.negf %170 : vector<4x16xf32>
    %172 = math.exp %171 : vector<4x16xf32>
    %cst_50 = arith.constant 1.000000e+00 : f32
    %173 = vector.broadcast %cst_50 : f32 to vector<4x16xf32>
    %174 = arith.addf %173, %172 : vector<4x16xf32>
    %175 = arith.divf %173, %174 : vector<4x16xf32>
    %176 = vector.extract_strided_slice %156 {offsets = [0, 32], sizes = [4, 16], strides = [1, 1]} : vector<4x48xf32> to vector<4x16xf32>
    %177 = vector.extract_strided_slice %159 {offsets = [0, 32], sizes = [4, 16], strides = [1, 1]} : vector<4x48xf32> to vector<4x16xf32>
    %178 = arith.mulf %167, %177 : vector<4x16xf32>
    %179 = arith.addf %176, %178 : vector<4x16xf32>
    %180 = math.tanh %179 : vector<4x16xf32>
    %cst_51 = arith.constant 1.000000e+00 : f32
    %181 = vector.broadcast %cst_51 : f32 to vector<4x16xf32>
    %182 = arith.subf %181, %175 : vector<4x16xf32>
    %183 = arith.mulf %182, %180 : vector<4x16xf32>
    %184 = arith.mulf %175, %155 : vector<4x16xf32>
    %185 = arith.addf %183, %184 : vector<4x16xf32>
    %186 = vector.extract_strided_slice %61 {offsets = [16, 0], sizes = [4, 48], strides = [1, 1]} : vector<32x48xf32> to vector<4x48xf32>
    %cst_52 = arith.constant dense<0.000000e+00> : vector<4x48xf32>
    %187 = tpu.matmul %185, %13, %cst_52 {dimension_numbers = #tpu.dot_dimension_numbers<[1], [0], [0], [1], [0, 0, 1, 1], [], []>} : vector<4x16xf32>, vector<16x48xf32>, vector<4x48xf32> -> vector<4x48xf32>
    %188 = vector.broadcast %21 : vector<1x48xf32> to vector<4x48xf32>
    %189 = arith.addf %187, %188 : vector<4x48xf32>
    %190 = vector.extract_strided_slice %186 {offsets = [0, 0], sizes = [4, 16], strides = [1, 1]} : vector<4x48xf32> to vector<4x16xf32>
    %191 = vector.extract_strided_slice %189 {offsets = [0, 0], sizes = [4, 16], strides = [1, 1]} : vector<4x48xf32> to vector<4x16xf32>
    %192 = arith.addf %190, %191 : vector<4x16xf32>
    %193 = arith.negf %192 : vector<4x16xf32>
    %194 = math.exp %193 : vector<4x16xf32>
    %cst_53 = arith.constant 1.000000e+00 : f32
    %195 = vector.broadcast %cst_53 : f32 to vector<4x16xf32>
    %196 = arith.addf %195, %194 : vector<4x16xf32>
    %197 = arith.divf %195, %196 : vector<4x16xf32>
    %198 = vector.extract_strided_slice %186 {offsets = [0, 16], sizes = [4, 16], strides = [1, 1]} : vector<4x48xf32> to vector<4x16xf32>
    %199 = vector.extract_strided_slice %189 {offsets = [0, 16], sizes = [4, 16], strides = [1, 1]} : vector<4x48xf32> to vector<4x16xf32>
    %200 = arith.addf %198, %199 : vector<4x16xf32>
    %201 = arith.negf %200 : vector<4x16xf32>
    %202 = math.exp %201 : vector<4x16xf32>
    %cst_54 = arith.constant 1.000000e+00 : f32
    %203 = vector.broadcast %cst_54 : f32 to vector<4x16xf32>
    %204 = arith.addf %203, %202 : vector<4x16xf32>
    %205 = arith.divf %203, %204 : vector<4x16xf32>
    %206 = vector.extract_strided_slice %186 {offsets = [0, 32], sizes = [4, 16], strides = [1, 1]} : vector<4x48xf32> to vector<4x16xf32>
    %207 = vector.extract_strided_slice %189 {offsets = [0, 32], sizes = [4, 16], strides = [1, 1]} : vector<4x48xf32> to vector<4x16xf32>
    %208 = arith.mulf %197, %207 : vector<4x16xf32>
    %209 = arith.addf %206, %208 : vector<4x16xf32>
    %210 = math.tanh %209 : vector<4x16xf32>
    %cst_55 = arith.constant 1.000000e+00 : f32
    %211 = vector.broadcast %cst_55 : f32 to vector<4x16xf32>
    %212 = arith.subf %211, %205 : vector<4x16xf32>
    %213 = arith.mulf %212, %210 : vector<4x16xf32>
    %214 = arith.mulf %205, %185 : vector<4x16xf32>
    %215 = arith.addf %213, %214 : vector<4x16xf32>
    %216 = vector.extract_strided_slice %61 {offsets = [20, 0], sizes = [4, 48], strides = [1, 1]} : vector<32x48xf32> to vector<4x48xf32>
    %cst_56 = arith.constant dense<0.000000e+00> : vector<4x48xf32>
    %217 = tpu.matmul %215, %13, %cst_56 {dimension_numbers = #tpu.dot_dimension_numbers<[1], [0], [0], [1], [0, 0, 1, 1], [], []>} : vector<4x16xf32>, vector<16x48xf32>, vector<4x48xf32> -> vector<4x48xf32>
    %218 = vector.broadcast %21 : vector<1x48xf32> to vector<4x48xf32>
    %219 = arith.addf %217, %218 : vector<4x48xf32>
    %220 = vector.extract_strided_slice %216 {offsets = [0, 0], sizes = [4, 16], strides = [1, 1]} : vector<4x48xf32> to vector<4x16xf32>
    %221 = vector.extract_strided_slice %219 {offsets = [0, 0], sizes = [4, 16], strides = [1, 1]} : vector<4x48xf32> to vector<4x16xf32>
    %222 = arith.addf %220, %221 : vector<4x16xf32>
    %223 = arith.negf %222 : vector<4x16xf32>
    %224 = math.exp %223 : vector<4x16xf32>
    %cst_57 = arith.constant 1.000000e+00 : f32
    %225 = vector.broadcast %cst_57 : f32 to vector<4x16xf32>
    %226 = arith.addf %225, %224 : vector<4x16xf32>
    %227 = arith.divf %225, %226 : vector<4x16xf32>
    %228 = vector.extract_strided_slice %216 {offsets = [0, 16], sizes = [4, 16], strides = [1, 1]} : vector<4x48xf32> to vector<4x16xf32>
    %229 = vector.extract_strided_slice %219 {offsets = [0, 16], sizes = [4, 16], strides = [1, 1]} : vector<4x48xf32> to vector<4x16xf32>
    %230 = arith.addf %228, %229 : vector<4x16xf32>
    %231 = arith.negf %230 : vector<4x16xf32>
    %232 = math.exp %231 : vector<4x16xf32>
    %cst_58 = arith.constant 1.000000e+00 : f32
    %233 = vector.broadcast %cst_58 : f32 to vector<4x16xf32>
    %234 = arith.addf %233, %232 : vector<4x16xf32>
    %235 = arith.divf %233, %234 : vector<4x16xf32>
    %236 = vector.extract_strided_slice %216 {offsets = [0, 32], sizes = [4, 16], strides = [1, 1]} : vector<4x48xf32> to vector<4x16xf32>
    %237 = vector.extract_strided_slice %219 {offsets = [0, 32], sizes = [4, 16], strides = [1, 1]} : vector<4x48xf32> to vector<4x16xf32>
    %238 = arith.mulf %227, %237 : vector<4x16xf32>
    %239 = arith.addf %236, %238 : vector<4x16xf32>
    %240 = math.tanh %239 : vector<4x16xf32>
    %cst_59 = arith.constant 1.000000e+00 : f32
    %241 = vector.broadcast %cst_59 : f32 to vector<4x16xf32>
    %242 = arith.subf %241, %235 : vector<4x16xf32>
    %243 = arith.mulf %242, %240 : vector<4x16xf32>
    %244 = arith.mulf %235, %215 : vector<4x16xf32>
    %245 = arith.addf %243, %244 : vector<4x16xf32>
    %246 = vector.extract_strided_slice %61 {offsets = [24, 0], sizes = [4, 48], strides = [1, 1]} : vector<32x48xf32> to vector<4x48xf32>
    %cst_60 = arith.constant dense<0.000000e+00> : vector<4x48xf32>
    %247 = tpu.matmul %245, %13, %cst_60 {dimension_numbers = #tpu.dot_dimension_numbers<[1], [0], [0], [1], [0, 0, 1, 1], [], []>} : vector<4x16xf32>, vector<16x48xf32>, vector<4x48xf32> -> vector<4x48xf32>
    %248 = vector.broadcast %21 : vector<1x48xf32> to vector<4x48xf32>
    %249 = arith.addf %247, %248 : vector<4x48xf32>
    %250 = vector.extract_strided_slice %246 {offsets = [0, 0], sizes = [4, 16], strides = [1, 1]} : vector<4x48xf32> to vector<4x16xf32>
    %251 = vector.extract_strided_slice %249 {offsets = [0, 0], sizes = [4, 16], strides = [1, 1]} : vector<4x48xf32> to vector<4x16xf32>
    %252 = arith.addf %250, %251 : vector<4x16xf32>
    %253 = arith.negf %252 : vector<4x16xf32>
    %254 = math.exp %253 : vector<4x16xf32>
    %cst_61 = arith.constant 1.000000e+00 : f32
    %255 = vector.broadcast %cst_61 : f32 to vector<4x16xf32>
    %256 = arith.addf %255, %254 : vector<4x16xf32>
    %257 = arith.divf %255, %256 : vector<4x16xf32>
    %258 = vector.extract_strided_slice %246 {offsets = [0, 16], sizes = [4, 16], strides = [1, 1]} : vector<4x48xf32> to vector<4x16xf32>
    %259 = vector.extract_strided_slice %249 {offsets = [0, 16], sizes = [4, 16], strides = [1, 1]} : vector<4x48xf32> to vector<4x16xf32>
    %260 = arith.addf %258, %259 : vector<4x16xf32>
    %261 = arith.negf %260 : vector<4x16xf32>
    %262 = math.exp %261 : vector<4x16xf32>
    %cst_62 = arith.constant 1.000000e+00 : f32
    %263 = vector.broadcast %cst_62 : f32 to vector<4x16xf32>
    %264 = arith.addf %263, %262 : vector<4x16xf32>
    %265 = arith.divf %263, %264 : vector<4x16xf32>
    %266 = vector.extract_strided_slice %246 {offsets = [0, 32], sizes = [4, 16], strides = [1, 1]} : vector<4x48xf32> to vector<4x16xf32>
    %267 = vector.extract_strided_slice %249 {offsets = [0, 32], sizes = [4, 16], strides = [1, 1]} : vector<4x48xf32> to vector<4x16xf32>
    %268 = arith.mulf %257, %267 : vector<4x16xf32>
    %269 = arith.addf %266, %268 : vector<4x16xf32>
    %270 = math.tanh %269 : vector<4x16xf32>
    %cst_63 = arith.constant 1.000000e+00 : f32
    %271 = vector.broadcast %cst_63 : f32 to vector<4x16xf32>
    %272 = arith.subf %271, %265 : vector<4x16xf32>
    %273 = arith.mulf %272, %270 : vector<4x16xf32>
    %274 = arith.mulf %265, %245 : vector<4x16xf32>
    %275 = arith.addf %273, %274 : vector<4x16xf32>
    %276 = vector.extract_strided_slice %61 {offsets = [28, 0], sizes = [4, 48], strides = [1, 1]} : vector<32x48xf32> to vector<4x48xf32>
    %cst_64 = arith.constant dense<0.000000e+00> : vector<4x48xf32>
    %277 = tpu.matmul %275, %13, %cst_64 {dimension_numbers = #tpu.dot_dimension_numbers<[1], [0], [0], [1], [0, 0, 1, 1], [], []>} : vector<4x16xf32>, vector<16x48xf32>, vector<4x48xf32> -> vector<4x48xf32>
    %278 = vector.broadcast %21 : vector<1x48xf32> to vector<4x48xf32>
    %279 = arith.addf %277, %278 : vector<4x48xf32>
    %280 = vector.extract_strided_slice %276 {offsets = [0, 0], sizes = [4, 16], strides = [1, 1]} : vector<4x48xf32> to vector<4x16xf32>
    %281 = vector.extract_strided_slice %279 {offsets = [0, 0], sizes = [4, 16], strides = [1, 1]} : vector<4x48xf32> to vector<4x16xf32>
    %282 = arith.addf %280, %281 : vector<4x16xf32>
    %283 = arith.negf %282 : vector<4x16xf32>
    %284 = math.exp %283 : vector<4x16xf32>
    %cst_65 = arith.constant 1.000000e+00 : f32
    %285 = vector.broadcast %cst_65 : f32 to vector<4x16xf32>
    %286 = arith.addf %285, %284 : vector<4x16xf32>
    %287 = arith.divf %285, %286 : vector<4x16xf32>
    %288 = vector.extract_strided_slice %276 {offsets = [0, 16], sizes = [4, 16], strides = [1, 1]} : vector<4x48xf32> to vector<4x16xf32>
    %289 = vector.extract_strided_slice %279 {offsets = [0, 16], sizes = [4, 16], strides = [1, 1]} : vector<4x48xf32> to vector<4x16xf32>
    %290 = arith.addf %288, %289 : vector<4x16xf32>
    %291 = arith.negf %290 : vector<4x16xf32>
    %292 = math.exp %291 : vector<4x16xf32>
    %cst_66 = arith.constant 1.000000e+00 : f32
    %293 = vector.broadcast %cst_66 : f32 to vector<4x16xf32>
    %294 = arith.addf %293, %292 : vector<4x16xf32>
    %295 = arith.divf %293, %294 : vector<4x16xf32>
    %296 = vector.extract_strided_slice %276 {offsets = [0, 32], sizes = [4, 16], strides = [1, 1]} : vector<4x48xf32> to vector<4x16xf32>
    %297 = vector.extract_strided_slice %279 {offsets = [0, 32], sizes = [4, 16], strides = [1, 1]} : vector<4x48xf32> to vector<4x16xf32>
    %298 = arith.mulf %287, %297 : vector<4x16xf32>
    %299 = arith.addf %296, %298 : vector<4x16xf32>
    %300 = math.tanh %299 : vector<4x16xf32>
    %cst_67 = arith.constant 1.000000e+00 : f32
    %301 = vector.broadcast %cst_67 : f32 to vector<4x16xf32>
    %302 = arith.subf %301, %295 : vector<4x16xf32>
    %303 = arith.mulf %302, %300 : vector<4x16xf32>
    %304 = arith.mulf %295, %275 : vector<4x16xf32>
    %305 = arith.addf %303, %304 : vector<4x16xf32>
    %cst_68 = arith.constant 0.000000e+00 : f32
    %306 = vector.broadcast %cst_68 : f32 to vector<4x16xf32>
    %307 = vector.extract_strided_slice %64 {offsets = [28, 0], sizes = [4, 48], strides = [1, 1]} : vector<32x48xf32> to vector<4x48xf32>
    %cst_69 = arith.constant dense<0.000000e+00> : vector<4x48xf32>
    %308 = tpu.matmul %306, %15, %cst_69 {dimension_numbers = #tpu.dot_dimension_numbers<[1], [0], [0], [1], [0, 0, 1, 1], [], []>} : vector<4x16xf32>, vector<16x48xf32>, vector<4x48xf32> -> vector<4x48xf32>
    %309 = vector.broadcast %23 : vector<1x48xf32> to vector<4x48xf32>
    %310 = arith.addf %308, %309 : vector<4x48xf32>
    %311 = vector.extract_strided_slice %307 {offsets = [0, 0], sizes = [4, 16], strides = [1, 1]} : vector<4x48xf32> to vector<4x16xf32>
    %312 = vector.extract_strided_slice %310 {offsets = [0, 0], sizes = [4, 16], strides = [1, 1]} : vector<4x48xf32> to vector<4x16xf32>
    %313 = arith.addf %311, %312 : vector<4x16xf32>
    %314 = arith.negf %313 : vector<4x16xf32>
    %315 = math.exp %314 : vector<4x16xf32>
    %cst_70 = arith.constant 1.000000e+00 : f32
    %316 = vector.broadcast %cst_70 : f32 to vector<4x16xf32>
    %317 = arith.addf %316, %315 : vector<4x16xf32>
    %318 = arith.divf %316, %317 : vector<4x16xf32>
    %319 = vector.extract_strided_slice %307 {offsets = [0, 16], sizes = [4, 16], strides = [1, 1]} : vector<4x48xf32> to vector<4x16xf32>
    %320 = vector.extract_strided_slice %310 {offsets = [0, 16], sizes = [4, 16], strides = [1, 1]} : vector<4x48xf32> to vector<4x16xf32>
    %321 = arith.addf %319, %320 : vector<4x16xf32>
    %322 = arith.negf %321 : vector<4x16xf32>
    %323 = math.exp %322 : vector<4x16xf32>
    %cst_71 = arith.constant 1.000000e+00 : f32
    %324 = vector.broadcast %cst_71 : f32 to vector<4x16xf32>
    %325 = arith.addf %324, %323 : vector<4x16xf32>
    %326 = arith.divf %324, %325 : vector<4x16xf32>
    %327 = vector.extract_strided_slice %307 {offsets = [0, 32], sizes = [4, 16], strides = [1, 1]} : vector<4x48xf32> to vector<4x16xf32>
    %328 = vector.extract_strided_slice %310 {offsets = [0, 32], sizes = [4, 16], strides = [1, 1]} : vector<4x48xf32> to vector<4x16xf32>
    %329 = arith.mulf %318, %328 : vector<4x16xf32>
    %330 = arith.addf %327, %329 : vector<4x16xf32>
    %331 = math.tanh %330 : vector<4x16xf32>
    %cst_72 = arith.constant 1.000000e+00 : f32
    %332 = vector.broadcast %cst_72 : f32 to vector<4x16xf32>
    %333 = arith.subf %332, %326 : vector<4x16xf32>
    %334 = arith.mulf %333, %331 : vector<4x16xf32>
    %335 = arith.mulf %326, %306 : vector<4x16xf32>
    %336 = arith.addf %334, %335 : vector<4x16xf32>
    %337 = vector.extract_strided_slice %64 {offsets = [24, 0], sizes = [4, 48], strides = [1, 1]} : vector<32x48xf32> to vector<4x48xf32>
    %cst_73 = arith.constant dense<0.000000e+00> : vector<4x48xf32>
    %338 = tpu.matmul %336, %15, %cst_73 {dimension_numbers = #tpu.dot_dimension_numbers<[1], [0], [0], [1], [0, 0, 1, 1], [], []>} : vector<4x16xf32>, vector<16x48xf32>, vector<4x48xf32> -> vector<4x48xf32>
    %339 = vector.broadcast %23 : vector<1x48xf32> to vector<4x48xf32>
    %340 = arith.addf %338, %339 : vector<4x48xf32>
    %341 = vector.extract_strided_slice %337 {offsets = [0, 0], sizes = [4, 16], strides = [1, 1]} : vector<4x48xf32> to vector<4x16xf32>
    %342 = vector.extract_strided_slice %340 {offsets = [0, 0], sizes = [4, 16], strides = [1, 1]} : vector<4x48xf32> to vector<4x16xf32>
    %343 = arith.addf %341, %342 : vector<4x16xf32>
    %344 = arith.negf %343 : vector<4x16xf32>
    %345 = math.exp %344 : vector<4x16xf32>
    %cst_74 = arith.constant 1.000000e+00 : f32
    %346 = vector.broadcast %cst_74 : f32 to vector<4x16xf32>
    %347 = arith.addf %346, %345 : vector<4x16xf32>
    %348 = arith.divf %346, %347 : vector<4x16xf32>
    %349 = vector.extract_strided_slice %337 {offsets = [0, 16], sizes = [4, 16], strides = [1, 1]} : vector<4x48xf32> to vector<4x16xf32>
    %350 = vector.extract_strided_slice %340 {offsets = [0, 16], sizes = [4, 16], strides = [1, 1]} : vector<4x48xf32> to vector<4x16xf32>
    %351 = arith.addf %349, %350 : vector<4x16xf32>
    %352 = arith.negf %351 : vector<4x16xf32>
    %353 = math.exp %352 : vector<4x16xf32>
    %cst_75 = arith.constant 1.000000e+00 : f32
    %354 = vector.broadcast %cst_75 : f32 to vector<4x16xf32>
    %355 = arith.addf %354, %353 : vector<4x16xf32>
    %356 = arith.divf %354, %355 : vector<4x16xf32>
    %357 = vector.extract_strided_slice %337 {offsets = [0, 32], sizes = [4, 16], strides = [1, 1]} : vector<4x48xf32> to vector<4x16xf32>
    %358 = vector.extract_strided_slice %340 {offsets = [0, 32], sizes = [4, 16], strides = [1, 1]} : vector<4x48xf32> to vector<4x16xf32>
    %359 = arith.mulf %348, %358 : vector<4x16xf32>
    %360 = arith.addf %357, %359 : vector<4x16xf32>
    %361 = math.tanh %360 : vector<4x16xf32>
    %cst_76 = arith.constant 1.000000e+00 : f32
    %362 = vector.broadcast %cst_76 : f32 to vector<4x16xf32>
    %363 = arith.subf %362, %356 : vector<4x16xf32>
    %364 = arith.mulf %363, %361 : vector<4x16xf32>
    %365 = arith.mulf %356, %336 : vector<4x16xf32>
    %366 = arith.addf %364, %365 : vector<4x16xf32>
    %367 = vector.extract_strided_slice %64 {offsets = [20, 0], sizes = [4, 48], strides = [1, 1]} : vector<32x48xf32> to vector<4x48xf32>
    %cst_77 = arith.constant dense<0.000000e+00> : vector<4x48xf32>
    %368 = tpu.matmul %366, %15, %cst_77 {dimension_numbers = #tpu.dot_dimension_numbers<[1], [0], [0], [1], [0, 0, 1, 1], [], []>} : vector<4x16xf32>, vector<16x48xf32>, vector<4x48xf32> -> vector<4x48xf32>
    %369 = vector.broadcast %23 : vector<1x48xf32> to vector<4x48xf32>
    %370 = arith.addf %368, %369 : vector<4x48xf32>
    %371 = vector.extract_strided_slice %367 {offsets = [0, 0], sizes = [4, 16], strides = [1, 1]} : vector<4x48xf32> to vector<4x16xf32>
    %372 = vector.extract_strided_slice %370 {offsets = [0, 0], sizes = [4, 16], strides = [1, 1]} : vector<4x48xf32> to vector<4x16xf32>
    %373 = arith.addf %371, %372 : vector<4x16xf32>
    %374 = arith.negf %373 : vector<4x16xf32>
    %375 = math.exp %374 : vector<4x16xf32>
    %cst_78 = arith.constant 1.000000e+00 : f32
    %376 = vector.broadcast %cst_78 : f32 to vector<4x16xf32>
    %377 = arith.addf %376, %375 : vector<4x16xf32>
    %378 = arith.divf %376, %377 : vector<4x16xf32>
    %379 = vector.extract_strided_slice %367 {offsets = [0, 16], sizes = [4, 16], strides = [1, 1]} : vector<4x48xf32> to vector<4x16xf32>
    %380 = vector.extract_strided_slice %370 {offsets = [0, 16], sizes = [4, 16], strides = [1, 1]} : vector<4x48xf32> to vector<4x16xf32>
    %381 = arith.addf %379, %380 : vector<4x16xf32>
    %382 = arith.negf %381 : vector<4x16xf32>
    %383 = math.exp %382 : vector<4x16xf32>
    %cst_79 = arith.constant 1.000000e+00 : f32
    %384 = vector.broadcast %cst_79 : f32 to vector<4x16xf32>
    %385 = arith.addf %384, %383 : vector<4x16xf32>
    %386 = arith.divf %384, %385 : vector<4x16xf32>
    %387 = vector.extract_strided_slice %367 {offsets = [0, 32], sizes = [4, 16], strides = [1, 1]} : vector<4x48xf32> to vector<4x16xf32>
    %388 = vector.extract_strided_slice %370 {offsets = [0, 32], sizes = [4, 16], strides = [1, 1]} : vector<4x48xf32> to vector<4x16xf32>
    %389 = arith.mulf %378, %388 : vector<4x16xf32>
    %390 = arith.addf %387, %389 : vector<4x16xf32>
    %391 = math.tanh %390 : vector<4x16xf32>
    %cst_80 = arith.constant 1.000000e+00 : f32
    %392 = vector.broadcast %cst_80 : f32 to vector<4x16xf32>
    %393 = arith.subf %392, %386 : vector<4x16xf32>
    %394 = arith.mulf %393, %391 : vector<4x16xf32>
    %395 = arith.mulf %386, %366 : vector<4x16xf32>
    %396 = arith.addf %394, %395 : vector<4x16xf32>
    %397 = vector.extract_strided_slice %64 {offsets = [16, 0], sizes = [4, 48], strides = [1, 1]} : vector<32x48xf32> to vector<4x48xf32>
    %cst_81 = arith.constant dense<0.000000e+00> : vector<4x48xf32>
    %398 = tpu.matmul %396, %15, %cst_81 {dimension_numbers = #tpu.dot_dimension_numbers<[1], [0], [0], [1], [0, 0, 1, 1], [], []>} : vector<4x16xf32>, vector<16x48xf32>, vector<4x48xf32> -> vector<4x48xf32>
    %399 = vector.broadcast %23 : vector<1x48xf32> to vector<4x48xf32>
    %400 = arith.addf %398, %399 : vector<4x48xf32>
    %401 = vector.extract_strided_slice %397 {offsets = [0, 0], sizes = [4, 16], strides = [1, 1]} : vector<4x48xf32> to vector<4x16xf32>
    %402 = vector.extract_strided_slice %400 {offsets = [0, 0], sizes = [4, 16], strides = [1, 1]} : vector<4x48xf32> to vector<4x16xf32>
    %403 = arith.addf %401, %402 : vector<4x16xf32>
    %404 = arith.negf %403 : vector<4x16xf32>
    %405 = math.exp %404 : vector<4x16xf32>
    %cst_82 = arith.constant 1.000000e+00 : f32
    %406 = vector.broadcast %cst_82 : f32 to vector<4x16xf32>
    %407 = arith.addf %406, %405 : vector<4x16xf32>
    %408 = arith.divf %406, %407 : vector<4x16xf32>
    %409 = vector.extract_strided_slice %397 {offsets = [0, 16], sizes = [4, 16], strides = [1, 1]} : vector<4x48xf32> to vector<4x16xf32>
    %410 = vector.extract_strided_slice %400 {offsets = [0, 16], sizes = [4, 16], strides = [1, 1]} : vector<4x48xf32> to vector<4x16xf32>
    %411 = arith.addf %409, %410 : vector<4x16xf32>
    %412 = arith.negf %411 : vector<4x16xf32>
    %413 = math.exp %412 : vector<4x16xf32>
    %cst_83 = arith.constant 1.000000e+00 : f32
    %414 = vector.broadcast %cst_83 : f32 to vector<4x16xf32>
    %415 = arith.addf %414, %413 : vector<4x16xf32>
    %416 = arith.divf %414, %415 : vector<4x16xf32>
    %417 = vector.extract_strided_slice %397 {offsets = [0, 32], sizes = [4, 16], strides = [1, 1]} : vector<4x48xf32> to vector<4x16xf32>
    %418 = vector.extract_strided_slice %400 {offsets = [0, 32], sizes = [4, 16], strides = [1, 1]} : vector<4x48xf32> to vector<4x16xf32>
    %419 = arith.mulf %408, %418 : vector<4x16xf32>
    %420 = arith.addf %417, %419 : vector<4x16xf32>
    %421 = math.tanh %420 : vector<4x16xf32>
    %cst_84 = arith.constant 1.000000e+00 : f32
    %422 = vector.broadcast %cst_84 : f32 to vector<4x16xf32>
    %423 = arith.subf %422, %416 : vector<4x16xf32>
    %424 = arith.mulf %423, %421 : vector<4x16xf32>
    %425 = arith.mulf %416, %396 : vector<4x16xf32>
    %426 = arith.addf %424, %425 : vector<4x16xf32>
    %427 = vector.extract_strided_slice %64 {offsets = [12, 0], sizes = [4, 48], strides = [1, 1]} : vector<32x48xf32> to vector<4x48xf32>
    %cst_85 = arith.constant dense<0.000000e+00> : vector<4x48xf32>
    %428 = tpu.matmul %426, %15, %cst_85 {dimension_numbers = #tpu.dot_dimension_numbers<[1], [0], [0], [1], [0, 0, 1, 1], [], []>} : vector<4x16xf32>, vector<16x48xf32>, vector<4x48xf32> -> vector<4x48xf32>
    %429 = vector.broadcast %23 : vector<1x48xf32> to vector<4x48xf32>
    %430 = arith.addf %428, %429 : vector<4x48xf32>
    %431 = vector.extract_strided_slice %427 {offsets = [0, 0], sizes = [4, 16], strides = [1, 1]} : vector<4x48xf32> to vector<4x16xf32>
    %432 = vector.extract_strided_slice %430 {offsets = [0, 0], sizes = [4, 16], strides = [1, 1]} : vector<4x48xf32> to vector<4x16xf32>
    %433 = arith.addf %431, %432 : vector<4x16xf32>
    %434 = arith.negf %433 : vector<4x16xf32>
    %435 = math.exp %434 : vector<4x16xf32>
    %cst_86 = arith.constant 1.000000e+00 : f32
    %436 = vector.broadcast %cst_86 : f32 to vector<4x16xf32>
    %437 = arith.addf %436, %435 : vector<4x16xf32>
    %438 = arith.divf %436, %437 : vector<4x16xf32>
    %439 = vector.extract_strided_slice %427 {offsets = [0, 16], sizes = [4, 16], strides = [1, 1]} : vector<4x48xf32> to vector<4x16xf32>
    %440 = vector.extract_strided_slice %430 {offsets = [0, 16], sizes = [4, 16], strides = [1, 1]} : vector<4x48xf32> to vector<4x16xf32>
    %441 = arith.addf %439, %440 : vector<4x16xf32>
    %442 = arith.negf %441 : vector<4x16xf32>
    %443 = math.exp %442 : vector<4x16xf32>
    %cst_87 = arith.constant 1.000000e+00 : f32
    %444 = vector.broadcast %cst_87 : f32 to vector<4x16xf32>
    %445 = arith.addf %444, %443 : vector<4x16xf32>
    %446 = arith.divf %444, %445 : vector<4x16xf32>
    %447 = vector.extract_strided_slice %427 {offsets = [0, 32], sizes = [4, 16], strides = [1, 1]} : vector<4x48xf32> to vector<4x16xf32>
    %448 = vector.extract_strided_slice %430 {offsets = [0, 32], sizes = [4, 16], strides = [1, 1]} : vector<4x48xf32> to vector<4x16xf32>
    %449 = arith.mulf %438, %448 : vector<4x16xf32>
    %450 = arith.addf %447, %449 : vector<4x16xf32>
    %451 = math.tanh %450 : vector<4x16xf32>
    %cst_88 = arith.constant 1.000000e+00 : f32
    %452 = vector.broadcast %cst_88 : f32 to vector<4x16xf32>
    %453 = arith.subf %452, %446 : vector<4x16xf32>
    %454 = arith.mulf %453, %451 : vector<4x16xf32>
    %455 = arith.mulf %446, %426 : vector<4x16xf32>
    %456 = arith.addf %454, %455 : vector<4x16xf32>
    %457 = vector.extract_strided_slice %64 {offsets = [8, 0], sizes = [4, 48], strides = [1, 1]} : vector<32x48xf32> to vector<4x48xf32>
    %cst_89 = arith.constant dense<0.000000e+00> : vector<4x48xf32>
    %458 = tpu.matmul %456, %15, %cst_89 {dimension_numbers = #tpu.dot_dimension_numbers<[1], [0], [0], [1], [0, 0, 1, 1], [], []>} : vector<4x16xf32>, vector<16x48xf32>, vector<4x48xf32> -> vector<4x48xf32>
    %459 = vector.broadcast %23 : vector<1x48xf32> to vector<4x48xf32>
    %460 = arith.addf %458, %459 : vector<4x48xf32>
    %461 = vector.extract_strided_slice %457 {offsets = [0, 0], sizes = [4, 16], strides = [1, 1]} : vector<4x48xf32> to vector<4x16xf32>
    %462 = vector.extract_strided_slice %460 {offsets = [0, 0], sizes = [4, 16], strides = [1, 1]} : vector<4x48xf32> to vector<4x16xf32>
    %463 = arith.addf %461, %462 : vector<4x16xf32>
    %464 = arith.negf %463 : vector<4x16xf32>
    %465 = math.exp %464 : vector<4x16xf32>
    %cst_90 = arith.constant 1.000000e+00 : f32
    %466 = vector.broadcast %cst_90 : f32 to vector<4x16xf32>
    %467 = arith.addf %466, %465 : vector<4x16xf32>
    %468 = arith.divf %466, %467 : vector<4x16xf32>
    %469 = vector.extract_strided_slice %457 {offsets = [0, 16], sizes = [4, 16], strides = [1, 1]} : vector<4x48xf32> to vector<4x16xf32>
    %470 = vector.extract_strided_slice %460 {offsets = [0, 16], sizes = [4, 16], strides = [1, 1]} : vector<4x48xf32> to vector<4x16xf32>
    %471 = arith.addf %469, %470 : vector<4x16xf32>
    %472 = arith.negf %471 : vector<4x16xf32>
    %473 = math.exp %472 : vector<4x16xf32>
    %cst_91 = arith.constant 1.000000e+00 : f32
    %474 = vector.broadcast %cst_91 : f32 to vector<4x16xf32>
    %475 = arith.addf %474, %473 : vector<4x16xf32>
    %476 = arith.divf %474, %475 : vector<4x16xf32>
    %477 = vector.extract_strided_slice %457 {offsets = [0, 32], sizes = [4, 16], strides = [1, 1]} : vector<4x48xf32> to vector<4x16xf32>
    %478 = vector.extract_strided_slice %460 {offsets = [0, 32], sizes = [4, 16], strides = [1, 1]} : vector<4x48xf32> to vector<4x16xf32>
    %479 = arith.mulf %468, %478 : vector<4x16xf32>
    %480 = arith.addf %477, %479 : vector<4x16xf32>
    %481 = math.tanh %480 : vector<4x16xf32>
    %cst_92 = arith.constant 1.000000e+00 : f32
    %482 = vector.broadcast %cst_92 : f32 to vector<4x16xf32>
    %483 = arith.subf %482, %476 : vector<4x16xf32>
    %484 = arith.mulf %483, %481 : vector<4x16xf32>
    %485 = arith.mulf %476, %456 : vector<4x16xf32>
    %486 = arith.addf %484, %485 : vector<4x16xf32>
    %487 = vector.extract_strided_slice %64 {offsets = [4, 0], sizes = [4, 48], strides = [1, 1]} : vector<32x48xf32> to vector<4x48xf32>
    %cst_93 = arith.constant dense<0.000000e+00> : vector<4x48xf32>
    %488 = tpu.matmul %486, %15, %cst_93 {dimension_numbers = #tpu.dot_dimension_numbers<[1], [0], [0], [1], [0, 0, 1, 1], [], []>} : vector<4x16xf32>, vector<16x48xf32>, vector<4x48xf32> -> vector<4x48xf32>
    %489 = vector.broadcast %23 : vector<1x48xf32> to vector<4x48xf32>
    %490 = arith.addf %488, %489 : vector<4x48xf32>
    %491 = vector.extract_strided_slice %487 {offsets = [0, 0], sizes = [4, 16], strides = [1, 1]} : vector<4x48xf32> to vector<4x16xf32>
    %492 = vector.extract_strided_slice %490 {offsets = [0, 0], sizes = [4, 16], strides = [1, 1]} : vector<4x48xf32> to vector<4x16xf32>
    %493 = arith.addf %491, %492 : vector<4x16xf32>
    %494 = arith.negf %493 : vector<4x16xf32>
    %495 = math.exp %494 : vector<4x16xf32>
    %cst_94 = arith.constant 1.000000e+00 : f32
    %496 = vector.broadcast %cst_94 : f32 to vector<4x16xf32>
    %497 = arith.addf %496, %495 : vector<4x16xf32>
    %498 = arith.divf %496, %497 : vector<4x16xf32>
    %499 = vector.extract_strided_slice %487 {offsets = [0, 16], sizes = [4, 16], strides = [1, 1]} : vector<4x48xf32> to vector<4x16xf32>
    %500 = vector.extract_strided_slice %490 {offsets = [0, 16], sizes = [4, 16], strides = [1, 1]} : vector<4x48xf32> to vector<4x16xf32>
    %501 = arith.addf %499, %500 : vector<4x16xf32>
    %502 = arith.negf %501 : vector<4x16xf32>
    %503 = math.exp %502 : vector<4x16xf32>
    %cst_95 = arith.constant 1.000000e+00 : f32
    %504 = vector.broadcast %cst_95 : f32 to vector<4x16xf32>
    %505 = arith.addf %504, %503 : vector<4x16xf32>
    %506 = arith.divf %504, %505 : vector<4x16xf32>
    %507 = vector.extract_strided_slice %487 {offsets = [0, 32], sizes = [4, 16], strides = [1, 1]} : vector<4x48xf32> to vector<4x16xf32>
    %508 = vector.extract_strided_slice %490 {offsets = [0, 32], sizes = [4, 16], strides = [1, 1]} : vector<4x48xf32> to vector<4x16xf32>
    %509 = arith.mulf %498, %508 : vector<4x16xf32>
    %510 = arith.addf %507, %509 : vector<4x16xf32>
    %511 = math.tanh %510 : vector<4x16xf32>
    %cst_96 = arith.constant 1.000000e+00 : f32
    %512 = vector.broadcast %cst_96 : f32 to vector<4x16xf32>
    %513 = arith.subf %512, %506 : vector<4x16xf32>
    %514 = arith.mulf %513, %511 : vector<4x16xf32>
    %515 = arith.mulf %506, %486 : vector<4x16xf32>
    %516 = arith.addf %514, %515 : vector<4x16xf32>
    %517 = vector.extract_strided_slice %64 {offsets = [0, 0], sizes = [4, 48], strides = [1, 1]} : vector<32x48xf32> to vector<4x48xf32>
    %cst_97 = arith.constant dense<0.000000e+00> : vector<4x48xf32>
    %518 = tpu.matmul %516, %15, %cst_97 {dimension_numbers = #tpu.dot_dimension_numbers<[1], [0], [0], [1], [0, 0, 1, 1], [], []>} : vector<4x16xf32>, vector<16x48xf32>, vector<4x48xf32> -> vector<4x48xf32>
    %519 = vector.broadcast %23 : vector<1x48xf32> to vector<4x48xf32>
    %520 = arith.addf %518, %519 : vector<4x48xf32>
    %521 = vector.extract_strided_slice %517 {offsets = [0, 0], sizes = [4, 16], strides = [1, 1]} : vector<4x48xf32> to vector<4x16xf32>
    %522 = vector.extract_strided_slice %520 {offsets = [0, 0], sizes = [4, 16], strides = [1, 1]} : vector<4x48xf32> to vector<4x16xf32>
    %523 = arith.addf %521, %522 : vector<4x16xf32>
    %524 = arith.negf %523 : vector<4x16xf32>
    %525 = math.exp %524 : vector<4x16xf32>
    %cst_98 = arith.constant 1.000000e+00 : f32
    %526 = vector.broadcast %cst_98 : f32 to vector<4x16xf32>
    %527 = arith.addf %526, %525 : vector<4x16xf32>
    %528 = arith.divf %526, %527 : vector<4x16xf32>
    %529 = vector.extract_strided_slice %517 {offsets = [0, 16], sizes = [4, 16], strides = [1, 1]} : vector<4x48xf32> to vector<4x16xf32>
    %530 = vector.extract_strided_slice %520 {offsets = [0, 16], sizes = [4, 16], strides = [1, 1]} : vector<4x48xf32> to vector<4x16xf32>
    %531 = arith.addf %529, %530 : vector<4x16xf32>
    %532 = arith.negf %531 : vector<4x16xf32>
    %533 = math.exp %532 : vector<4x16xf32>
    %cst_99 = arith.constant 1.000000e+00 : f32
    %534 = vector.broadcast %cst_99 : f32 to vector<4x16xf32>
    %535 = arith.addf %534, %533 : vector<4x16xf32>
    %536 = arith.divf %534, %535 : vector<4x16xf32>
    %537 = vector.extract_strided_slice %517 {offsets = [0, 32], sizes = [4, 16], strides = [1, 1]} : vector<4x48xf32> to vector<4x16xf32>
    %538 = vector.extract_strided_slice %520 {offsets = [0, 32], sizes = [4, 16], strides = [1, 1]} : vector<4x48xf32> to vector<4x16xf32>
    %539 = arith.mulf %528, %538 : vector<4x16xf32>
    %540 = arith.addf %537, %539 : vector<4x16xf32>
    %541 = math.tanh %540 : vector<4x16xf32>
    %cst_100 = arith.constant 1.000000e+00 : f32
    %542 = vector.broadcast %cst_100 : f32 to vector<4x16xf32>
    %543 = arith.subf %542, %536 : vector<4x16xf32>
    %544 = arith.mulf %543, %541 : vector<4x16xf32>
    %545 = arith.mulf %536, %516 : vector<4x16xf32>
    %546 = arith.addf %544, %545 : vector<4x16xf32>
    %547 = tpu.concatenate %95, %546 in 1 : vector<4x16xf32>, vector<4x16xf32> -> vector<4x32xf32>
    %548 = tpu.concatenate %125, %516 in 1 : vector<4x16xf32>, vector<4x16xf32> -> vector<4x32xf32>
    %549 = tpu.concatenate %155, %486 in 1 : vector<4x16xf32>, vector<4x16xf32> -> vector<4x32xf32>
    %550 = tpu.concatenate %185, %456 in 1 : vector<4x16xf32>, vector<4x16xf32> -> vector<4x32xf32>
    %551 = tpu.concatenate %215, %426 in 1 : vector<4x16xf32>, vector<4x16xf32> -> vector<4x32xf32>
    %552 = tpu.concatenate %245, %396 in 1 : vector<4x16xf32>, vector<4x16xf32> -> vector<4x32xf32>
    %553 = tpu.concatenate %275, %366 in 1 : vector<4x16xf32>, vector<4x16xf32> -> vector<4x32xf32>
    %554 = tpu.concatenate %305, %336 in 1 : vector<4x16xf32>, vector<4x16xf32> -> vector<4x32xf32>
    %555 = vector.extract_strided_slice %547 {offsets = [0, 0], sizes = [1, 32], strides = [1, 1]} : vector<4x32xf32> to vector<1x32xf32>
    %556 = vector.extract_strided_slice %548 {offsets = [0, 0], sizes = [1, 32], strides = [1, 1]} : vector<4x32xf32> to vector<1x32xf32>
    %557 = vector.extract_strided_slice %549 {offsets = [0, 0], sizes = [1, 32], strides = [1, 1]} : vector<4x32xf32> to vector<1x32xf32>
    %558 = vector.extract_strided_slice %550 {offsets = [0, 0], sizes = [1, 32], strides = [1, 1]} : vector<4x32xf32> to vector<1x32xf32>
    %559 = vector.extract_strided_slice %551 {offsets = [0, 0], sizes = [1, 32], strides = [1, 1]} : vector<4x32xf32> to vector<1x32xf32>
    %560 = vector.extract_strided_slice %552 {offsets = [0, 0], sizes = [1, 32], strides = [1, 1]} : vector<4x32xf32> to vector<1x32xf32>
    %561 = vector.extract_strided_slice %553 {offsets = [0, 0], sizes = [1, 32], strides = [1, 1]} : vector<4x32xf32> to vector<1x32xf32>
    %562 = vector.extract_strided_slice %554 {offsets = [0, 0], sizes = [1, 32], strides = [1, 1]} : vector<4x32xf32> to vector<1x32xf32>
    %563 = tpu.concatenate %555, %556, %557, %558, %559, %560, %561, %562 in 0 : vector<1x32xf32>, vector<1x32xf32>, vector<1x32xf32>, vector<1x32xf32>, vector<1x32xf32>, vector<1x32xf32>, vector<1x32xf32>, vector<1x32xf32> -> vector<8x32xf32>
    %564 = vector.extract_strided_slice %547 {offsets = [1, 0], sizes = [1, 32], strides = [1, 1]} : vector<4x32xf32> to vector<1x32xf32>
    %565 = vector.extract_strided_slice %548 {offsets = [1, 0], sizes = [1, 32], strides = [1, 1]} : vector<4x32xf32> to vector<1x32xf32>
    %566 = vector.extract_strided_slice %549 {offsets = [1, 0], sizes = [1, 32], strides = [1, 1]} : vector<4x32xf32> to vector<1x32xf32>
    %567 = vector.extract_strided_slice %550 {offsets = [1, 0], sizes = [1, 32], strides = [1, 1]} : vector<4x32xf32> to vector<1x32xf32>
    %568 = vector.extract_strided_slice %551 {offsets = [1, 0], sizes = [1, 32], strides = [1, 1]} : vector<4x32xf32> to vector<1x32xf32>
    %569 = vector.extract_strided_slice %552 {offsets = [1, 0], sizes = [1, 32], strides = [1, 1]} : vector<4x32xf32> to vector<1x32xf32>
    %570 = vector.extract_strided_slice %553 {offsets = [1, 0], sizes = [1, 32], strides = [1, 1]} : vector<4x32xf32> to vector<1x32xf32>
    %571 = vector.extract_strided_slice %554 {offsets = [1, 0], sizes = [1, 32], strides = [1, 1]} : vector<4x32xf32> to vector<1x32xf32>
    %572 = tpu.concatenate %564, %565, %566, %567, %568, %569, %570, %571 in 0 : vector<1x32xf32>, vector<1x32xf32>, vector<1x32xf32>, vector<1x32xf32>, vector<1x32xf32>, vector<1x32xf32>, vector<1x32xf32>, vector<1x32xf32> -> vector<8x32xf32>
    %573 = vector.extract_strided_slice %547 {offsets = [2, 0], sizes = [1, 32], strides = [1, 1]} : vector<4x32xf32> to vector<1x32xf32>
    %574 = vector.extract_strided_slice %548 {offsets = [2, 0], sizes = [1, 32], strides = [1, 1]} : vector<4x32xf32> to vector<1x32xf32>
    %575 = vector.extract_strided_slice %549 {offsets = [2, 0], sizes = [1, 32], strides = [1, 1]} : vector<4x32xf32> to vector<1x32xf32>
    %576 = vector.extract_strided_slice %550 {offsets = [2, 0], sizes = [1, 32], strides = [1, 1]} : vector<4x32xf32> to vector<1x32xf32>
    %577 = vector.extract_strided_slice %551 {offsets = [2, 0], sizes = [1, 32], strides = [1, 1]} : vector<4x32xf32> to vector<1x32xf32>
    %578 = vector.extract_strided_slice %552 {offsets = [2, 0], sizes = [1, 32], strides = [1, 1]} : vector<4x32xf32> to vector<1x32xf32>
    %579 = vector.extract_strided_slice %553 {offsets = [2, 0], sizes = [1, 32], strides = [1, 1]} : vector<4x32xf32> to vector<1x32xf32>
    %580 = vector.extract_strided_slice %554 {offsets = [2, 0], sizes = [1, 32], strides = [1, 1]} : vector<4x32xf32> to vector<1x32xf32>
    %581 = tpu.concatenate %573, %574, %575, %576, %577, %578, %579, %580 in 0 : vector<1x32xf32>, vector<1x32xf32>, vector<1x32xf32>, vector<1x32xf32>, vector<1x32xf32>, vector<1x32xf32>, vector<1x32xf32>, vector<1x32xf32> -> vector<8x32xf32>
    %582 = vector.extract_strided_slice %547 {offsets = [3, 0], sizes = [1, 32], strides = [1, 1]} : vector<4x32xf32> to vector<1x32xf32>
    %583 = vector.extract_strided_slice %548 {offsets = [3, 0], sizes = [1, 32], strides = [1, 1]} : vector<4x32xf32> to vector<1x32xf32>
    %584 = vector.extract_strided_slice %549 {offsets = [3, 0], sizes = [1, 32], strides = [1, 1]} : vector<4x32xf32> to vector<1x32xf32>
    %585 = vector.extract_strided_slice %550 {offsets = [3, 0], sizes = [1, 32], strides = [1, 1]} : vector<4x32xf32> to vector<1x32xf32>
    %586 = vector.extract_strided_slice %551 {offsets = [3, 0], sizes = [1, 32], strides = [1, 1]} : vector<4x32xf32> to vector<1x32xf32>
    %587 = vector.extract_strided_slice %552 {offsets = [3, 0], sizes = [1, 32], strides = [1, 1]} : vector<4x32xf32> to vector<1x32xf32>
    %588 = vector.extract_strided_slice %553 {offsets = [3, 0], sizes = [1, 32], strides = [1, 1]} : vector<4x32xf32> to vector<1x32xf32>
    %589 = vector.extract_strided_slice %554 {offsets = [3, 0], sizes = [1, 32], strides = [1, 1]} : vector<4x32xf32> to vector<1x32xf32>
    %590 = tpu.concatenate %582, %583, %584, %585, %586, %587, %588, %589 in 0 : vector<1x32xf32>, vector<1x32xf32>, vector<1x32xf32>, vector<1x32xf32>, vector<1x32xf32>, vector<1x32xf32>, vector<1x32xf32>, vector<1x32xf32> -> vector<8x32xf32>
    %cst_101 = arith.constant dense<0.000000e+00> : vector<8x8xf32>
    %591 = tpu.matmul %563, %563, %cst_101 {dimension_numbers = #tpu.dot_dimension_numbers<[1], [1], [0], [0], [0, 0, 1, 0], [], []>} : vector<8x32xf32>, vector<8x32xf32>, vector<8x8xf32> -> vector<8x8xf32>
    %cst_102 = arith.constant 0.176776692 : f32
    %592 = vector.broadcast %cst_102 : f32 to vector<8x8xf32>
    %593 = arith.mulf %591, %592 : vector<8x8xf32>
    %cst_103 = arith.constant dense<0xFF800000> : vector<8xf32>
    %594 = vector.multi_reduction <maximumf>, %593, %cst_103 [1] : vector<8x8xf32> to vector<8xf32>
    %595 = vector.shape_cast %594 : vector<8xf32> to vector<8x1xf32>
    %596 = vector.broadcast %595 : vector<8x1xf32> to vector<8x8xf32>
    %597 = arith.subf %593, %596 : vector<8x8xf32>
    %598 = math.exp %597 : vector<8x8xf32>
    %cst_104 = arith.constant dense<0.000000e+00> : vector<8xf32>
    %599 = vector.multi_reduction <add>, %598, %cst_104 [1] : vector<8x8xf32> to vector<8xf32>
    %600 = vector.shape_cast %599 : vector<8xf32> to vector<8x1xf32>
    %601 = vector.broadcast %600 : vector<8x1xf32> to vector<8x8xf32>
    %602 = arith.divf %598, %601 : vector<8x8xf32>
    %cst_105 = arith.constant dense<0.000000e+00> : vector<8x32xf32>
    %603 = tpu.matmul %602, %563, %cst_105 {dimension_numbers = #tpu.dot_dimension_numbers<[1], [0], [0], [1], [0, 0, 1, 1], [], []>} : vector<8x8xf32>, vector<8x32xf32>, vector<8x32xf32> -> vector<8x32xf32>
    %cst_106 = arith.constant dense<0.000000e+00> : vector<8x8xf32>
    %604 = tpu.matmul %572, %572, %cst_106 {dimension_numbers = #tpu.dot_dimension_numbers<[1], [1], [0], [0], [0, 0, 1, 0], [], []>} : vector<8x32xf32>, vector<8x32xf32>, vector<8x8xf32> -> vector<8x8xf32>
    %cst_107 = arith.constant 0.176776692 : f32
    %605 = vector.broadcast %cst_107 : f32 to vector<8x8xf32>
    %606 = arith.mulf %604, %605 : vector<8x8xf32>
    %cst_108 = arith.constant dense<0xFF800000> : vector<8xf32>
    %607 = vector.multi_reduction <maximumf>, %606, %cst_108 [1] : vector<8x8xf32> to vector<8xf32>
    %608 = vector.shape_cast %607 : vector<8xf32> to vector<8x1xf32>
    %609 = vector.broadcast %608 : vector<8x1xf32> to vector<8x8xf32>
    %610 = arith.subf %606, %609 : vector<8x8xf32>
    %611 = math.exp %610 : vector<8x8xf32>
    %cst_109 = arith.constant dense<0.000000e+00> : vector<8xf32>
    %612 = vector.multi_reduction <add>, %611, %cst_109 [1] : vector<8x8xf32> to vector<8xf32>
    %613 = vector.shape_cast %612 : vector<8xf32> to vector<8x1xf32>
    %614 = vector.broadcast %613 : vector<8x1xf32> to vector<8x8xf32>
    %615 = arith.divf %611, %614 : vector<8x8xf32>
    %cst_110 = arith.constant dense<0.000000e+00> : vector<8x32xf32>
    %616 = tpu.matmul %615, %572, %cst_110 {dimension_numbers = #tpu.dot_dimension_numbers<[1], [0], [0], [1], [0, 0, 1, 1], [], []>} : vector<8x8xf32>, vector<8x32xf32>, vector<8x32xf32> -> vector<8x32xf32>
    %cst_111 = arith.constant dense<0.000000e+00> : vector<8x8xf32>
    %617 = tpu.matmul %581, %581, %cst_111 {dimension_numbers = #tpu.dot_dimension_numbers<[1], [1], [0], [0], [0, 0, 1, 0], [], []>} : vector<8x32xf32>, vector<8x32xf32>, vector<8x8xf32> -> vector<8x8xf32>
    %cst_112 = arith.constant 0.176776692 : f32
    %618 = vector.broadcast %cst_112 : f32 to vector<8x8xf32>
    %619 = arith.mulf %617, %618 : vector<8x8xf32>
    %cst_113 = arith.constant dense<0xFF800000> : vector<8xf32>
    %620 = vector.multi_reduction <maximumf>, %619, %cst_113 [1] : vector<8x8xf32> to vector<8xf32>
    %621 = vector.shape_cast %620 : vector<8xf32> to vector<8x1xf32>
    %622 = vector.broadcast %621 : vector<8x1xf32> to vector<8x8xf32>
    %623 = arith.subf %619, %622 : vector<8x8xf32>
    %624 = math.exp %623 : vector<8x8xf32>
    %cst_114 = arith.constant dense<0.000000e+00> : vector<8xf32>
    %625 = vector.multi_reduction <add>, %624, %cst_114 [1] : vector<8x8xf32> to vector<8xf32>
    %626 = vector.shape_cast %625 : vector<8xf32> to vector<8x1xf32>
    %627 = vector.broadcast %626 : vector<8x1xf32> to vector<8x8xf32>
    %628 = arith.divf %624, %627 : vector<8x8xf32>
    %cst_115 = arith.constant dense<0.000000e+00> : vector<8x32xf32>
    %629 = tpu.matmul %628, %581, %cst_115 {dimension_numbers = #tpu.dot_dimension_numbers<[1], [0], [0], [1], [0, 0, 1, 1], [], []>} : vector<8x8xf32>, vector<8x32xf32>, vector<8x32xf32> -> vector<8x32xf32>
    %cst_116 = arith.constant dense<0.000000e+00> : vector<8x8xf32>
    %630 = tpu.matmul %590, %590, %cst_116 {dimension_numbers = #tpu.dot_dimension_numbers<[1], [1], [0], [0], [0, 0, 1, 0], [], []>} : vector<8x32xf32>, vector<8x32xf32>, vector<8x8xf32> -> vector<8x8xf32>
    %cst_117 = arith.constant 0.176776692 : f32
    %631 = vector.broadcast %cst_117 : f32 to vector<8x8xf32>
    %632 = arith.mulf %630, %631 : vector<8x8xf32>
    %cst_118 = arith.constant dense<0xFF800000> : vector<8xf32>
    %633 = vector.multi_reduction <maximumf>, %632, %cst_118 [1] : vector<8x8xf32> to vector<8xf32>
    %634 = vector.shape_cast %633 : vector<8xf32> to vector<8x1xf32>
    %635 = vector.broadcast %634 : vector<8x1xf32> to vector<8x8xf32>
    %636 = arith.subf %632, %635 : vector<8x8xf32>
    %637 = math.exp %636 : vector<8x8xf32>
    %cst_119 = arith.constant dense<0.000000e+00> : vector<8xf32>
    %638 = vector.multi_reduction <add>, %637, %cst_119 [1] : vector<8x8xf32> to vector<8xf32>
    %639 = vector.shape_cast %638 : vector<8xf32> to vector<8x1xf32>
    %640 = vector.broadcast %639 : vector<8x1xf32> to vector<8x8xf32>
    %641 = arith.divf %637, %640 : vector<8x8xf32>
    %cst_120 = arith.constant dense<0.000000e+00> : vector<8x32xf32>
    %642 = tpu.matmul %641, %590, %cst_120 {dimension_numbers = #tpu.dot_dimension_numbers<[1], [0], [0], [1], [0, 0, 1, 1], [], []>} : vector<8x8xf32>, vector<8x32xf32>, vector<8x32xf32> -> vector<8x32xf32>
    %c0_121 = arith.constant 0 : index
    %c0_122 = arith.constant 0 : index
    %643 = vector.load %arg6[%c0_121, %c0_122] : memref<32x32xf32, #tpu.memory_space<vmem>>, vector<32x32xf32>
    %cst_123 = arith.constant dense<0.000000e+00> : vector<8x32xf32>
    %644 = tpu.matmul %603, %643, %cst_123 {dimension_numbers = #tpu.dot_dimension_numbers<[1], [0], [0], [1], [0, 0, 1, 1], [], []>} : vector<8x32xf32>, vector<32x32xf32>, vector<8x32xf32> -> vector<8x32xf32>
    %cst_124 = arith.constant dense<0.000000e+00> : vector<8x8xf32>
    %645 = tpu.matmul %644, %629, %cst_124 {dimension_numbers = #tpu.dot_dimension_numbers<[1], [1], [0], [0], [0, 0, 1, 0], [], []>} : vector<8x32xf32>, vector<8x32xf32>, vector<8x8xf32> -> vector<8x8xf32>
    %cst_125 = arith.constant dense<0xFF800000> : vector<8xf32>
    %646 = vector.multi_reduction <maximumf>, %645, %cst_125 [1] : vector<8x8xf32> to vector<8xf32>
    %647 = vector.shape_cast %646 : vector<8xf32> to vector<8x1xf32>
    %648 = vector.broadcast %647 : vector<8x1xf32> to vector<8x8xf32>
    %649 = arith.subf %645, %648 : vector<8x8xf32>
    %650 = math.exp %649 : vector<8x8xf32>
    %cst_126 = arith.constant dense<0.000000e+00> : vector<8xf32>
    %651 = vector.multi_reduction <add>, %650, %cst_126 [1] : vector<8x8xf32> to vector<8xf32>
    %652 = vector.shape_cast %651 : vector<8xf32> to vector<8x1xf32>
    %653 = vector.broadcast %652 : vector<8x1xf32> to vector<8x8xf32>
    %654 = arith.divf %650, %653 : vector<8x8xf32>
    %cst_127 = arith.constant dense<0.000000e+00> : vector<8x32xf32>
    %655 = tpu.matmul %654, %5, %cst_127 {dimension_numbers = #tpu.dot_dimension_numbers<[1], [0], [0], [1], [0, 0, 1, 1], [], []>} : vector<8x8xf32>, vector<8x32xf32>, vector<8x32xf32> -> vector<8x32xf32>
    %cst_128 = arith.constant dense<0.000000e+00> : vector<8x32xf32>
    %656 = tpu.matmul %616, %643, %cst_128 {dimension_numbers = #tpu.dot_dimension_numbers<[1], [0], [0], [1], [0, 0, 1, 1], [], []>} : vector<8x32xf32>, vector<32x32xf32>, vector<8x32xf32> -> vector<8x32xf32>
    %cst_129 = arith.constant dense<0.000000e+00> : vector<8x8xf32>
    %657 = tpu.matmul %656, %642, %cst_129 {dimension_numbers = #tpu.dot_dimension_numbers<[1], [1], [0], [0], [0, 0, 1, 0], [], []>} : vector<8x32xf32>, vector<8x32xf32>, vector<8x8xf32> -> vector<8x8xf32>
    %cst_130 = arith.constant dense<0xFF800000> : vector<8xf32>
    %658 = vector.multi_reduction <maximumf>, %657, %cst_130 [1] : vector<8x8xf32> to vector<8xf32>
    %659 = vector.shape_cast %658 : vector<8xf32> to vector<8x1xf32>
    %660 = vector.broadcast %659 : vector<8x1xf32> to vector<8x8xf32>
    %661 = arith.subf %657, %660 : vector<8x8xf32>
    %662 = math.exp %661 : vector<8x8xf32>
    %cst_131 = arith.constant dense<0.000000e+00> : vector<8xf32>
    %663 = vector.multi_reduction <add>, %662, %cst_131 [1] : vector<8x8xf32> to vector<8xf32>
    %664 = vector.shape_cast %663 : vector<8xf32> to vector<8x1xf32>
    %665 = vector.broadcast %664 : vector<8x1xf32> to vector<8x8xf32>
    %666 = arith.divf %662, %665 : vector<8x8xf32>
    %cst_132 = arith.constant dense<0.000000e+00> : vector<8x32xf32>
    %667 = tpu.matmul %666, %7, %cst_132 {dimension_numbers = #tpu.dot_dimension_numbers<[1], [0], [0], [1], [0, 0, 1, 1], [], []>} : vector<8x8xf32>, vector<8x32xf32>, vector<8x32xf32> -> vector<8x32xf32>
    %cst_133 = arith.constant dense<0.000000e+00> : vector<8x32xf32>
    %668 = tpu.matmul %629, %643, %cst_133 {dimension_numbers = #tpu.dot_dimension_numbers<[1], [0], [0], [1], [0, 0, 1, 1], [], []>} : vector<8x32xf32>, vector<32x32xf32>, vector<8x32xf32> -> vector<8x32xf32>
    %cst_134 = arith.constant dense<0.000000e+00> : vector<8x8xf32>
    %669 = tpu.matmul %668, %603, %cst_134 {dimension_numbers = #tpu.dot_dimension_numbers<[1], [1], [0], [0], [0, 0, 1, 0], [], []>} : vector<8x32xf32>, vector<8x32xf32>, vector<8x8xf32> -> vector<8x8xf32>
    %cst_135 = arith.constant dense<0xFF800000> : vector<8xf32>
    %670 = vector.multi_reduction <maximumf>, %669, %cst_135 [1] : vector<8x8xf32> to vector<8xf32>
    %671 = vector.shape_cast %670 : vector<8xf32> to vector<8x1xf32>
    %672 = vector.broadcast %671 : vector<8x1xf32> to vector<8x8xf32>
    %673 = arith.subf %669, %672 : vector<8x8xf32>
    %674 = math.exp %673 : vector<8x8xf32>
    %cst_136 = arith.constant dense<0.000000e+00> : vector<8xf32>
    %675 = vector.multi_reduction <add>, %674, %cst_136 [1] : vector<8x8xf32> to vector<8xf32>
    %676 = vector.shape_cast %675 : vector<8xf32> to vector<8x1xf32>
    %677 = vector.broadcast %676 : vector<8x1xf32> to vector<8x8xf32>
    %678 = arith.divf %674, %677 : vector<8x8xf32>
    %cst_137 = arith.constant dense<0.000000e+00> : vector<8x32xf32>
    %679 = tpu.matmul %678, %1, %cst_137 {dimension_numbers = #tpu.dot_dimension_numbers<[1], [0], [0], [1], [0, 0, 1, 1], [], []>} : vector<8x8xf32>, vector<8x32xf32>, vector<8x32xf32> -> vector<8x32xf32>
    %cst_138 = arith.constant dense<0.000000e+00> : vector<8x32xf32>
    %680 = tpu.matmul %642, %643, %cst_138 {dimension_numbers = #tpu.dot_dimension_numbers<[1], [0], [0], [1], [0, 0, 1, 1], [], []>} : vector<8x32xf32>, vector<32x32xf32>, vector<8x32xf32> -> vector<8x32xf32>
    %cst_139 = arith.constant dense<0.000000e+00> : vector<8x8xf32>
    %681 = tpu.matmul %680, %616, %cst_139 {dimension_numbers = #tpu.dot_dimension_numbers<[1], [1], [0], [0], [0, 0, 1, 0], [], []>} : vector<8x32xf32>, vector<8x32xf32>, vector<8x8xf32> -> vector<8x8xf32>
    %cst_140 = arith.constant dense<0xFF800000> : vector<8xf32>
    %682 = vector.multi_reduction <maximumf>, %681, %cst_140 [1] : vector<8x8xf32> to vector<8xf32>
    %683 = vector.shape_cast %682 : vector<8xf32> to vector<8x1xf32>
    %684 = vector.broadcast %683 : vector<8x1xf32> to vector<8x8xf32>
    %685 = arith.subf %681, %684 : vector<8x8xf32>
    %686 = math.exp %685 : vector<8x8xf32>
    %cst_141 = arith.constant dense<0.000000e+00> : vector<8xf32>
    %687 = vector.multi_reduction <add>, %686, %cst_141 [1] : vector<8x8xf32> to vector<8xf32>
    %688 = vector.shape_cast %687 : vector<8xf32> to vector<8x1xf32>
    %689 = vector.broadcast %688 : vector<8x1xf32> to vector<8x8xf32>
    %690 = arith.divf %686, %689 : vector<8x8xf32>
    %cst_142 = arith.constant dense<0.000000e+00> : vector<8x32xf32>
    %691 = tpu.matmul %690, %3, %cst_142 {dimension_numbers = #tpu.dot_dimension_numbers<[1], [0], [0], [1], [0, 0, 1, 1], [], []>} : vector<8x8xf32>, vector<8x32xf32>, vector<8x32xf32> -> vector<8x32xf32>
    %692 = tpu.concatenate %603, %616, %629, %642 in 0 : vector<8x32xf32>, vector<8x32xf32>, vector<8x32xf32>, vector<8x32xf32> -> vector<32x32xf32>
    %693 = tpu.concatenate %655, %667, %679, %691 in 0 : vector<8x32xf32>, vector<8x32xf32>, vector<8x32xf32>, vector<8x32xf32> -> vector<32x32xf32>
    %694 = tpu.concatenate %1, %3, %5, %7 in 0 : vector<8x32xf32>, vector<8x32xf32>, vector<8x32xf32>, vector<8x32xf32> -> vector<32x32xf32>
    %695 = arith.subf %692, %693 : vector<32x32xf32>
    %696 = arith.mulf %692, %693 : vector<32x32xf32>
    %697 = tpu.concatenate %692, %693, %695, %696 in 1 : vector<32x32xf32>, vector<32x32xf32>, vector<32x32xf32>, vector<32x32xf32> -> vector<32x128xf32>
    %c0_143 = arith.constant 0 : index
    %c0_144 = arith.constant 0 : index
    %698 = vector.load %arg7[%c0_143, %c0_144] : memref<128x32xf32, #tpu.memory_space<vmem>>, vector<128x32xf32>
    %cst_145 = arith.constant dense<0.000000e+00> : vector<32x32xf32>
    %699 = tpu.matmul %697, %698, %cst_145 {dimension_numbers = #tpu.dot_dimension_numbers<[1], [0], [0], [1], [0, 0, 1, 1], [], []>} : vector<32x128xf32>, vector<128x32xf32>, vector<32x32xf32> -> vector<32x32xf32>
    %c0_146 = arith.constant 0 : index
    %c0_147 = arith.constant 0 : index
    %700 = vector.load %arg8[%c0_146, %c0_147] : memref<1x32xf32, #tpu.memory_space<vmem>>, vector<1x32xf32>
    %701 = vector.broadcast %700 : vector<1x32xf32> to vector<32x32xf32>
    %702 = arith.addf %699, %701 : vector<32x32xf32>
    %cst_148 = arith.constant 0.000000e+00 : f32
    %703 = vector.broadcast %cst_148 : f32 to vector<32x32xf32>
    %704 = arith.maximumf %702, %703 : vector<32x32xf32>
    %705 = tpu.concatenate %694, %704 in 1 : vector<32x32xf32>, vector<32x32xf32> -> vector<32x64xf32>
    %c0_149 = arith.constant 0 : index
    %c0_150 = arith.constant 0 : index
    %706 = vector.load %arg9[%c0_149, %c0_150] : memref<64x32xf32, #tpu.memory_space<vmem>>, vector<64x32xf32>
    %cst_151 = arith.constant dense<0.000000e+00> : vector<32x32xf32>
    %707 = tpu.matmul %705, %706, %cst_151 {dimension_numbers = #tpu.dot_dimension_numbers<[1], [0], [0], [1], [0, 0, 1, 1], [], []>} : vector<32x64xf32>, vector<64x32xf32>, vector<32x32xf32> -> vector<32x32xf32>
    %c0_152 = arith.constant 0 : index
    %c0_153 = arith.constant 0 : index
    %708 = vector.load %arg10[%c0_152, %c0_153] : memref<1x32xf32, #tpu.memory_space<vmem>>, vector<1x32xf32>
    %709 = vector.broadcast %708 : vector<1x32xf32> to vector<32x32xf32>
    %710 = arith.addf %707, %709 : vector<32x32xf32>
    %711 = arith.negf %710 : vector<32x32xf32>
    %712 = math.exp %711 : vector<32x32xf32>
    %cst_154 = arith.constant 1.000000e+00 : f32
    %713 = vector.broadcast %cst_154 : f32 to vector<32x32xf32>
    %714 = arith.addf %713, %712 : vector<32x32xf32>
    %715 = arith.divf %713, %714 : vector<32x32xf32>
    %716 = arith.mulf %715, %704 : vector<32x32xf32>
    %cst_155 = arith.constant 1.000000e+00 : f32
    %717 = vector.broadcast %cst_155 : f32 to vector<32x32xf32>
    %718 = arith.subf %717, %715 : vector<32x32xf32>
    %719 = arith.mulf %718, %694 : vector<32x32xf32>
    %720 = arith.addf %716, %719 : vector<32x32xf32>
    %c0_156 = arith.constant 0 : index
    %c0_157 = arith.constant 0 : index
    %721 = vector.load %arg11[%c0_156, %c0_157] : memref<1x32xf32, #tpu.memory_space<vmem>>, vector<1x32xf32>
    %722 = vector.extract_strided_slice %720 {offsets = [0, 0], sizes = [8, 32], strides = [1, 1]} : vector<32x32xf32> to vector<8x32xf32>
    %cst_158 = arith.constant dense<0.000000e+00> : vector<1x8xf32>
    %723 = tpu.matmul %721, %722, %cst_158 {dimension_numbers = #tpu.dot_dimension_numbers<[1], [1], [0], [0], [0, 0, 1, 0], [], []>} : vector<1x32xf32>, vector<8x32xf32>, vector<1x8xf32> -> vector<1x8xf32>
    %cst_159 = arith.constant dense<0xFF800000> : vector<1xf32>
    %724 = vector.multi_reduction <maximumf>, %723, %cst_159 [1] : vector<1x8xf32> to vector<1xf32>
    %725 = vector.shape_cast %724 : vector<1xf32> to vector<1x1xf32>
    %726 = vector.broadcast %725 : vector<1x1xf32> to vector<1x8xf32>
    %727 = arith.subf %723, %726 : vector<1x8xf32>
    %728 = math.exp %727 : vector<1x8xf32>
    %cst_160 = arith.constant dense<0.000000e+00> : vector<1xf32>
    %729 = vector.multi_reduction <add>, %728, %cst_160 [1] : vector<1x8xf32> to vector<1xf32>
    %730 = vector.shape_cast %729 : vector<1xf32> to vector<1x1xf32>
    %731 = vector.broadcast %730 : vector<1x1xf32> to vector<1x8xf32>
    %732 = arith.divf %728, %731 : vector<1x8xf32>
    %cst_161 = arith.constant dense<0.000000e+00> : vector<1x32xf32>
    %733 = tpu.matmul %732, %722, %cst_161 {dimension_numbers = #tpu.dot_dimension_numbers<[1], [0], [0], [1], [0, 0, 1, 1], [], []>} : vector<1x8xf32>, vector<8x32xf32>, vector<1x32xf32> -> vector<1x32xf32>
    %734 = vector.extract_strided_slice %720 {offsets = [8, 0], sizes = [8, 32], strides = [1, 1]} : vector<32x32xf32> to vector<8x32xf32>
    %cst_162 = arith.constant dense<0.000000e+00> : vector<1x8xf32>
    %735 = tpu.matmul %721, %734, %cst_162 {dimension_numbers = #tpu.dot_dimension_numbers<[1], [1], [0], [0], [0, 0, 1, 0], [], []>} : vector<1x32xf32>, vector<8x32xf32>, vector<1x8xf32> -> vector<1x8xf32>
    %cst_163 = arith.constant dense<0xFF800000> : vector<1xf32>
    %736 = vector.multi_reduction <maximumf>, %735, %cst_163 [1] : vector<1x8xf32> to vector<1xf32>
    %737 = vector.shape_cast %736 : vector<1xf32> to vector<1x1xf32>
    %738 = vector.broadcast %737 : vector<1x1xf32> to vector<1x8xf32>
    %739 = arith.subf %735, %738 : vector<1x8xf32>
    %740 = math.exp %739 : vector<1x8xf32>
    %cst_164 = arith.constant dense<0.000000e+00> : vector<1xf32>
    %741 = vector.multi_reduction <add>, %740, %cst_164 [1] : vector<1x8xf32> to vector<1xf32>
    %742 = vector.shape_cast %741 : vector<1xf32> to vector<1x1xf32>
    %743 = vector.broadcast %742 : vector<1x1xf32> to vector<1x8xf32>
    %744 = arith.divf %740, %743 : vector<1x8xf32>
    %cst_165 = arith.constant dense<0.000000e+00> : vector<1x32xf32>
    %745 = tpu.matmul %744, %734, %cst_165 {dimension_numbers = #tpu.dot_dimension_numbers<[1], [0], [0], [1], [0, 0, 1, 1], [], []>} : vector<1x8xf32>, vector<8x32xf32>, vector<1x32xf32> -> vector<1x32xf32>
    %746 = vector.extract_strided_slice %720 {offsets = [16, 0], sizes = [8, 32], strides = [1, 1]} : vector<32x32xf32> to vector<8x32xf32>
    %cst_166 = arith.constant dense<0.000000e+00> : vector<1x8xf32>
    %747 = tpu.matmul %721, %746, %cst_166 {dimension_numbers = #tpu.dot_dimension_numbers<[1], [1], [0], [0], [0, 0, 1, 0], [], []>} : vector<1x32xf32>, vector<8x32xf32>, vector<1x8xf32> -> vector<1x8xf32>
    %cst_167 = arith.constant dense<0xFF800000> : vector<1xf32>
    %748 = vector.multi_reduction <maximumf>, %747, %cst_167 [1] : vector<1x8xf32> to vector<1xf32>
    %749 = vector.shape_cast %748 : vector<1xf32> to vector<1x1xf32>
    %750 = vector.broadcast %749 : vector<1x1xf32> to vector<1x8xf32>
    %751 = arith.subf %747, %750 : vector<1x8xf32>
    %752 = math.exp %751 : vector<1x8xf32>
    %cst_168 = arith.constant dense<0.000000e+00> : vector<1xf32>
    %753 = vector.multi_reduction <add>, %752, %cst_168 [1] : vector<1x8xf32> to vector<1xf32>
    %754 = vector.shape_cast %753 : vector<1xf32> to vector<1x1xf32>
    %755 = vector.broadcast %754 : vector<1x1xf32> to vector<1x8xf32>
    %756 = arith.divf %752, %755 : vector<1x8xf32>
    %cst_169 = arith.constant dense<0.000000e+00> : vector<1x32xf32>
    %757 = tpu.matmul %756, %746, %cst_169 {dimension_numbers = #tpu.dot_dimension_numbers<[1], [0], [0], [1], [0, 0, 1, 1], [], []>} : vector<1x8xf32>, vector<8x32xf32>, vector<1x32xf32> -> vector<1x32xf32>
    %758 = vector.extract_strided_slice %720 {offsets = [24, 0], sizes = [8, 32], strides = [1, 1]} : vector<32x32xf32> to vector<8x32xf32>
    %cst_170 = arith.constant dense<0.000000e+00> : vector<1x8xf32>
    %759 = tpu.matmul %721, %758, %cst_170 {dimension_numbers = #tpu.dot_dimension_numbers<[1], [1], [0], [0], [0, 0, 1, 0], [], []>} : vector<1x32xf32>, vector<8x32xf32>, vector<1x8xf32> -> vector<1x8xf32>
    %cst_171 = arith.constant dense<0xFF800000> : vector<1xf32>
    %760 = vector.multi_reduction <maximumf>, %759, %cst_171 [1] : vector<1x8xf32> to vector<1xf32>
    %761 = vector.shape_cast %760 : vector<1xf32> to vector<1x1xf32>
    %762 = vector.broadcast %761 : vector<1x1xf32> to vector<1x8xf32>
    %763 = arith.subf %759, %762 : vector<1x8xf32>
    %764 = math.exp %763 : vector<1x8xf32>
    %cst_172 = arith.constant dense<0.000000e+00> : vector<1xf32>
    %765 = vector.multi_reduction <add>, %764, %cst_172 [1] : vector<1x8xf32> to vector<1xf32>
    %766 = vector.shape_cast %765 : vector<1xf32> to vector<1x1xf32>
    %767 = vector.broadcast %766 : vector<1x1xf32> to vector<1x8xf32>
    %768 = arith.divf %764, %767 : vector<1x8xf32>
    %cst_173 = arith.constant dense<0.000000e+00> : vector<1x32xf32>
    %769 = tpu.matmul %768, %758, %cst_173 {dimension_numbers = #tpu.dot_dimension_numbers<[1], [0], [0], [1], [0, 0, 1, 1], [], []>} : vector<1x8xf32>, vector<8x32xf32>, vector<1x32xf32> -> vector<1x32xf32>
    %770 = tpu.concatenate %733, %745 in 0 : vector<1x32xf32>, vector<1x32xf32> -> vector<2x32xf32>
    %771 = tpu.concatenate %757, %769 in 0 : vector<1x32xf32>, vector<1x32xf32> -> vector<2x32xf32>
    %772 = arith.subf %770, %771 : vector<2x32xf32>
    %773 = arith.mulf %770, %771 : vector<2x32xf32>
    %774 = tpu.concatenate %770, %771, %772, %773 in 1 : vector<2x32xf32>, vector<2x32xf32>, vector<2x32xf32>, vector<2x32xf32> -> vector<2x128xf32>
    %c0_174 = arith.constant 0 : index
    %c0_175 = arith.constant 0 : index
    %775 = vector.load %arg12[%c0_174, %c0_175] : memref<128x32xf32, #tpu.memory_space<vmem>>, vector<128x32xf32>
    %cst_176 = arith.constant dense<0.000000e+00> : vector<2x32xf32>
    %776 = tpu.matmul %774, %775, %cst_176 {dimension_numbers = #tpu.dot_dimension_numbers<[1], [0], [0], [1], [0, 0, 1, 1], [], []>} : vector<2x128xf32>, vector<128x32xf32>, vector<2x32xf32> -> vector<2x32xf32>
    %c0_177 = arith.constant 0 : index
    %c0_178 = arith.constant 0 : index
    %777 = vector.load %arg13[%c0_177, %c0_178] : memref<1x32xf32, #tpu.memory_space<vmem>>, vector<1x32xf32>
    %778 = vector.broadcast %777 : vector<1x32xf32> to vector<2x32xf32>
    %779 = arith.addf %776, %778 : vector<2x32xf32>
    %cst_179 = arith.constant 0.000000e+00 : f32
    %780 = vector.broadcast %cst_179 : f32 to vector<2x32xf32>
    %781 = arith.maximumf %779, %780 : vector<2x32xf32>
    %c0_180 = arith.constant 0 : index
    %c0_181 = arith.constant 0 : index
    %782 = vector.load %arg14[%c0_180, %c0_181] : memref<32x2xf32, #tpu.memory_space<vmem>>, vector<32x2xf32>
    %cst_182 = arith.constant dense<0.000000e+00> : vector<2x2xf32>
    %783 = tpu.matmul %781, %782, %cst_182 {dimension_numbers = #tpu.dot_dimension_numbers<[1], [0], [0], [1], [0, 0, 1, 1], [], []>} : vector<2x32xf32>, vector<32x2xf32>, vector<2x2xf32> -> vector<2x2xf32>
    %c0_183 = arith.constant 0 : index
    %c0_184 = arith.constant 0 : index
    %784 = vector.load %arg15[%c0_183, %c0_184] : memref<1x2xf32, #tpu.memory_space<vmem>>, vector<1x2xf32>
    %785 = vector.broadcast %784 : vector<1x2xf32> to vector<2x2xf32>
    %786 = arith.addf %783, %785 : vector<2x2xf32>
    %cst_185 = arith.constant dense<0xFF800000> : vector<2xf32>
    %787 = vector.multi_reduction <maximumf>, %786, %cst_185 [1] : vector<2x2xf32> to vector<2xf32>
    %788 = vector.shape_cast %787 : vector<2xf32> to vector<2x1xf32>
    %789 = vector.broadcast %788 : vector<2x1xf32> to vector<2x2xf32>
    %790 = arith.subf %786, %789 : vector<2x2xf32>
    %791 = math.exp %790 : vector<2x2xf32>
    %cst_186 = arith.constant dense<0.000000e+00> : vector<2xf32>
    %792 = vector.multi_reduction <add>, %791, %cst_186 [1] : vector<2x2xf32> to vector<2xf32>
    %793 = vector.shape_cast %792 : vector<2xf32> to vector<2x1xf32>
    %794 = math.log %793 : vector<2x1xf32>
    %795 = vector.broadcast %788 : vector<2x1xf32> to vector<2x2xf32>
    %796 = arith.subf %786, %795 : vector<2x2xf32>
    %797 = vector.broadcast %794 : vector<2x1xf32> to vector<2x2xf32>
    %798 = arith.subf %796, %797 : vector<2x2xf32>
    %c0_187 = arith.constant 0 : index
    %c0_188 = arith.constant 0 : index
    %799 = vector.load %arg16[%c0_187, %c0_188] : memref<2x2xf32, #tpu.memory_space<vmem>>, vector<2x2xf32>
    tpu.vector_store %arg16[%c0_187, %c0_188], %798 {strides = array<i32>} : memref<2x2xf32, #tpu.memory_space<vmem>>, vector<2x2xf32>,
    return
  }
}

</mosaic_0001>

<llo_original>
// kernel: mcan_forward.1
$region0: #{mcan_forward.1}
  #allocation0 [shape = 'u32[]', space=smem, size = 0x4, offset = 0x4, fixed_abs, tag = 'smem constant byte address 0x4 - core index']
  #allocation1 [shape = 'u32[72,128]{1,0:T(1,128)}', space=vmem, size = 0x9000, scoped, tag = 'internal scratch']
  %s0 = inlined_call_operand.vmem [shape: f32[2,8,32], index: 0, kind: input, shape index: {}]
  %s1 = inlined_call_operand.vmem [shape: f32[2,8,32], index: 1, kind: input, shape index: {}]
  %s2 = inlined_call_operand.vmem [shape: f32[2,32,48], index: 2, kind: input, shape index: {}]
  %s3 = inlined_call_operand.vmem [shape: f32[2,16,48], index: 3, kind: input, shape index: {}]
  %s4 = inlined_call_operand.vmem [shape: f32[2,1,48], index: 4, kind: input, shape index: {}]
  %s5 = inlined_call_operand.vmem [shape: f32[2,1,48], index: 5, kind: input, shape index: {}]
  %s6 = inlined_call_operand.vmem [shape: f32[32,32], index: 6, kind: input, shape index: {}]
  %s7 = inlined_call_operand.vmem [shape: f32[128,32], index: 7, kind: input, shape index: {}]
  %s8 = inlined_call_operand.vmem [shape: f32[1,32], index: 8, kind: input, shape index: {}]
  %s9 = inlined_call_operand.vmem [shape: f32[64,32], index: 9, kind: input, shape index: {}]
  %s10 = inlined_call_operand.vmem [shape: f32[1,32], index: 10, kind: input, shape index: {}]
  %s11 = inlined_call_operand.vmem [shape: f32[1,32], index: 11, kind: input, shape index: {}]
  %s12 = inlined_call_operand.vmem [shape: f32[128,32], index: 12, kind: input, shape index: {}]
  %s13 = inlined_call_operand.vmem [shape: f32[1,32], index: 13, kind: input, shape index: {}]
  %s14 = inlined_call_operand.vmem [shape: f32[32,2], index: 14, kind: input, shape index: {}]
  %s15 = inlined_call_operand.vmem [shape: f32[1,2], index: 15, kind: input, shape index: {}]
  %s16 = inlined_call_operand.hbm [shape: f32[2,2], index: 16, kind: output, shape index: {}]
  %s17 = sld [smem:[#allocation0]]
  $region74: #{mcan_forward.1} parent=0
    _
  %s19 = ssub.s32 1, %s17
  %s20 = scalar_select 0, %s19, %s17
  $region1: #{mcan_forward.1} parent=0
    #allocation2 [shape = 'u8[1024]{0}', space=vmem, size = 0x400, scoped, tag = 'output window, operand 0, single buffered']
    #allocation3 [shape = 's32[1]{0}', space=sflag, size = 0x4, scoped, tag = 'scoped memory for mcan_forward.1']
    %21 = vsyncpa [#allocation3], 0
    // Predicated region
    $region2: #{mcan_forward.1} parent=1 // pred_check
      _
    $region3: #{mcan_forward.1} parent=1 // pred_check_branch
      %23 = sbr.rel (0) target = $region5
    $region4: #{mcan_forward.1} parent=1 // pred_region
      _
    $region5: #{mcan_forward.1} parent=1 // pred_fallthru
      _
    // Predicated region
    $region6: #{mcan_forward.1} parent=1 // pred_check
      _
    $region7: #{mcan_forward.1} parent=1 // pred_check_branch
      %25 = sbr.rel (0) target = $region9
    $region8: #{mcan_forward.1} parent=1 // pred_region
      _
    $region9: #{mcan_forward.1} parent=1 // pred_fallthru
      _
    // Predicated region
    $region10: #{mcan_forward.1} parent=1 // pred_check
      _
    $region11: #{mcan_forward.1} parent=1 // pred_check_branch
      %27 = sbr.rel (0) target = $region13
    $region12: #{mcan_forward.1} parent=1 // pred_region
      _
    $region13: #{mcan_forward.1} parent=1 // pred_fallthru
      _
    // Predicated region
    $region14: #{mcan_forward.1} parent=1 // pred_check
      _
    $region15: #{mcan_forward.1} parent=1 // pred_check_branch
      %29 = sbr.rel (0) target = $region17
    $region16: #{mcan_forward.1} parent=1 // pred_region
      _
    $region17: #{mcan_forward.1} parent=1 // pred_fallthru
      _
    // Predicated region
    $region18: #{mcan_forward.1} parent=1 // pred_check
      _
    $region19: #{mcan_forward.1} parent=1 // pred_check_branch
      %31 = sbr.rel (0) target = $region21
    $region20: #{mcan_forward.1} parent=1 // pred_region
      _
    $region21: #{mcan_forward.1} parent=1 // pred_fallthru
      _
    // Predicated region
    $region22: #{mcan_forward.1} parent=1 // pred_check
      _
    $region23: #{mcan_forward.1} parent=1 // pred_check_branch
      %33 = sbr.rel (0) target = $region25
    $region24: #{mcan_forward.1} parent=1 // pred_region
      _
    $region25: #{mcan_forward.1} parent=1 // pred_fallthru
      _
    // Predicated region
    $region26: #{mcan_forward.1} parent=1 // pred_check
      _
    $region27: #{mcan_forward.1} parent=1 // pred_check_branch
      %35 = sbr.rel (0) target = $region29
    $region28: #{mcan_forward.1} parent=1 // pred_region
      _
    $region29: #{mcan_forward.1} parent=1 // pred_fallthru
      _
    // Predicated region
    $region30: #{mcan_forward.1} parent=1 // pred_check
      _
    $region31: #{mcan_forward.1} parent=1 // pred_check_branch
      %37 = sbr.rel (0) target = $region33
    $region32: #{mcan_forward.1} parent=1 // pred_region
      _
    $region33: #{mcan_forward.1} parent=1 // pred_fallthru
      _
    // Predicated region
    $region34: #{mcan_forward.1} parent=1 // pred_check
      _
    $region35: #{mcan_forward.1} parent=1 // pred_check_branch
      %39 = sbr.rel (0) target = $region37
    $region36: #{mcan_forward.1} parent=1 // pred_region
      _
    $region37: #{mcan_forward.1} parent=1 // pred_fallthru
      _
    // Predicated region
    $region38: #{mcan_forward.1} parent=1 // pred_check
      _
    $region39: #{mcan_forward.1} parent=1 // pred_check_branch
      %41 = sbr.rel (0) target = $region41
    $region40: #{mcan_forward.1} parent=1 // pred_region
      _
    $region41: #{mcan_forward.1} parent=1 // pred_fallthru
      _
    // Predicated region
    $region42: #{mcan_forward.1} parent=1 // pred_check
      _
    $region43: #{mcan_forward.1} parent=1 // pred_check_branch
      %43 = sbr.rel (0) target = $region45
    $region44: #{mcan_forward.1} parent=1 // pred_region
      _
    $region45: #{mcan_forward.1} parent=1 // pred_fallthru
      _
    // Predicated region
    $region46: #{mcan_forward.1} parent=1 // pred_check
      _
    $region47: #{mcan_forward.1} parent=1 // pred_check_branch
      %45 = sbr.rel (0) target = $region49
    $region48: #{mcan_forward.1} parent=1 // pred_region
      _
    $region49: #{mcan_forward.1} parent=1 // pred_fallthru
      _
    // Predicated region
    $region50: #{mcan_forward.1} parent=1 // pred_check
      _
    $region51: #{mcan_forward.1} parent=1 // pred_check_branch
      %47 = sbr.rel (0) target = $region53
    $region52: #{mcan_forward.1} parent=1 // pred_region
      _
    $region53: #{mcan_forward.1} parent=1 // pred_fallthru
      _
    // Predicated region
    $region54: #{mcan_forward.1} parent=1 // pred_check
      _
    $region55: #{mcan_forward.1} parent=1 // pred_check_branch
      %49 = sbr.rel (0) target = $region57
    $region56: #{mcan_forward.1} parent=1 // pred_region
      _
    $region57: #{mcan_forward.1} parent=1 // pred_fallthru
      _
    // Predicated region
    $region58: #{mcan_forward.1} parent=1 // pred_check
      _
    $region59: #{mcan_forward.1} parent=1 // pred_check_branch
      %51 = sbr.rel (0) target = $region61
    $region60: #{mcan_forward.1} parent=1 // pred_region
      _
    $region61: #{mcan_forward.1} parent=1 // pred_fallthru
      _
    // Predicated region
    $region62: #{mcan_forward.1} parent=1 // pred_check
      _
    $region63: #{mcan_forward.1} parent=1 // pred_check_branch
      %53 = sbr.rel (0) target = $region65
    $region64: #{mcan_forward.1} parent=1 // pred_region
      _
    $region65: #{mcan_forward.1} parent=1 // pred_fallthru
      _
    %v54 = vld [vmem:[%s0] sm:$0xff]
    %s55 = scalar_lea.vmem %s0, 8
    %v56 = vld [vmem:[%s55] sm:$0xff]
    %v57 = vld [vmem:[%s1] sm:$0xff]
    %s58 = scalar_lea.vmem %s1, 8
    %v59 = vld [vmem:[%s58] sm:$0xff]
    %v60 = vld [vmem:[%s2] sm:$0xff]
    %v61 = vld [vmem:[%s2 + $0x8] sm:$0xff]
    %v62 = vld [vmem:[%s2 + $0x10] sm:$0xff]
    %v63 = vld [vmem:[%s2 + $0x18] sm:$0xff]
    %s64 = scalar_lea.vmem %s2, 32
    %v65 = vld [vmem:[%s64] sm:$0xff]
    %v66 = vld [vmem:[%s64 + $0x8] sm:$0xff]
    %v67 = vld [vmem:[%s64 + $0x10] sm:$0xff]
    %v68 = vld [vmem:[%s64 + $0x18] sm:$0xff]
    %v69 = vld [vmem:[%s3] sm:$0xff]
    %v70 = vld [vmem:[%s3 + $0x8] sm:$0xff]
    %s71 = scalar_lea.vmem %s3, 16
    %v72 = vld [vmem:[%s71] sm:$0xff]
    %v73 = vld [vmem:[%s71 + $0x8] sm:$0xff]
    %v74 = vld [vmem:[%s4] sm:$0x1]
    %s75 = scalar_lea.vmem %s4, 1
    %v76 = vld [vmem:[%s75] sm:$0x1]
    %v77 = vld [vmem:[%s5] sm:$0x1]
    %s78 = scalar_lea.vmem %s5, 1
    %v79 = vld [vmem:[%s78] sm:$0x1]
    %v81 = vrot.slane %v56, 7
    %v84 = vrot.slane %v57, 6
    %v87 = vrot.slane %v59, 5
    %v90 = vrot.slane %v54, 5
    %v92 = vrot.slane %v56, 4
    %v94 = vrot.slane %v57, 3
    %v96 = vrot.slane %v59, 2
    %v98 = vrot.slane %v54, 2
    %v100 = vrot.slane %v56, 1
    %v102 = vrot.slane %v59, 7
    %v104 = vrot.slane %v54, 7
    %v106 = vrot.slane %v56, 6
    %v108 = vrot.slane %v57, 5
    %v110 = vrot.slane %v59, 4
    %vm112 = vcmask 1040384
    %v113 = vsel %vm112, %v54, %v81
    %vm114 = vcmask 1041408
    %v115 = vsel %vm114, %v113, %v84
    %vm116 = vcmask 1042432
    %v117 = vsel %vm116, %v115, %v87
    %vm118 = vcmask 1043456
    %v119 = vsel %vm118, %v117, %v90
    %vm120 = vcmask 1044480
    %v121 = vsel %vm120, %v119, %v92
    %vm122 = vcmask 1045504
    %v123 = vsel %vm122, %v121, %v94
    %vm124 = vcmask 1046528
    %v125 = vsel %vm124, %v123, %v96
    %v126 = vsel %vm112, %v98, %v100
    %v127 = vsel %vm114, %v126, %v57
    %v128 = vsel %vm116, %v127, %v102
    %v129 = vsel %vm118, %v128, %v104
    %v130 = vsel %vm120, %v129, %v106
    %v131 = vsel %vm122, %v130, %v108
    %v132 = vsel %vm124, %v131, %v110
    %v133 = vrot.slane %v54, 4
    %v135 = vrot.slane %v56, 3
    %v137 = vrot.slane %v57, 2
    %v139 = vrot.slane %v59, 1
    %v141 = vrot.slane %v54, 1
    %v143 = vrot.slane %v57, 7
    %v145 = vrot.slane %v59, 6
    %v147 = vrot.slane %v54, 6
    %v149 = vrot.slane %v56, 5
    %v151 = vrot.slane %v57, 4
    %v153 = vrot.slane %v59, 3
    %v155 = vrot.slane %v54, 3
    %v157 = vrot.slane %v56, 2
    %v159 = vrot.slane %v57, 1
    %v161 = vsel %vm112, %v133, %v135
    %v162 = vsel %vm114, %v161, %v137
    %v163 = vsel %vm116, %v162, %v139
    %v164 = vsel %vm118, %v163, %v141
    %v165 = vsel %vm120, %v164, %v56
    %v166 = vsel %vm122, %v165, %v143
    %v167 = vsel %vm124, %v166, %v145
    %v168 = vsel %vm112, %v147, %v149
    %v169 = vsel %vm114, %v168, %v151
    %v170 = vsel %vm116, %v169, %v153
    %v171 = vsel %vm118, %v170, %v155
    %v172 = vsel %vm120, %v171, %v157
    %v173 = vsel %vm122, %v172, %v159
    %v174 = vsel %vm124, %v173, %v59
    %v176 = vperm.slane %v74, 0
    %vm178 = vcmask 261120
    %v180 = vsel %vm178, %v125, 0
    %v183 = vsel %vm178, %v132, 0
    %v186 = vsel %vm178, %v167, 0
    %v189 = vsel %vm178, %v174, 0
    %191 = vmatpush.msra.mxu0 0.0
    %192 = vmatpush.msra.mxu0 0.0
    %193 = vmatpush.msra.mxu0 0.0
    %194 = vmatpush.msra.mxu0 0.0
    %195 = vmatpush.msra.mxu0 0.0
    %196 = vmatpush.msra.mxu0 0.0
    %197 = vmatpush.msra.mxu0 0.0
    %198 = vmatpush.msra.mxu0 0.0
    %199 = vmatpush.msra.mxu0 0.0
    %200 = vmatpush.msra.mxu0 0.0
    %201 = vmatpush.msra.mxu0 0.0
    %202 = vmatpush.msra.mxu0 0.0
    %203 = vmatpush.msra.mxu0 %v63
    %204 = vmatpush.msra.mxu0 %v62
    %205 = vmatpush.msra.mxu0 %v61
    %206 = vmatpush.msra.mxu0 %v60
    %207 = vmatmul.f32.gmra.mxu0 %v180
    %v208 = vpop.f32.mrf.mxu0
    %v209 = vadd.f32 %v176, %v208
    %210 = vmatmul.f32.gmra.mxu0 %v183
    %v211 = vpop.f32.mrf.mxu0
    %v212 = vadd.f32 %v176, %v211
    %213 = vmatmul.f32.gmra.mxu0 %v186
    %v214 = vpop.f32.mrf.mxu0
    %v215 = vadd.f32 %v176, %v214
    %216 = vmatmul.f32.gmra.mxu0 %v189
    %v217 = vpop.f32.mrf.mxu0
    %v218 = vadd.f32 %v176, %v217
    %219 = vdwg.mxu0
    %v221 = vperm.slane %v76, 0
    %223 = vmatpush.msra.mxu0 0.0
    %224 = vmatpush.msra.mxu0 0.0
    %225 = vmatpush.msra.mxu0 0.0
    %226 = vmatpush.msra.mxu0 0.0
    %227 = vmatpush.msra.mxu0 0.0
    %228 = vmatpush.msra.mxu0 0.0
    %229 = vmatpush.msra.mxu0 0.0
    %230 = vmatpush.msra.mxu0 0.0
    %231 = vmatpush.msra.mxu0 0.0
    %232 = vmatpush.msra.mxu0 0.0
    %233 = vmatpush.msra.mxu0 0.0
    %234 = vmatpush.msra.mxu0 0.0
    %235 = vmatpush.msra.mxu0 %v68
    %236 = vmatpush.msra.mxu0 %v67
    %237 = vmatpush.msra.mxu0 %v66
    %238 = vmatpush.msra.mxu0 %v65
    %239 = vmatmul.f32.gmra.mxu0 %v180
    %v240 = vpop.f32.mrf.mxu0
    %v241 = vadd.f32 %v221, %v240
    %242 = vmatmul.f32.gmra.mxu0 %v183
    %v243 = vpop.f32.mrf.mxu0
    %v244 = vadd.f32 %v221, %v243
    %245 = vmatmul.f32.gmra.mxu0 %v186
    %v246 = vpop.f32.mrf.mxu0
    %v247 = vadd.f32 %v221, %v246
    %248 = vmatmul.f32.gmra.mxu0 %v189
    %v249 = vpop.f32.mrf.mxu0
    %v250 = vadd.f32 %v221, %v249
    %251 = vdwg.mxu0
    %v253 = vperm.slane %v77, 0
    %vm255 = vcmask 130048
    %v257 = vsel %vm255, 0.0, 0
    %259 = vmatpush.msra.mxu0 0.0
    %260 = vmatpush.msra.mxu0 0.0
    %261 = vmatpush.msra.mxu0 0.0
    %262 = vmatpush.msra.mxu0 0.0
    %263 = vmatpush.msra.mxu0 0.0
    %264 = vmatpush.msra.mxu0 0.0
    %265 = vmatpush.msra.mxu0 0.0
    %266 = vmatpush.msra.mxu0 0.0
    %267 = vmatpush.msra.mxu0 0.0
    %268 = vmatpush.msra.mxu0 0.0
    %269 = vmatpush.msra.mxu0 0.0
    %270 = vmatpush.msra.mxu0 0.0
    %271 = vmatpush.msra.mxu0 0.0
    %272 = vmatpush.msra.mxu0 0.0
    %273 = vmatpush.msra.mxu0 %v70
    %274 = vmatpush.msra.mxu0 %v69
    %275 = vmatmul.f32.gmra.mxu0 %v257
    %v276 = vpop.f32.mrf.mxu0
    %v277 = vadd.f32 %v253, %v276
    %278 = vdwg.mxu0
    %v279 = vadd.f32 %v209, %v277
    %v280 = vxor.u32 %v279, 2147483648
    %v281 = vmul.f32 %v280, 1.442695
    %v282 = vpow.pop %v281
    %v283 = vadd.f32 %v282, 1.0
    %v284 = vrcp.pop %v283
    %v285 = vmul.f32 %v283, %v284
    %v286 = vsub.f32 1.0, %v285
    %v287 = vmul.f32 %v284, %v286
    %v288 = vadd.f32 %v284, %v287
    %vm289 = vweird.f32 %v283
    %vm290 = vweird.f32 %v284
    %vm291 = vmor %vm289, %vm290
    %v292 = vsel %vm291, %v284, %v288
    %v293 = vand.u32 2147483647, %v283
    %vm294 = vcmp.eq.f32.partialorder %v293, 8.507059e+37
    %v295 = vand.u32 %v283, 2147483648
    %v296 = vor.u32 1.1754944e-38, %v295
    %v297 = vsel %vm294, %v296, %v292
    %v298 = vmul.f32 1.0, %v297
    %300 = vrot.lane.b32.xlu0 %v277, 96
    %v301 = vpop.permute.xlu0 %300
    %v303 = vmul.f32 %v298, %v301
    %305 = vrot.lane.b32.xlu0 %v303, 32
    %v306 = vpop.permute.xlu0 %305
    %v308 = vadd.f32 %v209, %v306
    %v309 = vtanh.pop %v308
    %v310 = vsub.f32 1.0, %v298
    %312 = vrot.lane.b32.xlu0 %v309, 112
    %v313 = vpop.permute.xlu0 %312
    %v315 = vmul.f32 %v310, %v313
    %v316 = vmul.f32 %v298, 0.0
    %v317 = vadd.f32 %v315, %v316
    %319 = vrot.lane.b32.xlu0 %v317, 112
    %v320 = vpop.permute.xlu0 %319
    %v321 = vsel %vm255, %v320, 0
    %323 = vmatpush.msra.mxu0 0.0
    %324 = vmatpush.msra.mxu0 0.0
    %325 = vmatpush.msra.mxu0 0.0
    %326 = vmatpush.msra.mxu0 0.0
    %327 = vmatpush.msra.mxu0 0.0
    %328 = vmatpush.msra.mxu0 0.0
    %329 = vmatpush.msra.mxu0 0.0
    %330 = vmatpush.msra.mxu0 0.0
    %331 = vmatpush.msra.mxu0 0.0
    %332 = vmatpush.msra.mxu0 0.0
    %333 = vmatpush.msra.mxu0 0.0
    %334 = vmatpush.msra.mxu0 0.0
    %335 = vmatpush.msra.mxu0 0.0
    %336 = vmatpush.msra.mxu0 0.0
    %337 = vmatpush.msra.mxu0 %v70
    %338 = vmatpush.msra.mxu0 %v69
    %339 = vmatmul.f32.gmra.mxu0 %v321
    %v340 = vpop.f32.mrf.mxu0
    %v341 = vadd.f32 %v253, %v340
    %342 = vdwg.mxu0
    %v344 = vrot.slane %v341, 4
    %v346 = vadd.f32 %v209, %v344
    %v347 = vxor.u32 %v346, 2147483648
    %v348 = vmul.f32 %v347, 1.442695
    %v349 = vpow.pop %v348
    %v350 = vadd.f32 %v349, 1.0
    %v351 = vrcp.pop %v350
    %v352 = vmul.f32 %v350, %v351
    %v353 = vsub.f32 1.0, %v352
    %v354 = vmul.f32 %v351, %v353
    %v355 = vadd.f32 %v351, %v354
    %vm356 = vweird.f32 %v350
    %vm357 = vweird.f32 %v351
    %vm358 = vmor %vm356, %vm357
    %v359 = vsel %vm358, %v351, %v355
    %v360 = vand.u32 2147483647, %v350
    %vm361 = vcmp.eq.f32.partialorder %v360, 8.507059e+37
    %v362 = vand.u32 %v350, 2147483648
    %v363 = vor.u32 1.1754944e-38, %v362
    %v364 = vsel %vm361, %v363, %v359
    %v365 = vmul.f32 1.0, %v364
    %366 = vrot.lane.b32.xlu0 %v344, 96
    %v367 = vpop.permute.xlu0 %366
    %v369 = vmul.f32 %v365, %v367
    %371 = vrot.lane.b32.xlu0 %v369, 32
    %v372 = vpop.permute.xlu0 %371
    %v374 = vadd.f32 %v209, %v372
    %v375 = vtanh.pop %v374
    %v376 = vsub.f32 1.0, %v365
    %378 = vrot.lane.b32.xlu0 %v375, 112
    %v379 = vpop.permute.xlu0 %378
    %v381 = vmul.f32 %v376, %v379
    %v382 = vrot.slane %v317, 4
    %v384 = vmul.f32 %v365, %v382
    %v385 = vadd.f32 %v381, %v384
    %v387 = vrot.slane %v385, 4
    %388 = vrot.lane.b32.xlu0 %v387, 112
    %v389 = vpop.permute.xlu0 %388
    %v390 = vsel %vm255, %v389, 0
    %392 = vmatpush.msra.mxu0 0.0
    %393 = vmatpush.msra.mxu0 0.0
    %394 = vmatpush.msra.mxu0 0.0
    %395 = vmatpush.msra.mxu0 0.0
    %396 = vmatpush.msra.mxu0 0.0
    %397 = vmatpush.msra.mxu0 0.0
    %398 = vmatpush.msra.mxu0 0.0
    %399 = vmatpush.msra.mxu0 0.0
    %400 = vmatpush.msra.mxu0 0.0
    %401 = vmatpush.msra.mxu0 0.0
    %402 = vmatpush.msra.mxu0 0.0
    %403 = vmatpush.msra.mxu0 0.0
    %404 = vmatpush.msra.mxu0 0.0
    %405 = vmatpush.msra.mxu0 0.0
    %406 = vmatpush.msra.mxu0 %v70
    %407 = vmatpush.msra.mxu0 %v69
    %408 = vmatmul.f32.gmra.mxu0 %v390
    %v409 = vpop.f32.mrf.mxu0
    %v410 = vadd.f32 %v253, %v409
    %411 = vdwg.mxu0
    %v412 = vadd.f32 %v212, %v410
    %v413 = vxor.u32 %v412, 2147483648
    %v414 = vmul.f32 %v413, 1.442695
    %v415 = vpow.pop %v414
    %v416 = vadd.f32 %v415, 1.0
    %v417 = vrcp.pop %v416
    %v418 = vmul.f32 %v416, %v417
    %v419 = vsub.f32 1.0, %v418
    %v420 = vmul.f32 %v417, %v419
    %v421 = vadd.f32 %v417, %v420
    %vm422 = vweird.f32 %v416
    %vm423 = vweird.f32 %v417
    %vm424 = vmor %vm422, %vm423
    %v425 = vsel %vm424, %v417, %v421
    %v426 = vand.u32 2147483647, %v416
    %vm427 = vcmp.eq.f32.partialorder %v426, 8.507059e+37
    %v428 = vand.u32 %v416, 2147483648
    %v429 = vor.u32 1.1754944e-38, %v428
    %v430 = vsel %vm427, %v429, %v425
    %v431 = vmul.f32 1.0, %v430
    %433 = vrot.lane.b32.xlu0 %v410, 96
    %v434 = vpop.permute.xlu0 %433
    %v436 = vmul.f32 %v431, %v434
    %438 = vrot.lane.b32.xlu0 %v436, 32
    %v439 = vpop.permute.xlu0 %438
    %v441 = vadd.f32 %v212, %v439
    %v442 = vtanh.pop %v441
    %v443 = vsub.f32 1.0, %v431
    %445 = vrot.lane.b32.xlu0 %v442, 112
    %v446 = vpop.permute.xlu0 %445
    %v448 = vmul.f32 %v443, %v446
    %v450 = vmul.f32 %v431, %v387
    %v451 = vadd.f32 %v448, %v450
    %453 = vrot.lane.b32.xlu0 %v451, 112
    %v454 = vpop.permute.xlu0 %453
    %v455 = vsel %vm255, %v454, 0
    %457 = vmatpush.msra.mxu0 0.0
    %458 = vmatpush.msra.mxu0 0.0
    %459 = vmatpush.msra.mxu0 0.0
    %460 = vmatpush.msra.mxu0 0.0
    %461 = vmatpush.msra.mxu0 0.0
    %462 = vmatpush.msra.mxu0 0.0
    %463 = vmatpush.msra.mxu0 0.0
    %464 = vmatpush.msra.mxu0 0.0
    %465 = vmatpush.msra.mxu0 0.0
    %466 = vmatpush.msra.mxu0 0.0
    %467 = vmatpush.msra.mxu0 0.0
    %468 = vmatpush.msra.mxu0 0.0
    %469 = vmatpush.msra.mxu0 0.0
    %470 = vmatpush.msra.mxu0 0.0
    %471 = vmatpush.msra.mxu0 %v70
    %472 = vmatpush.msra.mxu0 %v69
    %473 = vmatmul.f32.gmra.mxu0 %v455
    %v474 = vpop.f32.mrf.mxu0
    %v475 = vadd.f32 %v253, %v474
    %476 = vdwg.mxu0
    %v478 = vrot.slane %v475, 4
    %v480 = vadd.f32 %v212, %v478
    %v481 = vxor.u32 %v480, 2147483648
    %v482 = vmul.f32 %v481, 1.442695
    %v483 = vpow.pop %v482
    %v484 = vadd.f32 %v483, 1.0
    %v485 = vrcp.pop %v484
    %v486 = vmul.f32 %v484, %v485
    %v487 = vsub.f32 1.0, %v486
    %v488 = vmul.f32 %v485, %v487
    %v489 = vadd.f32 %v485, %v488
    %vm490 = vweird.f32 %v484
    %vm491 = vweird.f32 %v485
    %vm492 = vmor %vm490, %vm491
    %v493 = vsel %vm492, %v485, %v489
    %v494 = vand.u32 2147483647, %v484
    %vm495 = vcmp.eq.f32.partialorder %v494, 8.507059e+37
    %v496 = vand.u32 %v484, 2147483648
    %v497 = vor.u32 1.1754944e-38, %v496
    %v498 = vsel %vm495, %v497, %v493
    %v499 = vmul.f32 1.0, %v498
    %500 = vrot.lane.b32.xlu0 %v478, 96
    %v501 = vpop.permute.xlu0 %500
    %v503 = vmul.f32 %v499, %v501
    %505 = vrot.lane.b32.xlu0 %v503, 32
    %v506 = vpop.permute.xlu0 %505
    %v508 = vadd.f32 %v212, %v506
    %v509 = vtanh.pop %v508
    %v510 = vsub.f32 1.0, %v499
    %512 = vrot.lane.b32.xlu0 %v509, 112
    %v513 = vpop.permute.xlu0 %512
    %v515 = vmul.f32 %v510, %v513
    %v516 = vrot.slane %v451, 4
    %v518 = vmul.f32 %v499, %v516
    %v519 = vadd.f32 %v515, %v518
    %v521 = vrot.slane %v519, 4
    %522 = vrot.lane.b32.xlu0 %v521, 112
    %v523 = vpop.permute.xlu0 %522
    %v524 = vsel %vm255, %v523, 0
    %526 = vmatpush.msra.mxu0 0.0
    %527 = vmatpush.msra.mxu0 0.0
    %528 = vmatpush.msra.mxu0 0.0
    %529 = vmatpush.msra.mxu0 0.0
    %530 = vmatpush.msra.mxu0 0.0
    %531 = vmatpush.msra.mxu0 0.0
    %532 = vmatpush.msra.mxu0 0.0
    %533 = vmatpush.msra.mxu0 0.0
    %534 = vmatpush.msra.mxu0 0.0
    %535 = vmatpush.msra.mxu0 0.0
    %536 = vmatpush.msra.mxu0 0.0
    %537 = vmatpush.msra.mxu0 0.0
    %538 = vmatpush.msra.mxu0 0.0
    %539 = vmatpush.msra.mxu0 0.0
    %540 = vmatpush.msra.mxu0 %v70
    %541 = vmatpush.msra.mxu0 %v69
    %542 = vmatmul.f32.gmra.mxu0 %v524
    %v543 = vpop.f32.mrf.mxu0
    %v544 = vadd.f32 %v253, %v543
    %545 = vdwg.mxu0
    %v546 = vadd.f32 %v215, %v544
    %v547 = vxor.u32 %v546, 2147483648
    %v548 = vmul.f32 %v547, 1.442695
    %v549 = vpow.pop %v548
    %v550 = vadd.f32 %v549, 1.0
    %v551 = vrcp.pop %v550
    %v552 = vmul.f32 %v550, %v551
    %v553 = vsub.f32 1.0, %v552
    %v554 = vmul.f32 %v551, %v553
    %v555 = vadd.f32 %v551, %v554
    %vm556 = vweird.f32 %v550
    %vm557 = vweird.f32 %v551
    %vm558 = vmor %vm556, %vm557
    %v559 = vsel %vm558, %v551, %v555
    %v560 = vand.u32 2147483647, %v550
    %vm561 = vcmp.eq.f32.partialorder %v560, 8.507059e+37
    %v562 = vand.u32 %v550, 2147483648
    %v563 = vor.u32 1.1754944e-38, %v562
    %v564 = vsel %vm561, %v563, %v559
    %v565 = vmul.f32 1.0, %v564
    %567 = vrot.lane.b32.xlu0 %v544, 96
    %v568 = vpop.permute.xlu0 %567
    %v570 = vmul.f32 %v565, %v568
    %572 = vrot.lane.b32.xlu0 %v570, 32
    %v573 = vpop.permute.xlu0 %572
    %v575 = vadd.f32 %v215, %v573
    %v576 = vtanh.pop %v575
    %v577 = vsub.f32 1.0, %v565
    %579 = vrot.lane.b32.xlu0 %v576, 112
    %v580 = vpop.permute.xlu0 %579
    %v582 = vmul.f32 %v577, %v580
    %v584 = vmul.f32 %v565, %v521
    %v585 = vadd.f32 %v582, %v584
    %587 = vrot.lane.b32.xlu0 %v585, 112
    %v588 = vpop.permute.xlu0 %587
    %v589 = vsel %vm255, %v588, 0
    %591 = vmatpush.msra.mxu0 0.0
    %592 = vmatpush.msra.mxu0 0.0
    %593 = vmatpush.msra.mxu0 0.0
    %594 = vmatpush.msra.mxu0 0.0
    %595 = vmatpush.msra.mxu0 0.0
    %596 = vmatpush.msra.mxu0 0.0
    %597 = vmatpush.msra.mxu0 0.0
    %598 = vmatpush.msra.mxu0 0.0
    %599 = vmatpush.msra.mxu0 0.0
    %600 = vmatpush.msra.mxu0 0.0
    %601 = vmatpush.msra.mxu0 0.0
    %602 = vmatpush.msra.mxu0 0.0
    %603 = vmatpush.msra.mxu0 0.0
    %604 = vmatpush.msra.mxu0 0.0
    %605 = vmatpush.msra.mxu0 %v70
    %606 = vmatpush.msra.mxu0 %v69
    %607 = vmatmul.f32.gmra.mxu0 %v589
    %v608 = vpop.f32.mrf.mxu0
    %v609 = vadd.f32 %v253, %v608
    %610 = vdwg.mxu0
    %v612 = vrot.slane %v609, 4
    %v614 = vadd.f32 %v215, %v612
    %v615 = vxor.u32 %v614, 2147483648
    %v616 = vmul.f32 %v615, 1.442695
    %v617 = vpow.pop %v616
    %v618 = vadd.f32 %v617, 1.0
    %v619 = vrcp.pop %v618
    %v620 = vmul.f32 %v618, %v619
    %v621 = vsub.f32 1.0, %v620
    %v622 = vmul.f32 %v619, %v621
    %v623 = vadd.f32 %v619, %v622
    %vm624 = vweird.f32 %v618
    %vm625 = vweird.f32 %v619
    %vm626 = vmor %vm624, %vm625
    %v627 = vsel %vm626, %v619, %v623
    %v628 = vand.u32 2147483647, %v618
    %vm629 = vcmp.eq.f32.partialorder %v628, 8.507059e+37
    %v630 = vand.u32 %v618, 2147483648
    %v631 = vor.u32 1.1754944e-38, %v630
    %v632 = vsel %vm629, %v631, %v627
    %v633 = vmul.f32 1.0, %v632
    %634 = vrot.lane.b32.xlu0 %v612, 96
    %v635 = vpop.permute.xlu0 %634
    %v637 = vmul.f32 %v633, %v635
    %639 = vrot.lane.b32.xlu0 %v637, 32
    %v640 = vpop.permute.xlu0 %639
    %v642 = vadd.f32 %v215, %v640
    %v643 = vtanh.pop %v642
    %v644 = vsub.f32 1.0, %v633
    %646 = vrot.lane.b32.xlu0 %v643, 112
    %v647 = vpop.permute.xlu0 %646
    %v649 = vmul.f32 %v644, %v647
    %v650 = vrot.slane %v585, 4
    %v652 = vmul.f32 %v633, %v650
    %v653 = vadd.f32 %v649, %v652
    %v655 = vrot.slane %v653, 4
    %656 = vrot.lane.b32.xlu0 %v655, 112
    %v657 = vpop.permute.xlu0 %656
    %v658 = vsel %vm255, %v657, 0
    %660 = vmatpush.msra.mxu0 0.0
    %661 = vmatpush.msra.mxu0 0.0
    %662 = vmatpush.msra.mxu0 0.0
    %663 = vmatpush.msra.mxu0 0.0
    %664 = vmatpush.msra.mxu0 0.0
    %665 = vmatpush.msra.mxu0 0.0
    %666 = vmatpush.msra.mxu0 0.0
    %667 = vmatpush.msra.mxu0 0.0
    %668 = vmatpush.msra.mxu0 0.0
    %669 = vmatpush.msra.mxu0 0.0
    %670 = vmatpush.msra.mxu0 0.0
    %671 = vmatpush.msra.mxu0 0.0
    %672 = vmatpush.msra.mxu0 0.0
    %673 = vmatpush.msra.mxu0 0.0
    %674 = vmatpush.msra.mxu0 %v70
    %675 = vmatpush.msra.mxu0 %v69
    %676 = vmatmul.f32.gmra.mxu0 %v658
    %v677 = vpop.f32.mrf.mxu0
    %v678 = vadd.f32 %v253, %v677
    %679 = vdwg.mxu0
    %v680 = vadd.f32 %v218, %v678
    %v681 = vxor.u32 %v680, 2147483648
    %v682 = vmul.f32 %v681, 1.442695
    %v683 = vpow.pop %v682
    %v684 = vadd.f32 %v683, 1.0
    %v685 = vrcp.pop %v684
    %v686 = vmul.f32 %v684, %v685
    %v687 = vsub.f32 1.0, %v686
    %v688 = vmul.f32 %v685, %v687
    %v689 = vadd.f32 %v685, %v688
    %vm690 = vweird.f32 %v684
    %vm691 = vweird.f32 %v685
    %vm692 = vmor %vm690, %vm691
    %v693 = vsel %vm692, %v685, %v689
    %v694 = vand.u32 2147483647, %v684
    %vm695 = vcmp.eq.f32.partialorder %v694, 8.507059e+37
    %v696 = vand.u32 %v684, 2147483648
    %v697 = vor.u32 1.1754944e-38, %v696
    %v698 = vsel %vm695, %v697, %v693
    %v699 = vmul.f32 1.0, %v698
    %701 = vrot.lane.b32.xlu0 %v678, 96
    %v702 = vpop.permute.xlu0 %701
    %v704 = vmul.f32 %v699, %v702
    %706 = vrot.lane.b32.xlu0 %v704, 32
    %v707 = vpop.permute.xlu0 %706
    %v709 = vadd.f32 %v218, %v707
    %v710 = vtanh.pop %v709
    %v711 = vsub.f32 1.0, %v699
    %713 = vrot.lane.b32.xlu0 %v710, 112
    %v714 = vpop.permute.xlu0 %713
    %v716 = vmul.f32 %v711, %v714
    %v718 = vmul.f32 %v699, %v655
    %v719 = vadd.f32 %v716, %v718
    %721 = vrot.lane.b32.xlu0 %v719, 112
    %v722 = vpop.permute.xlu0 %721
    %v723 = vsel %vm255, %v722, 0
    %725 = vmatpush.msra.mxu0 0.0
    %726 = vmatpush.msra.mxu0 0.0
    %727 = vmatpush.msra.mxu0 0.0
    %728 = vmatpush.msra.mxu0 0.0
    %729 = vmatpush.msra.mxu0 0.0
    %730 = vmatpush.msra.mxu0 0.0
    %731 = vmatpush.msra.mxu0 0.0
    %732 = vmatpush.msra.mxu0 0.0
    %733 = vmatpush.msra.mxu0 0.0
    %734 = vmatpush.msra.mxu0 0.0
    %735 = vmatpush.msra.mxu0 0.0
    %736 = vmatpush.msra.mxu0 0.0
    %737 = vmatpush.msra.mxu0 0.0
    %738 = vmatpush.msra.mxu0 0.0
    %739 = vmatpush.msra.mxu0 %v70
    %740 = vmatpush.msra.mxu0 %v69
    %741 = vmatmul.f32.gmra.mxu0 %v723
    %v742 = vpop.f32.mrf.mxu0
    %v743 = vadd.f32 %v253, %v742
    %744 = vdwg.mxu0
    %v746 = vrot.slane %v743, 4
    %v748 = vadd.f32 %v218, %v746
    %v749 = vxor.u32 %v748, 2147483648
    %v750 = vmul.f32 %v749, 1.442695
    %v751 = vpow.pop %v750
    %v752 = vadd.f32 %v751, 1.0
    %v753 = vrcp.pop %v752
    %v754 = vmul.f32 %v752, %v753
    %v755 = vsub.f32 1.0, %v754
    %v756 = vmul.f32 %v753, %v755
    %v757 = vadd.f32 %v753, %v756
    %vm758 = vweird.f32 %v752
    %vm759 = vweird.f32 %v753
    %vm760 = vmor %vm758, %vm759
    %v761 = vsel %vm760, %v753, %v757
    %v762 = vand.u32 2147483647, %v752
    %vm763 = vcmp.eq.f32.partialorder %v762, 8.507059e+37
    %v764 = vand.u32 %v752, 2147483648
    %v765 = vor.u32 1.1754944e-38, %v764
    %v766 = vsel %vm763, %v765, %v761
    %v767 = vmul.f32 1.0, %v766
    %768 = vrot.lane.b32.xlu0 %v746, 96
    %v769 = vpop.permute.xlu0 %768
    %v771 = vmul.f32 %v767, %v769
    %773 = vrot.lane.b32.xlu0 %v771, 32
    %v774 = vpop.permute.xlu0 %773
    %v776 = vadd.f32 %v218, %v774
    %v777 = vtanh.pop %v776
    %v778 = vsub.f32 1.0, %v767
    %780 = vrot.lane.b32.xlu0 %v777, 112
    %v781 = vpop.permute.xlu0 %780
    %v783 = vmul.f32 %v778, %v781
    %v784 = vrot.slane %v719, 4
    %v786 = vmul.f32 %v767, %v784
    %v787 = vadd.f32 %v783, %v786
    %v789 = vperm.slane %v79, 0
    %791 = vmatpush.msra.mxu0 0.0
    %792 = vmatpush.msra.mxu0 0.0
    %793 = vmatpush.msra.mxu0 0.0
    %794 = vmatpush.msra.mxu0 0.0
    %795 = vmatpush.msra.mxu0 0.0
    %796 = vmatpush.msra.mxu0 0.0
    %797 = vmatpush.msra.mxu0 0.0
    %798 = vmatpush.msra.mxu0 0.0
    %799 = vmatpush.msra.mxu0 0.0
    %800 = vmatpush.msra.mxu0 0.0
    %801 = vmatpush.msra.mxu0 0.0
    %802 = vmatpush.msra.mxu0 0.0
    %803 = vmatpush.msra.mxu0 0.0
    %804 = vmatpush.msra.mxu0 0.0
    %805 = vmatpush.msra.mxu0 %v73
    %806 = vmatpush.msra.mxu0 %v72
    %807 = vmatmul.f32.gmra.mxu0 %v257
    %v808 = vpop.f32.mrf.mxu0
    %v809 = vadd.f32 %v789, %v808
    %810 = vdwg.mxu0
    %v812 = vrot.slane %v809, 4
    %v814 = vadd.f32 %v250, %v812
    %v815 = vxor.u32 %v814, 2147483648
    %v816 = vmul.f32 %v815, 1.442695
    %v817 = vpow.pop %v816
    %v818 = vadd.f32 %v817, 1.0
    %v819 = vrcp.pop %v818
    %v820 = vmul.f32 %v818, %v819
    %v821 = vsub.f32 1.0, %v820
    %v822 = vmul.f32 %v819, %v821
    %v823 = vadd.f32 %v819, %v822
    %vm824 = vweird.f32 %v818
    %vm825 = vweird.f32 %v819
    %vm826 = vmor %vm824, %vm825
    %v827 = vsel %vm826, %v819, %v823
    %v828 = vand.u32 2147483647, %v818
    %vm829 = vcmp.eq.f32.partialorder %v828, 8.507059e+37
    %v830 = vand.u32 %v818, 2147483648
    %v831 = vor.u32 1.1754944e-38, %v830
    %v832 = vsel %vm829, %v831, %v827
    %v833 = vmul.f32 1.0, %v832
    %834 = vrot.lane.b32.xlu0 %v812, 96
    %v835 = vpop.permute.xlu0 %834
    %v837 = vmul.f32 %v833, %v835
    %839 = vrot.lane.b32.xlu0 %v837, 32
    %v840 = vpop.permute.xlu0 %839
    %v842 = vadd.f32 %v250, %v840
    %v843 = vtanh.pop %v842
    %v844 = vsub.f32 1.0, %v833
    %846 = vrot.lane.b32.xlu0 %v843, 112
    %v847 = vpop.permute.xlu0 %846
    %v849 = vmul.f32 %v844, %v847
    %v850 = vmul.f32 %v833, 0.0
    %v851 = vadd.f32 %v849, %v850
    %v853 = vrot.slane %v851, 4
    %854 = vrot.lane.b32.xlu0 %v853, 112
    %v855 = vpop.permute.xlu0 %854
    %v856 = vsel %vm255, %v855, 0
    %858 = vmatpush.msra.mxu0 0.0
    %859 = vmatpush.msra.mxu0 0.0
    %860 = vmatpush.msra.mxu0 0.0
    %861 = vmatpush.msra.mxu0 0.0
    %862 = vmatpush.msra.mxu0 0.0
    %863 = vmatpush.msra.mxu0 0.0
    %864 = vmatpush.msra.mxu0 0.0
    %865 = vmatpush.msra.mxu0 0.0
    %866 = vmatpush.msra.mxu0 0.0
    %867 = vmatpush.msra.mxu0 0.0
    %868 = vmatpush.msra.mxu0 0.0
    %869 = vmatpush.msra.mxu0 0.0
    %870 = vmatpush.msra.mxu0 0.0
    %871 = vmatpush.msra.mxu0 0.0
    %872 = vmatpush.msra.mxu0 %v73
    %873 = vmatpush.msra.mxu0 %v72
    %874 = vmatmul.f32.gmra.mxu0 %v856
    %v875 = vpop.f32.mrf.mxu0
    %v876 = vadd.f32 %v789, %v875
    %877 = vdwg.mxu0
    %v878 = vadd.f32 %v250, %v876
    %v879 = vxor.u32 %v878, 2147483648
    %v880 = vmul.f32 %v879, 1.442695
    %v881 = vpow.pop %v880
    %v882 = vadd.f32 %v881, 1.0
    %v883 = vrcp.pop %v882
    %v884 = vmul.f32 %v882, %v883
    %v885 = vsub.f32 1.0, %v884
    %v886 = vmul.f32 %v883, %v885
    %v887 = vadd.f32 %v883, %v886
    %vm888 = vweird.f32 %v882
    %vm889 = vweird.f32 %v883
    %vm890 = vmor %vm888, %vm889
    %v891 = vsel %vm890, %v883, %v887
    %v892 = vand.u32 2147483647, %v882
    %vm893 = vcmp.eq.f32.partialorder %v892, 8.507059e+37
    %v894 = vand.u32 %v882, 2147483648
    %v895 = vor.u32 1.1754944e-38, %v894
    %v896 = vsel %vm893, %v895, %v891
    %v897 = vmul.f32 1.0, %v896
    %899 = vrot.lane.b32.xlu0 %v876, 96
    %v900 = vpop.permute.xlu0 %899
    %v902 = vmul.f32 %v897, %v900
    %904 = vrot.lane.b32.xlu0 %v902, 32
    %v905 = vpop.permute.xlu0 %904
    %v907 = vadd.f32 %v250, %v905
    %v908 = vtanh.pop %v907
    %v909 = vsub.f32 1.0, %v897
    %911 = vrot.lane.b32.xlu0 %v908, 112
    %v912 = vpop.permute.xlu0 %911
    %v914 = vmul.f32 %v909, %v912
    %v916 = vmul.f32 %v897, %v853
    %v917 = vadd.f32 %v914, %v916
    %919 = vrot.lane.b32.xlu0 %v917, 112
    %v920 = vpop.permute.xlu0 %919
    %v921 = vsel %vm255, %v920, 0
    %923 = vmatpush.msra.mxu0 0.0
    %924 = vmatpush.msra.mxu0 0.0
    %925 = vmatpush.msra.mxu0 0.0
    %926 = vmatpush.msra.mxu0 0.0
    %927 = vmatpush.msra.mxu0 0.0
    %928 = vmatpush.msra.mxu0 0.0
    %929 = vmatpush.msra.mxu0 0.0
    %930 = vmatpush.msra.mxu0 0.0
    %931 = vmatpush.msra.mxu0 0.0
    %932 = vmatpush.msra.mxu0 0.0
    %933 = vmatpush.msra.mxu0 0.0
    %934 = vmatpush.msra.mxu0 0.0
    %935 = vmatpush.msra.mxu0 0.0
    %936 = vmatpush.msra.mxu0 0.0
    %937 = vmatpush.msra.mxu0 %v73
    %938 = vmatpush.msra.mxu0 %v72
    %939 = vmatmul.f32.gmra.mxu0 %v921
    %v940 = vpop.f32.mrf.mxu0
    %v941 = vadd.f32 %v789, %v940
    %942 = vdwg.mxu0
    %v944 = vrot.slane %v941, 4
    %v946 = vadd.f32 %v247, %v944
    %v947 = vxor.u32 %v946, 2147483648
    %v948 = vmul.f32 %v947, 1.442695
    %v949 = vpow.pop %v948
    %v950 = vadd.f32 %v949, 1.0
    %v951 = vrcp.pop %v950
    %v952 = vmul.f32 %v950, %v951
    %v953 = vsub.f32 1.0, %v952
    %v954 = vmul.f32 %v951, %v953
    %v955 = vadd.f32 %v951, %v954
    %vm956 = vweird.f32 %v950
    %vm957 = vweird.f32 %v951
    %vm958 = vmor %vm956, %vm957
    %v959 = vsel %vm958, %v951, %v955
    %v960 = vand.u32 2147483647, %v950
    %vm961 = vcmp.eq.f32.partialorder %v960, 8.507059e+37
    %v962 = vand.u32 %v950, 2147483648
    %v963 = vor.u32 1.1754944e-38, %v962
    %v964 = vsel %vm961, %v963, %v959
    %v965 = vmul.f32 1.0, %v964
    %966 = vrot.lane.b32.xlu0 %v944, 96
    %v967 = vpop.permute.xlu0 %966
    %v969 = vmul.f32 %v965, %v967
    %971 = vrot.lane.b32.xlu0 %v969, 32
    %v972 = vpop.permute.xlu0 %971
    %v974 = vadd.f32 %v247, %v972
    %v975 = vtanh.pop %v974
    %v976 = vsub.f32 1.0, %v965
    %978 = vrot.lane.b32.xlu0 %v975, 112
    %v979 = vpop.permute.xlu0 %978
    %v981 = vmul.f32 %v976, %v979
    %v982 = vrot.slane %v917, 4
    %v984 = vmul.f32 %v965, %v982
    %v985 = vadd.f32 %v981, %v984
    %v987 = vrot.slane %v985, 4
    %988 = vrot.lane.b32.xlu0 %v987, 112
    %v989 = vpop.permute.xlu0 %988
    %v990 = vsel %vm255, %v989, 0
    %992 = vmatpush.msra.mxu0 0.0
    %993 = vmatpush.msra.mxu0 0.0
    %994 = vmatpush.msra.mxu0 0.0
    %995 = vmatpush.msra.mxu0 0.0
    %996 = vmatpush.msra.mxu0 0.0
    %997 = vmatpush.msra.mxu0 0.0
    %998 = vmatpush.msra.mxu0 0.0
    %999 = vmatpush.msra.mxu0 0.0
    %1000 = vmatpush.msra.mxu0 0.0
    %1001 = vmatpush.msra.mxu0 0.0
    %1002 = vmatpush.msra.mxu0 0.0
    %1003 = vmatpush.msra.mxu0 0.0
    %1004 = vmatpush.msra.mxu0 0.0
    %1005 = vmatpush.msra.mxu0 0.0
    %1006 = vmatpush.msra.mxu0 %v73
    %1007 = vmatpush.msra.mxu0 %v72
    %1008 = vmatmul.f32.gmra.mxu0 %v990
    %v1009 = vpop.f32.mrf.mxu0
    %v1010 = vadd.f32 %v789, %v1009
    %1011 = vdwg.mxu0
    %v1012 = vadd.f32 %v247, %v1010
    %v1013 = vxor.u32 %v1012, 2147483648
    %v1014 = vmul.f32 %v1013, 1.442695
    %v1015 = vpow.pop %v1014
    %v1016 = vadd.f32 %v1015, 1.0
    %v1017 = vrcp.pop %v1016
    %v1018 = vmul.f32 %v1016, %v1017
    %v1019 = vsub.f32 1.0, %v1018
    %v1020 = vmul.f32 %v1017, %v1019
    %v1021 = vadd.f32 %v1017, %v1020
    %vm1022 = vweird.f32 %v1016
    %vm1023 = vweird.f32 %v1017
    %vm1024 = vmor %vm1022, %vm1023
    %v1025 = vsel %vm1024, %v1017, %v1021
    %v1026 = vand.u32 2147483647, %v1016
    %vm1027 = vcmp.eq.f32.partialorder %v1026, 8.507059e+37
    %v1028 = vand.u32 %v1016, 2147483648
    %v1029 = vor.u32 1.1754944e-38, %v1028
    %v1030 = vsel %vm1027, %v1029, %v1025
    %v1031 = vmul.f32 1.0, %v1030
    %1033 = vrot.lane.b32.xlu0 %v1010, 96
    %v1034 = vpop.permute.xlu0 %1033
    %v1036 = vmul.f32 %v1031, %v1034
    %1038 = vrot.lane.b32.xlu0 %v1036, 32
    %v1039 = vpop.permute.xlu0 %1038
    %v1041 = vadd.f32 %v247, %v1039
    %v1042 = vtanh.pop %v1041
    %v1043 = vsub.f32 1.0, %v1031
    %1045 = vrot.lane.b32.xlu0 %v1042, 112
    %v1046 = vpop.permute.xlu0 %1045
    %v1048 = vmul.f32 %v1043, %v1046
    %v1050 = vmul.f32 %v1031, %v987
    %v1051 = vadd.f32 %v1048, %v1050
    %1053 = vrot.lane.b32.xlu0 %v1051, 112
    %v1054 = vpop.permute.xlu0 %1053
    %v1055 = vsel %vm255, %v1054, 0
    %1057 = vmatpush.msra.mxu0 0.0
    %1058 = vmatpush.msra.mxu0 0.0
    %1059 = vmatpush.msra.mxu0 0.0
    %1060 = vmatpush.msra.mxu0 0.0
    %1061 = vmatpush.msra.mxu0 0.0
    %1062 = vmatpush.msra.mxu0 0.0
    %1063 = vmatpush.msra.mxu0 0.0
    %1064 = vmatpush.msra.mxu0 0.0
    %1065 = vmatpush.msra.mxu0 0.0
    %1066 = vmatpush.msra.mxu0 0.0
    %1067 = vmatpush.msra.mxu0 0.0
    %1068 = vmatpush.msra.mxu0 0.0
    %1069 = vmatpush.msra.mxu0 0.0
    %1070 = vmatpush.msra.mxu0 0.0
    %1071 = vmatpush.msra.mxu0 %v73
    %1072 = vmatpush.msra.mxu0 %v72
    %1073 = vmatmul.f32.gmra.mxu0 %v1055
    %v1074 = vpop.f32.mrf.mxu0
    %v1075 = vadd.f32 %v789, %v1074
    %1076 = vdwg.mxu0
    %v1078 = vrot.slane %v1075, 4
    %v1080 = vadd.f32 %v244, %v1078
    %v1081 = vxor.u32 %v1080, 2147483648
    %v1082 = vmul.f32 %v1081, 1.442695
    %v1083 = vpow.pop %v1082
    %v1084 = vadd.f32 %v1083, 1.0
    %v1085 = vrcp.pop %v1084
    %v1086 = vmul.f32 %v1084, %v1085
    %v1087 = vsub.f32 1.0, %v1086
    %v1088 = vmul.f32 %v1085, %v1087
    %v1089 = vadd.f32 %v1085, %v1088
    %vm1090 = vweird.f32 %v1084
    %vm1091 = vweird.f32 %v1085
    %vm1092 = vmor %vm1090, %vm1091
    %v1093 = vsel %vm1092, %v1085, %v1089
    %v1094 = vand.u32 2147483647, %v1084
    %vm1095 = vcmp.eq.f32.partialorder %v1094, 8.507059e+37
    %v1096 = vand.u32 %v1084, 2147483648
    %v1097 = vor.u32 1.1754944e-38, %v1096
    %v1098 = vsel %vm1095, %v1097, %v1093
    %v1099 = vmul.f32 1.0, %v1098
    %1100 = vrot.lane.b32.xlu0 %v1078, 96
    %v1101 = vpop.permute.xlu0 %1100
    %v1103 = vmul.f32 %v1099, %v1101
    %1105 = vrot.lane.b32.xlu0 %v1103, 32
    %v1106 = vpop.permute.xlu0 %1105
    %v1108 = vadd.f32 %v244, %v1106
    %v1109 = vtanh.pop %v1108
    %v1110 = vsub.f32 1.0, %v1099
    %1112 = vrot.lane.b32.xlu0 %v1109, 112
    %v1113 = vpop.permute.xlu0 %1112
    %v1115 = vmul.f32 %v1110, %v1113
    %v1116 = vrot.slane %v1051, 4
    %v1118 = vmul.f32 %v1099, %v1116
    %v1119 = vadd.f32 %v1115, %v1118
    %v1121 = vrot.slane %v1119, 4
    %1122 = vrot.lane.b32.xlu0 %v1121, 112
    %v1123 = vpop.permute.xlu0 %1122
    %v1124 = vsel %vm255, %v1123, 0
    %1126 = vmatpush.msra.mxu0 0.0
    %1127 = vmatpush.msra.mxu0 0.0
    %1128 = vmatpush.msra.mxu0 0.0
    %1129 = vmatpush.msra.mxu0 0.0
    %1130 = vmatpush.msra.mxu0 0.0
    %1131 = vmatpush.msra.mxu0 0.0
    %1132 = vmatpush.msra.mxu0 0.0
    %1133 = vmatpush.msra.mxu0 0.0
    %1134 = vmatpush.msra.mxu0 0.0
    %1135 = vmatpush.msra.mxu0 0.0
    %1136 = vmatpush.msra.mxu0 0.0
    %1137 = vmatpush.msra.mxu0 0.0
    %1138 = vmatpush.msra.mxu0 0.0
    %1139 = vmatpush.msra.mxu0 0.0
    %1140 = vmatpush.msra.mxu0 %v73
    %1141 = vmatpush.msra.mxu0 %v72
    %1142 = vmatmul.f32.gmra.mxu0 %v1124
    %v1143 = vpop.f32.mrf.mxu0
    %v1144 = vadd.f32 %v789, %v1143
    %1145 = vdwg.mxu0
    %v1146 = vadd.f32 %v244, %v1144
    %v1147 = vxor.u32 %v1146, 2147483648
    %v1148 = vmul.f32 %v1147, 1.442695
    %v1149 = vpow.pop %v1148
    %v1150 = vadd.f32 %v1149, 1.0
    %v1151 = vrcp.pop %v1150
    %v1152 = vmul.f32 %v1150, %v1151
    %v1153 = vsub.f32 1.0, %v1152
    %v1154 = vmul.f32 %v1151, %v1153
    %v1155 = vadd.f32 %v1151, %v1154
    %vm1156 = vweird.f32 %v1150
    %vm1157 = vweird.f32 %v1151
    %vm1158 = vmor %vm1156, %vm1157
    %v1159 = vsel %vm1158, %v1151, %v1155
    %v1160 = vand.u32 2147483647, %v1150
    %vm1161 = vcmp.eq.f32.partialorder %v1160, 8.507059e+37
    %v1162 = vand.u32 %v1150, 2147483648
    %v1163 = vor.u32 1.1754944e-38, %v1162
    %v1164 = vsel %vm1161, %v1163, %v1159
    %v1165 = vmul.f32 1.0, %v1164
    %1167 = vrot.lane.b32.xlu0 %v1144, 96
    %v1168 = vpop.permute.xlu0 %1167
    %v1170 = vmul.f32 %v1165, %v1168
    %1172 = vrot.lane.b32.xlu0 %v1170, 32
    %v1173 = vpop.permute.xlu0 %1172
    %v1175 = vadd.f32 %v244, %v1173
    %v1176 = vtanh.pop %v1175
    %v1177 = vsub.f32 1.0, %v1165
    %1179 = vrot.lane.b32.xlu0 %v1176, 112
    %v1180 = vpop.permute.xlu0 %1179
    %v1182 = vmul.f32 %v1177, %v1180
    %v1184 = vmul.f32 %v1165, %v1121
    %v1185 = vadd.f32 %v1182, %v1184
    %1187 = vrot.lane.b32.xlu0 %v1185, 112
    %v1188 = vpop.permute.xlu0 %1187
    %v1189 = vsel %vm255, %v1188, 0
    %1191 = vmatpush.msra.mxu0 0.0
    %1192 = vmatpush.msra.mxu0 0.0
    %1193 = vmatpush.msra.mxu0 0.0
    %1194 = vmatpush.msra.mxu0 0.0
    %1195 = vmatpush.msra.mxu0 0.0
    %1196 = vmatpush.msra.mxu0 0.0
    %1197 = vmatpush.msra.mxu0 0.0
    %1198 = vmatpush.msra.mxu0 0.0
    %1199 = vmatpush.msra.mxu0 0.0
    %1200 = vmatpush.msra.mxu0 0.0
    %1201 = vmatpush.msra.mxu0 0.0
    %1202 = vmatpush.msra.mxu0 0.0
    %1203 = vmatpush.msra.mxu0 0.0
    %1204 = vmatpush.msra.mxu0 0.0
    %1205 = vmatpush.msra.mxu0 %v73
    %1206 = vmatpush.msra.mxu0 %v72
    %1207 = vmatmul.f32.gmra.mxu0 %v1189
    %v1208 = vpop.f32.mrf.mxu0
    %v1209 = vadd.f32 %v789, %v1208
    %1210 = vdwg.mxu0
    %v1212 = vrot.slane %v1209, 4
    %v1214 = vadd.f32 %v241, %v1212
    %v1215 = vxor.u32 %v1214, 2147483648
    %v1216 = vmul.f32 %v1215, 1.442695
    %v1217 = vpow.pop %v1216
    %v1218 = vadd.f32 %v1217, 1.0
    %v1219 = vrcp.pop %v1218
    %v1220 = vmul.f32 %v1218, %v1219
    %v1221 = vsub.f32 1.0, %v1220
    %v1222 = vmul.f32 %v1219, %v1221
    %v1223 = vadd.f32 %v1219, %v1222
    %vm1224 = vweird.f32 %v1218
    %vm1225 = vweird.f32 %v1219
    %vm1226 = vmor %vm1224, %vm1225
    %v1227 = vsel %vm1226, %v1219, %v1223
    %v1228 = vand.u32 2147483647, %v1218
    %vm1229 = vcmp.eq.f32.partialorder %v1228, 8.507059e+37
    %v1230 = vand.u32 %v1218, 2147483648
    %v1231 = vor.u32 1.1754944e-38, %v1230
    %v1232 = vsel %vm1229, %v1231, %v1227
    %v1233 = vmul.f32 1.0, %v1232
    %1234 = vrot.lane.b32.xlu0 %v1212, 96
    %v1235 = vpop.permute.xlu0 %1234
    %v1237 = vmul.f32 %v1233, %v1235
    %1239 = vrot.lane.b32.xlu0 %v1237, 32
    %v1240 = vpop.permute.xlu0 %1239
    %v1242 = vadd.f32 %v241, %v1240
    %v1243 = vtanh.pop %v1242
    %v1244 = vsub.f32 1.0, %v1233
    %1246 = vrot.lane.b32.xlu0 %v1243, 112
    %v1247 = vpop.permute.xlu0 %1246
    %v1249 = vmul.f32 %v1244, %v1247
    %v1250 = vrot.slane %v1185, 4
    %v1252 = vmul.f32 %v1233, %v1250
    %v1253 = vadd.f32 %v1249, %v1252
    %v1255 = vrot.slane %v1253, 4
    %1256 = vrot.lane.b32.xlu0 %v1255, 112
    %v1257 = vpop.permute.xlu0 %1256
    %v1258 = vsel %vm255, %v1257, 0
    %1260 = vmatpush.msra.mxu0 0.0
    %1261 = vmatpush.msra.mxu0 0.0
    %1262 = vmatpush.msra.mxu0 0.0
    %1263 = vmatpush.msra.mxu0 0.0
    %1264 = vmatpush.msra.mxu0 0.0
    %1265 = vmatpush.msra.mxu0 0.0
    %1266 = vmatpush.msra.mxu0 0.0
    %1267 = vmatpush.msra.mxu0 0.0
    %1268 = vmatpush.msra.mxu0 0.0
    %1269 = vmatpush.msra.mxu0 0.0
    %1270 = vmatpush.msra.mxu0 0.0
    %1271 = vmatpush.msra.mxu0 0.0
    %1272 = vmatpush.msra.mxu0 0.0
    %1273 = vmatpush.msra.mxu0 0.0
    %1274 = vmatpush.msra.mxu0 %v73
    %1275 = vmatpush.msra.mxu0 %v72
    %1276 = vmatmul.f32.gmra.mxu0 %v1258
    %v1277 = vpop.f32.mrf.mxu0
    %v1278 = vadd.f32 %v789, %v1277
    %1279 = vdwg.mxu0
    %v1280 = vadd.f32 %v241, %v1278
    %v1281 = vxor.u32 %v1280, 2147483648
    %v1282 = vmul.f32 %v1281, 1.442695
    %v1283 = vpow.pop %v1282
    %v1284 = vadd.f32 %v1283, 1.0
    %v1285 = vrcp.pop %v1284
    %v1286 = vmul.f32 %v1284, %v1285
    %v1287 = vsub.f32 1.0, %v1286
    %v1288 = vmul.f32 %v1285, %v1287
    %v1289 = vadd.f32 %v1285, %v1288
    %vm1290 = vweird.f32 %v1284
    %vm1291 = vweird.f32 %v1285
    %vm1292 = vmor %vm1290, %vm1291
    %v1293 = vsel %vm1292, %v1285, %v1289
    %v1294 = vand.u32 2147483647, %v1284
    %vm1295 = vcmp.eq.f32.partialorder %v1294, 8.507059e+37
    %v1296 = vand.u32 %v1284, 2147483648
    %v1297 = vor.u32 1.1754944e-38, %v1296
    %v1298 = vsel %vm1295, %v1297, %v1293
    %v1299 = vmul.f32 1.0, %v1298
    %1301 = vrot.lane.b32.xlu0 %v1278, 96
    %v1302 = vpop.permute.xlu0 %1301
    %v1304 = vmul.f32 %v1299, %v1302
    %1306 = vrot.lane.b32.xlu0 %v1304, 32
    %v1307 = vpop.permute.xlu0 %1306
    %v1309 = vadd.f32 %v241, %v1307
    %v1310 = vtanh.pop %v1309
    %v1311 = vsub.f32 1.0, %v1299
    %1313 = vrot.lane.b32.xlu0 %v1310, 112
    %v1314 = vpop.permute.xlu0 %1313
    %v1316 = vmul.f32 %v1311, %v1314
    %v1318 = vmul.f32 %v1299, %v1255
    %v1319 = vadd.f32 %v1316, %v1318
    %v1321 = vsel %vm255, %v320, %v1319
    %1322 = vrot.lane.b32.xlu0 %v385, 112
    %v1323 = vpop.permute.xlu0 %1322
    %v1325 = vsel %vm255, %v1323, %v1253
    %v1327 = vsel %vm255, %v454, %v1185
    %1328 = vrot.lane.b32.xlu0 %v519, 112
    %v1329 = vpop.permute.xlu0 %1328
    %v1331 = vsel %vm255, %v1329, %v1119
    %v1333 = vsel %vm255, %v588, %v1051
    %1334 = vrot.lane.b32.xlu0 %v653, 112
    %v1335 = vpop.permute.xlu0 %1334
    %v1337 = vsel %vm255, %v1335, %v985
    %v1339 = vsel %vm255, %v722, %v917
    %1341 = vrot.lane.b32.xlu0 %v787, 112
    %v1342 = vpop.permute.xlu0 %1341
    %v1344 = vsel %vm255, %v1342, %v851
    %v1346 = vrot.slane %v1325, 3
    %v1349 = vrot.slane %v1327, 6
    %v1352 = vrot.slane %v1331, 1
    %v1355 = vrot.slane %v1333, 4
    %v1358 = vrot.slane %v1337, 7
    %v1361 = vrot.slane %v1339, 2
    %v1364 = vrot.slane %v1344, 5
    %v1366 = vsel %vm112, %v1321, %v1346
    %v1367 = vsel %vm114, %v1366, %v1349
    %v1368 = vsel %vm116, %v1367, %v1352
    %v1369 = vsel %vm118, %v1368, %v1355
    %v1370 = vsel %vm120, %v1369, %v1358
    %v1371 = vsel %vm122, %v1370, %v1361
    %v1372 = vsel %vm124, %v1371, %v1364
    %v1374 = vrot.slane %v1321, 1
    %v1376 = vrot.slane %v1325, 4
    %v1378 = vrot.slane %v1327, 7
    %v1380 = vrot.slane %v1331, 2
    %v1382 = vrot.slane %v1333, 5
    %v1384 = vrot.slane %v1339, 3
    %v1386 = vrot.slane %v1344, 6
    %v1388 = vsel %vm112, %v1374, %v1376
    %v1389 = vsel %vm114, %v1388, %v1378
    %v1390 = vsel %vm116, %v1389, %v1380
    %v1391 = vsel %vm118, %v1390, %v1382
    %v1392 = vsel %vm120, %v1391, %v1337
    %v1393 = vsel %vm122, %v1392, %v1384
    %v1394 = vsel %vm124, %v1393, %v1386
    %v1395 = vrot.slane %v1321, 2
    %v1397 = vrot.slane %v1325, 5
    %v1399 = vrot.slane %v1331, 3
    %v1401 = vrot.slane %v1333, 6
    %v1403 = vrot.slane %v1337, 1
    %v1405 = vrot.slane %v1339, 4
    %v1407 = vrot.slane %v1344, 7
    %v1409 = vsel %vm112, %v1395, %v1397
    %v1410 = vsel %vm114, %v1409, %v1327
    %v1411 = vsel %vm116, %v1410, %v1399
    %v1412 = vsel %vm118, %v1411, %v1401
    %v1413 = vsel %vm120, %v1412, %v1403
    %v1414 = vsel %vm122, %v1413, %v1405
    %v1415 = vsel %vm124, %v1414, %v1407
    %v1416 = vrot.slane %v1321, 3
    %v1418 = vrot.slane %v1325, 6
    %v1420 = vrot.slane %v1327, 1
    %v1422 = vrot.slane %v1331, 4
    %v1424 = vrot.slane %v1333, 7
    %v1426 = vrot.slane %v1337, 2
    %v1428 = vrot.slane %v1339, 5
    %v1430 = vsel %vm112, %v1416, %v1418
    %v1431 = vsel %vm114, %v1430, %v1420
    %v1432 = vsel %vm116, %v1431, %v1422
    %v1433 = vsel %vm118, %v1432, %v1424
    %v1434 = vsel %vm120, %v1433, %v1426
    %v1435 = vsel %vm122, %v1434, %v1428
    %v1436 = vsel %vm124, %v1435, %v1344
    %v1438 = vsel %vm178, %v1372, 0
    %1440 = vmatpush.xpose.msra.mxu0 0.0
    %1441 = vmatpush.xpose.msra.mxu0 0.0
    %1442 = vmatpush.xpose.msra.mxu0 0.0
    %1443 = vmatpush.xpose.msra.mxu0 0.0
    %1444 = vmatpush.xpose.msra.mxu0 0.0
    %1445 = vmatpush.xpose.msra.mxu0 0.0
    %1446 = vmatpush.xpose.msra.mxu0 0.0
    %1447 = vmatpush.xpose.msra.mxu0 0.0
    %1448 = vmatpush.xpose.msra.mxu0 0.0
    %1449 = vmatpush.xpose.msra.mxu0 0.0
    %1450 = vmatpush.xpose.msra.mxu0 0.0
    %1451 = vmatpush.xpose.msra.mxu0 0.0
    %1452 = vmatpush.xpose.msra.mxu0 0.0
    %1453 = vmatpush.xpose.msra.mxu0 0.0
    %1454 = vmatpush.xpose.msra.mxu0 0.0
    %1455 = vmatpush.xpose.msra.mxu0 %v1438
    %1456 = vmatmul.f32.gmra.mxu0 %v1438
    %v1457 = vpop.f32.mrf.mxu0
    %v1458 = vadd.f32 0.0, %v1457
    %1459 = vdwg.mxu0
    %v1460 = vmul.f32 %v1458, 0.17677669
    %vm1461 = vcmask 64512
    %v1462 = vsel %vm1461, %v1460, -inf
    %1463 = vmax.xlane.f32.xlu0 %v1462
    %v1464 = vpop.xlane.xlu0 %1463
    %v1465 = vsub.f32 %v1460, %v1464
    %v1466 = vmul.f32 %v1465, 1.442695
    %v1467 = vpow.pop %v1466
    %v1468 = vsel %vm1461, %v1467, 0.0
    %1469 = vadd.xlane.f32.xlu0 %v1468
    %v1470 = vpop.xlane.xlu0 %1469
    %v1471 = vrcp.pop %v1470
    %v1472 = vmul.f32 %v1470, %v1471
    %v1473 = vsub.f32 1.0, %v1472
    %v1474 = vmul.f32 %v1471, %v1473
    %v1475 = vadd.f32 %v1471, %v1474
    %vm1476 = vweird.f32 %v1470
    %vm1477 = vweird.f32 %v1471
    %vm1478 = vmor %vm1476, %vm1477
    %v1479 = vsel %vm1478, %v1471, %v1475
    %v1480 = vand.u32 2147483647, %v1470
    %vm1481 = vcmp.eq.f32.partialorder %v1480, 8.507059e+37
    %v1482 = vand.u32 %v1470, 2147483648
    %v1483 = vor.u32 1.1754944e-38, %v1482
    %v1484 = vsel %vm1481, %v1483, %v1479
    %v1485 = vmul.f32 %v1467, %v1484
    %v1487 = vsel %vm1461, %v1485, 0
    %1489 = vmatpush.msra.mxu0 0.0
    %1490 = vmatpush.msra.mxu0 0.0
    %1491 = vmatpush.msra.mxu0 0.0
    %1492 = vmatpush.msra.mxu0 0.0
    %1493 = vmatpush.msra.mxu0 0.0
    %1494 = vmatpush.msra.mxu0 0.0
    %1495 = vmatpush.msra.mxu0 0.0
    %1496 = vmatpush.msra.mxu0 0.0
    %1497 = vmatpush.msra.mxu0 0.0
    %1498 = vmatpush.msra.mxu0 0.0
    %1499 = vmatpush.msra.mxu0 0.0
    %1500 = vmatpush.msra.mxu0 0.0
    %1501 = vmatpush.msra.mxu0 0.0
    %1502 = vmatpush.msra.mxu0 0.0
    %1503 = vmatpush.msra.mxu0 0.0
    %1504 = vmatpush.msra.mxu0 %v1372
    %1505 = vmatmul.f32.gmra.mxu0 %v1487
    %v1506 = vpop.f32.mrf.mxu0
    %v1507 = vadd.f32 0.0, %v1506
    %1508 = vdwg.mxu0
    %v1510 = vsel %vm178, %v1394, 0
    %1512 = vmatpush.xpose.msra.mxu0 0.0
    %1513 = vmatpush.xpose.msra.mxu0 0.0
    %1514 = vmatpush.xpose.msra.mxu0 0.0
    %1515 = vmatpush.xpose.msra.mxu0 0.0
    %1516 = vmatpush.xpose.msra.mxu0 0.0
    %1517 = vmatpush.xpose.msra.mxu0 0.0
    %1518 = vmatpush.xpose.msra.mxu0 0.0
    %1519 = vmatpush.xpose.msra.mxu0 0.0
    %1520 = vmatpush.xpose.msra.mxu0 0.0
    %1521 = vmatpush.xpose.msra.mxu0 0.0
    %1522 = vmatpush.xpose.msra.mxu0 0.0
    %1523 = vmatpush.xpose.msra.mxu0 0.0
    %1524 = vmatpush.xpose.msra.mxu0 0.0
    %1525 = vmatpush.xpose.msra.mxu0 0.0
    %1526 = vmatpush.xpose.msra.mxu0 0.0
    %1527 = vmatpush.xpose.msra.mxu0 %v1510
    %1528 = vmatmul.f32.gmra.mxu0 %v1510
    %v1529 = vpop.f32.mrf.mxu0
    %v1530 = vadd.f32 0.0, %v1529
    %1531 = vdwg.mxu0
    %v1532 = vmul.f32 %v1530, 0.17677669
    %v1533 = vsel %vm1461, %v1532, -inf
    %1534 = vmax.xlane.f32.xlu0 %v1533
    %v1535 = vpop.xlane.xlu0 %1534
    %v1536 = vsub.f32 %v1532, %v1535
    %v1537 = vmul.f32 %v1536, 1.442695
    %v1538 = vpow.pop %v1537
    %v1539 = vsel %vm1461, %v1538, 0.0
    %1540 = vadd.xlane.f32.xlu0 %v1539
    %v1541 = vpop.xlane.xlu0 %1540
    %v1542 = vrcp.pop %v1541
    %v1543 = vmul.f32 %v1541, %v1542
    %v1544 = vsub.f32 1.0, %v1543
    %v1545 = vmul.f32 %v1542, %v1544
    %v1546 = vadd.f32 %v1542, %v1545
    %vm1547 = vweird.f32 %v1541
    %vm1548 = vweird.f32 %v1542
    %vm1549 = vmor %vm1547, %vm1548
    %v1550 = vsel %vm1549, %v1542, %v1546
    %v1551 = vand.u32 2147483647, %v1541
    %vm1552 = vcmp.eq.f32.partialorder %v1551, 8.507059e+37
    %v1553 = vand.u32 %v1541, 2147483648
    %v1554 = vor.u32 1.1754944e-38, %v1553
    %v1555 = vsel %vm1552, %v1554, %v1550
    %v1556 = vmul.f32 %v1538, %v1555
    %v1558 = vsel %vm1461, %v1556, 0
    %1560 = vmatpush.msra.mxu0 0.0
    %1561 = vmatpush.msra.mxu0 0.0
    %1562 = vmatpush.msra.mxu0 0.0
    %1563 = vmatpush.msra.mxu0 0.0
    %1564 = vmatpush.msra.mxu0 0.0
    %1565 = vmatpush.msra.mxu0 0.0
    %1566 = vmatpush.msra.mxu0 0.0
    %1567 = vmatpush.msra.mxu0 0.0
    %1568 = vmatpush.msra.mxu0 0.0
    %1569 = vmatpush.msra.mxu0 0.0
    %1570 = vmatpush.msra.mxu0 0.0
    %1571 = vmatpush.msra.mxu0 0.0
    %1572 = vmatpush.msra.mxu0 0.0
    %1573 = vmatpush.msra.mxu0 0.0
    %1574 = vmatpush.msra.mxu0 0.0
    %1575 = vmatpush.msra.mxu0 %v1394
    %1576 = vmatmul.f32.gmra.mxu0 %v1558
    %v1577 = vpop.f32.mrf.mxu0
    %v1578 = vadd.f32 0.0, %v1577
    %1579 = vdwg.mxu0
    %v1581 = vsel %vm178, %v1415, 0
    %1583 = vmatpush.xpose.msra.mxu0 0.0
    %1584 = vmatpush.xpose.msra.mxu0 0.0
    %1585 = vmatpush.xpose.msra.mxu0 0.0
    %1586 = vmatpush.xpose.msra.mxu0 0.0
    %1587 = vmatpush.xpose.msra.mxu0 0.0
    %1588 = vmatpush.xpose.msra.mxu0 0.0
    %1589 = vmatpush.xpose.msra.mxu0 0.0
    %1590 = vmatpush.xpose.msra.mxu0 0.0
    %1591 = vmatpush.xpose.msra.mxu0 0.0
    %1592 = vmatpush.xpose.msra.mxu0 0.0
    %1593 = vmatpush.xpose.msra.mxu0 0.0
    %1594 = vmatpush.xpose.msra.mxu0 0.0
    %1595 = vmatpush.xpose.msra.mxu0 0.0
    %1596 = vmatpush.xpose.msra.mxu0 0.0
    %1597 = vmatpush.xpose.msra.mxu0 0.0
    %1598 = vmatpush.xpose.msra.mxu0 %v1581
    %1599 = vmatmul.f32.gmra.mxu0 %v1581
    %v1600 = vpop.f32.mrf.mxu0
    %v1601 = vadd.f32 0.0, %v1600
    %1602 = vdwg.mxu0
    %v1603 = vmul.f32 %v1601, 0.17677669
    %v1604 = vsel %vm1461, %v1603, -inf
    %1605 = vmax.xlane.f32.xlu0 %v1604
    %v1606 = vpop.xlane.xlu0 %1605
    %v1607 = vsub.f32 %v1603, %v1606
    %v1608 = vmul.f32 %v1607, 1.442695
    %v1609 = vpow.pop %v1608
    %v1610 = vsel %vm1461, %v1609, 0.0
    %1611 = vadd.xlane.f32.xlu0 %v1610
    %v1612 = vpop.xlane.xlu0 %1611
    %v1613 = vrcp.pop %v1612
    %v1614 = vmul.f32 %v1612, %v1613
    %v1615 = vsub.f32 1.0, %v1614
    %v1616 = vmul.f32 %v1613, %v1615
    %v1617 = vadd.f32 %v1613, %v1616
    %vm1618 = vweird.f32 %v1612
    %vm1619 = vweird.f32 %v1613
    %vm1620 = vmor %vm1618, %vm1619
    %v1621 = vsel %vm1620, %v1613, %v1617
    %v1622 = vand.u32 2147483647, %v1612
    %vm1623 = vcmp.eq.f32.partialorder %v1622, 8.507059e+37
    %v1624 = vand.u32 %v1612, 2147483648
    %v1625 = vor.u32 1.1754944e-38, %v1624
    %v1626 = vsel %vm1623, %v1625, %v1621
    %v1627 = vmul.f32 %v1609, %v1626
    %v1629 = vsel %vm1461, %v1627, 0
    %1631 = vmatpush.msra.mxu0 0.0
    %1632 = vmatpush.msra.mxu0 0.0
    %1633 = vmatpush.msra.mxu0 0.0
    %1634 = vmatpush.msra.mxu0 0.0
    %1635 = vmatpush.msra.mxu0 0.0
    %1636 = vmatpush.msra.mxu0 0.0
    %1637 = vmatpush.msra.mxu0 0.0
    %1638 = vmatpush.msra.mxu0 0.0
    %1639 = vmatpush.msra.mxu0 0.0
    %1640 = vmatpush.msra.mxu0 0.0
    %1641 = vmatpush.msra.mxu0 0.0
    %1642 = vmatpush.msra.mxu0 0.0
    %1643 = vmatpush.msra.mxu0 0.0
    %1644 = vmatpush.msra.mxu0 0.0
    %1645 = vmatpush.msra.mxu0 0.0
    %1646 = vmatpush.msra.mxu0 %v1415
    %1647 = vmatmul.f32.gmra.mxu0 %v1629
    %v1648 = vpop.f32.mrf.mxu0
    %v1649 = vadd.f32 0.0, %v1648
    %1650 = vdwg.mxu0
    %v1652 = vsel %vm178, %v1436, 0
    %1654 = vmatpush.xpose.msra.mxu0 0.0
    %1655 = vmatpush.xpose.msra.mxu0 0.0
    %1656 = vmatpush.xpose.msra.mxu0 0.0
    %1657 = vmatpush.xpose.msra.mxu0 0.0
    %1658 = vmatpush.xpose.msra.mxu0 0.0
    %1659 = vmatpush.xpose.msra.mxu0 0.0
    %1660 = vmatpush.xpose.msra.mxu0 0.0
    %1661 = vmatpush.xpose.msra.mxu0 0.0
    %1662 = vmatpush.xpose.msra.mxu0 0.0
    %1663 = vmatpush.xpose.msra.mxu0 0.0
    %1664 = vmatpush.xpose.msra.mxu0 0.0
    %1665 = vmatpush.xpose.msra.mxu0 0.0
    %1666 = vmatpush.xpose.msra.mxu0 0.0
    %1667 = vmatpush.xpose.msra.mxu0 0.0
    %1668 = vmatpush.xpose.msra.mxu0 0.0
    %1669 = vmatpush.xpose.msra.mxu0 %v1652
    %1670 = vmatmul.f32.gmra.mxu0 %v1652
    %v1671 = vpop.f32.mrf.mxu0
    %v1672 = vadd.f32 0.0, %v1671
    %1673 = vdwg.mxu0
    %v1674 = vmul.f32 %v1672, 0.17677669
    %v1675 = vsel %vm1461, %v1674, -inf
    %1676 = vmax.xlane.f32.xlu0 %v1675
    %v1677 = vpop.xlane.xlu0 %1676
    %v1678 = vsub.f32 %v1674, %v1677
    %v1679 = vmul.f32 %v1678, 1.442695
    %v1680 = vpow.pop %v1679
    %v1681 = vsel %vm1461, %v1680, 0.0
    %1682 = vadd.xlane.f32.xlu0 %v1681
    %v1683 = vpop.xlane.xlu0 %1682
    %v1684 = vrcp.pop %v1683
    %v1685 = vmul.f32 %v1683, %v1684
    %v1686 = vsub.f32 1.0, %v1685
    %v1687 = vmul.f32 %v1684, %v1686
    %v1688 = vadd.f32 %v1684, %v1687
    %vm1689 = vweird.f32 %v1683
    %vm1690 = vweird.f32 %v1684
    %vm1691 = vmor %vm1689, %vm1690
    %v1692 = vsel %vm1691, %v1684, %v1688
    %v1693 = vand.u32 2147483647, %v1683
    %vm1694 = vcmp.eq.f32.partialorder %v1693, 8.507059e+37
    %v1695 = vand.u32 %v1683, 2147483648
    %v1696 = vor.u32 1.1754944e-38, %v1695
    %v1697 = vsel %vm1694, %v1696, %v1692
    %v1698 = vmul.f32 %v1680, %v1697
    %v1700 = vsel %vm1461, %v1698, 0
    %1702 = vmatpush.msra.mxu0 0.0
    %1703 = vmatpush.msra.mxu0 0.0
    %1704 = vmatpush.msra.mxu0 0.0
    %1705 = vmatpush.msra.mxu0 0.0
    %1706 = vmatpush.msra.mxu0 0.0
    %1707 = vmatpush.msra.mxu0 0.0
    %1708 = vmatpush.msra.mxu0 0.0
    %1709 = vmatpush.msra.mxu0 0.0
    %1710 = vmatpush.msra.mxu0 0.0
    %1711 = vmatpush.msra.mxu0 0.0
    %1712 = vmatpush.msra.mxu0 0.0
    %1713 = vmatpush.msra.mxu0 0.0
    %1714 = vmatpush.msra.mxu0 0.0
    %1715 = vmatpush.msra.mxu0 0.0
    %1716 = vmatpush.msra.mxu0 0.0
    %1717 = vmatpush.msra.mxu0 %v1436
    %1718 = vmatmul.f32.gmra.mxu0 %v1700
    %v1719 = vpop.f32.mrf.mxu0
    %v1720 = vadd.f32 0.0, %v1719
    %1721 = vdwg.mxu0
    %v1722 = vld [vmem:[%s6] sm:$0xff]
    %v1723 = vld [vmem:[%s6 + $0x8] sm:$0xff]
    %v1724 = vld [vmem:[%s6 + $0x10] sm:$0xff]
    %v1725 = vld [vmem:[%s6 + $0x18] sm:$0xff]
    %v1727 = vsel %vm178, %v1507, 0
    %1729 = vmatpush.msra.mxu0 0.0
    %1730 = vmatpush.msra.mxu0 0.0
    %1731 = vmatpush.msra.mxu0 0.0
    %1732 = vmatpush.msra.mxu0 0.0
    %1733 = vmatpush.msra.mxu0 0.0
    %1734 = vmatpush.msra.mxu0 0.0
    %1735 = vmatpush.msra.mxu0 0.0
    %1736 = vmatpush.msra.mxu0 0.0
    %1737 = vmatpush.msra.mxu0 0.0
    %1738 = vmatpush.msra.mxu0 0.0
    %1739 = vmatpush.msra.mxu0 0.0
    %1740 = vmatpush.msra.mxu0 0.0
    %1741 = vmatpush.msra.mxu0 %v1725
    %1742 = vmatpush.msra.mxu0 %v1724
    %1743 = vmatpush.msra.mxu0 %v1723
    %1744 = vmatpush.msra.mxu0 %v1722
    %1745 = vmatmul.f32.gmra.mxu0 %v1727
    %v1746 = vpop.f32.mrf.mxu0
    %v1747 = vadd.f32 0.0, %v1746
    %1748 = vdwg.mxu0
    %v1750 = vsel %vm178, %v1747, 0
    %v1753 = vsel %vm178, %v1649, 0
    %1755 = vmatpush.xpose.msra.mxu0 0.0
    %1756 = vmatpush.xpose.msra.mxu0 0.0
    %1757 = vmatpush.xpose.msra.mxu0 0.0
    %1758 = vmatpush.xpose.msra.mxu0 0.0
    %1759 = vmatpush.xpose.msra.mxu0 0.0
    %1760 = vmatpush.xpose.msra.mxu0 0.0
    %1761 = vmatpush.xpose.msra.mxu0 0.0
    %1762 = vmatpush.xpose.msra.mxu0 0.0
    %1763 = vmatpush.xpose.msra.mxu0 0.0
    %1764 = vmatpush.xpose.msra.mxu0 0.0
    %1765 = vmatpush.xpose.msra.mxu0 0.0
    %1766 = vmatpush.xpose.msra.mxu0 0.0
    %1767 = vmatpush.xpose.msra.mxu0 0.0
    %1768 = vmatpush.xpose.msra.mxu0 0.0
    %1769 = vmatpush.xpose.msra.mxu0 0.0
    %1770 = vmatpush.xpose.msra.mxu0 %v1753
    %1771 = vmatmul.f32.gmra.mxu0 %v1750
    %v1772 = vpop.f32.mrf.mxu0
    %v1773 = vadd.f32 0.0, %v1772
    %1774 = vdwg.mxu0
    %v1775 = vsel %vm1461, %v1773, -inf
    %1776 = vmax.xlane.f32.xlu0 %v1775
    %v1777 = vpop.xlane.xlu0 %1776
    %v1778 = vsub.f32 %v1773, %v1777
    %v1779 = vmul.f32 %v1778, 1.442695
    %v1780 = vpow.pop %v1779
    %v1781 = vsel %vm1461, %v1780, 0.0
    %1782 = vadd.xlane.f32.xlu0 %v1781
    %v1783 = vpop.xlane.xlu0 %1782
    %v1784 = vrcp.pop %v1783
    %v1785 = vmul.f32 %v1783, %v1784
    %v1786 = vsub.f32 1.0, %v1785
    %v1787 = vmul.f32 %v1784, %v1786
    %v1788 = vadd.f32 %v1784, %v1787
    %vm1789 = vweird.f32 %v1783
    %vm1790 = vweird.f32 %v1784
    %vm1791 = vmor %vm1789, %vm1790
    %v1792 = vsel %vm1791, %v1784, %v1788
    %v1793 = vand.u32 2147483647, %v1783
    %vm1794 = vcmp.eq.f32.partialorder %v1793, 8.507059e+37
    %v1795 = vand.u32 %v1783, 2147483648
    %v1796 = vor.u32 1.1754944e-38, %v1795
    %v1797 = vsel %vm1794, %v1796, %v1792
    %v1798 = vmul.f32 %v1780, %v1797
    %v1800 = vsel %vm1461, %v1798, 0
    %1802 = vmatpush.msra.mxu0 0.0
    %1803 = vmatpush.msra.mxu0 0.0
    %1804 = vmatpush.msra.mxu0 0.0
    %1805 = vmatpush.msra.mxu0 0.0
    %1806 = vmatpush.msra.mxu0 0.0
    %1807 = vmatpush.msra.mxu0 0.0
    %1808 = vmatpush.msra.mxu0 0.0
    %1809 = vmatpush.msra.mxu0 0.0
    %1810 = vmatpush.msra.mxu0 0.0
    %1811 = vmatpush.msra.mxu0 0.0
    %1812 = vmatpush.msra.mxu0 0.0
    %1813 = vmatpush.msra.mxu0 0.0
    %1814 = vmatpush.msra.mxu0 0.0
    %1815 = vmatpush.msra.mxu0 0.0
    %1816 = vmatpush.msra.mxu0 0.0
    %1817 = vmatpush.msra.mxu0 %v57
    %1818 = vmatmul.f32.gmra.mxu0 %v1800
    %v1819 = vpop.f32.mrf.mxu0
    %v1820 = vadd.f32 0.0, %v1819
    %1821 = vdwg.mxu0
    %v1823 = vsel %vm178, %v1578, 0
    %1825 = vmatpush.msra.mxu0 0.0
    %1826 = vmatpush.msra.mxu0 0.0
    %1827 = vmatpush.msra.mxu0 0.0
    %1828 = vmatpush.msra.mxu0 0.0
    %1829 = vmatpush.msra.mxu0 0.0
    %1830 = vmatpush.msra.mxu0 0.0
    %1831 = vmatpush.msra.mxu0 0.0
    %1832 = vmatpush.msra.mxu0 0.0
    %1833 = vmatpush.msra.mxu0 0.0
    %1834 = vmatpush.msra.mxu0 0.0
    %1835 = vmatpush.msra.mxu0 0.0
    %1836 = vmatpush.msra.mxu0 0.0
    %1837 = vmatpush.msra.mxu0 %v1725
    %1838 = vmatpush.msra.mxu0 %v1724
    %1839 = vmatpush.msra.mxu0 %v1723
    %1840 = vmatpush.msra.mxu0 %v1722
    %1841 = vmatmul.f32.gmra.mxu0 %v1823
    %v1842 = vpop.f32.mrf.mxu0
    %v1843 = vadd.f32 0.0, %v1842
    %1844 = vdwg.mxu0
    %v1846 = vsel %vm178, %v1843, 0
    %v1849 = vsel %vm178, %v1720, 0
    %1851 = vmatpush.xpose.msra.mxu0 0.0
    %1852 = vmatpush.xpose.msra.mxu0 0.0
    %1853 = vmatpush.xpose.msra.mxu0 0.0
    %1854 = vmatpush.xpose.msra.mxu0 0.0
    %1855 = vmatpush.xpose.msra.mxu0 0.0
    %1856 = vmatpush.xpose.msra.mxu0 0.0
    %1857 = vmatpush.xpose.msra.mxu0 0.0
    %1858 = vmatpush.xpose.msra.mxu0 0.0
    %1859 = vmatpush.xpose.msra.mxu0 0.0
    %1860 = vmatpush.xpose.msra.mxu0 0.0
    %1861 = vmatpush.xpose.msra.mxu0 0.0
    %1862 = vmatpush.xpose.msra.mxu0 0.0
    %1863 = vmatpush.xpose.msra.mxu0 0.0
    %1864 = vmatpush.xpose.msra.mxu0 0.0
    %1865 = vmatpush.xpose.msra.mxu0 0.0
    %1866 = vmatpush.xpose.msra.mxu0 %v1849
    %1867 = vmatmul.f32.gmra.mxu0 %v1846
    %v1868 = vpop.f32.mrf.mxu0
    %v1869 = vadd.f32 0.0, %v1868
    %1870 = vdwg.mxu0
    %v1871 = vsel %vm1461, %v1869, -inf
    %1872 = vmax.xlane.f32.xlu0 %v1871
    %v1873 = vpop.xlane.xlu0 %1872
    %v1874 = vsub.f32 %v1869, %v1873
    %v1875 = vmul.f32 %v1874, 1.442695
    %v1876 = vpow.pop %v1875
    %v1877 = vsel %vm1461, %v1876, 0.0
    %1878 = vadd.xlane.f32.xlu0 %v1877
    %v1879 = vpop.xlane.xlu0 %1878
    %v1880 = vrcp.pop %v1879
    %v1881 = vmul.f32 %v1879, %v1880
    %v1882 = vsub.f32 1.0, %v1881
    %v1883 = vmul.f32 %v1880, %v1882
    %v1884 = vadd.f32 %v1880, %v1883
    %vm1885 = vweird.f32 %v1879
    %vm1886 = vweird.f32 %v1880
    %vm1887 = vmor %vm1885, %vm1886
    %v1888 = vsel %vm1887, %v1880, %v1884
    %v1889 = vand.u32 2147483647, %v1879
    %vm1890 = vcmp.eq.f32.partialorder %v1889, 8.507059e+37
    %v1891 = vand.u32 %v1879, 2147483648
    %v1892 = vor.u32 1.1754944e-38, %v1891
    %v1893 = vsel %vm1890, %v1892, %v1888
    %v1894 = vmul.f32 %v1876, %v1893
    %v1896 = vsel %vm1461, %v1894, 0
    %1898 = vmatpush.msra.mxu0 0.0
    %1899 = vmatpush.msra.mxu0 0.0
    %1900 = vmatpush.msra.mxu0 0.0
    %1901 = vmatpush.msra.mxu0 0.0
    %1902 = vmatpush.msra.mxu0 0.0
    %1903 = vmatpush.msra.mxu0 0.0
    %1904 = vmatpush.msra.mxu0 0.0
    %1905 = vmatpush.msra.mxu0 0.0
    %1906 = vmatpush.msra.mxu0 0.0
    %1907 = vmatpush.msra.mxu0 0.0
    %1908 = vmatpush.msra.mxu0 0.0
    %1909 = vmatpush.msra.mxu0 0.0
    %1910 = vmatpush.msra.mxu0 0.0
    %1911 = vmatpush.msra.mxu0 0.0
    %1912 = vmatpush.msra.mxu0 0.0
    %1913 = vmatpush.msra.mxu0 %v59
    %1914 = vmatmul.f32.gmra.mxu0 %v1896
    %v1915 = vpop.f32.mrf.mxu0
    %v1916 = vadd.f32 0.0, %v1915
    %1917 = vdwg.mxu0
    %1918 = vmatpush.msra.mxu0 0.0
    %1919 = vmatpush.msra.mxu0 0.0
    %1920 = vmatpush.msra.mxu0 0.0
    %1921 = vmatpush.msra.mxu0 0.0
    %1922 = vmatpush.msra.mxu0 0.0
    %1923 = vmatpush.msra.mxu0 0.0
    %1924 = vmatpush.msra.mxu0 0.0
    %1925 = vmatpush.msra.mxu0 0.0
    %1926 = vmatpush.msra.mxu0 0.0
    %1927 = vmatpush.msra.mxu0 0.0
    %1928 = vmatpush.msra.mxu0 0.0
    %1929 = vmatpush.msra.mxu0 0.0
    %1930 = vmatpush.msra.mxu0 %v1725
    %1931 = vmatpush.msra.mxu0 %v1724
    %1932 = vmatpush.msra.mxu0 %v1723
    %1933 = vmatpush.msra.mxu0 %v1722
    %1934 = vmatmul.f32.gmra.mxu0 %v1753
    %v1935 = vpop.f32.mrf.mxu0
    %v1936 = vadd.f32 0.0, %v1935
    %1937 = vdwg.mxu0
    %v1939 = vsel %vm178, %v1936, 0
    %1941 = vmatpush.xpose.msra.mxu0 0.0
    %1942 = vmatpush.xpose.msra.mxu0 0.0
    %1943 = vmatpush.xpose.msra.mxu0 0.0
    %1944 = vmatpush.xpose.msra.mxu0 0.0
    %1945 = vmatpush.xpose.msra.mxu0 0.0
    %1946 = vmatpush.xpose.msra.mxu0 0.0
    %1947 = vmatpush.xpose.msra.mxu0 0.0
    %1948 = vmatpush.xpose.msra.mxu0 0.0
    %1949 = vmatpush.xpose.msra.mxu0 0.0
    %1950 = vmatpush.xpose.msra.mxu0 0.0
    %1951 = vmatpush.xpose.msra.mxu0 0.0
    %1952 = vmatpush.xpose.msra.mxu0 0.0
    %1953 = vmatpush.xpose.msra.mxu0 0.0
    %1954 = vmatpush.xpose.msra.mxu0 0.0
    %1955 = vmatpush.xpose.msra.mxu0 0.0
    %1956 = vmatpush.xpose.msra.mxu0 %v1727
    %1957 = vmatmul.f32.gmra.mxu0 %v1939
    %v1958 = vpop.f32.mrf.mxu0
    %v1959 = vadd.f32 0.0, %v1958
    %1960 = vdwg.mxu0
    %v1961 = vsel %vm1461, %v1959, -inf
    %1962 = vmax.xlane.f32.xlu0 %v1961
    %v1963 = vpop.xlane.xlu0 %1962
    %v1964 = vsub.f32 %v1959, %v1963
    %v1965 = vmul.f32 %v1964, 1.442695
    %v1966 = vpow.pop %v1965
    %v1967 = vsel %vm1461, %v1966, 0.0
    %1968 = vadd.xlane.f32.xlu0 %v1967
    %v1969 = vpop.xlane.xlu0 %1968
    %v1970 = vrcp.pop %v1969
    %v1971 = vmul.f32 %v1969, %v1970
    %v1972 = vsub.f32 1.0, %v1971
    %v1973 = vmul.f32 %v1970, %v1972
    %v1974 = vadd.f32 %v1970, %v1973
    %vm1975 = vweird.f32 %v1969
    %vm1976 = vweird.f32 %v1970
    %vm1977 = vmor %vm1975, %vm1976
    %v1978 = vsel %vm1977, %v1970, %v1974
    %v1979 = vand.u32 2147483647, %v1969
    %vm1980 = vcmp.eq.f32.partialorder %v1979, 8.507059e+37
    %v1981 = vand.u32 %v1969, 2147483648
    %v1982 = vor.u32 1.1754944e-38, %v1981
    %v1983 = vsel %vm1980, %v1982, %v1978
    %v1984 = vmul.f32 %v1966, %v1983
    %v1986 = vsel %vm1461, %v1984, 0
    %1988 = vmatpush.msra.mxu0 0.0
    %1989 = vmatpush.msra.mxu0 0.0
    %1990 = vmatpush.msra.mxu0 0.0
    %1991 = vmatpush.msra.mxu0 0.0
    %1992 = vmatpush.msra.mxu0 0.0
    %1993 = vmatpush.msra.mxu0 0.0
    %1994 = vmatpush.msra.mxu0 0.0
    %1995 = vmatpush.msra.mxu0 0.0
    %1996 = vmatpush.msra.mxu0 0.0
    %1997 = vmatpush.msra.mxu0 0.0
    %1998 = vmatpush.msra.mxu0 0.0
    %1999 = vmatpush.msra.mxu0 0.0
    %2000 = vmatpush.msra.mxu0 0.0
    %2001 = vmatpush.msra.mxu0 0.0
    %2002 = vmatpush.msra.mxu0 0.0
    %2003 = vmatpush.msra.mxu0 %v54
    %2004 = vmatmul.f32.gmra.mxu0 %v1986
    %v2005 = vpop.f32.mrf.mxu0
    %v2006 = vadd.f32 0.0, %v2005
    %2007 = vdwg.mxu0
    %2008 = vmatpush.msra.mxu0 0.0
    %2009 = vmatpush.msra.mxu0 0.0
    %2010 = vmatpush.msra.mxu0 0.0
    %2011 = vmatpush.msra.mxu0 0.0
    %2012 = vmatpush.msra.mxu0 0.0
    %2013 = vmatpush.msra.mxu0 0.0
    %2014 = vmatpush.msra.mxu0 0.0
    %2015 = vmatpush.msra.mxu0 0.0
    %2016 = vmatpush.msra.mxu0 0.0
    %2017 = vmatpush.msra.mxu0 0.0
    %2018 = vmatpush.msra.mxu0 0.0
    %2019 = vmatpush.msra.mxu0 0.0
    %2020 = vmatpush.msra.mxu0 %v1725
    %2021 = vmatpush.msra.mxu0 %v1724
    %2022 = vmatpush.msra.mxu0 %v1723
    %2023 = vmatpush.msra.mxu0 %v1722
    %2024 = vmatmul.f32.gmra.mxu0 %v1849
    %v2025 = vpop.f32.mrf.mxu0
    %v2026 = vadd.f32 0.0, %v2025
    %2027 = vdwg.mxu0
    %v2029 = vsel %vm178, %v2026, 0
    %2031 = vmatpush.xpose.msra.mxu0 0.0
    %2032 = vmatpush.xpose.msra.mxu0 0.0
    %2033 = vmatpush.xpose.msra.mxu0 0.0
    %2034 = vmatpush.xpose.msra.mxu0 0.0
    %2035 = vmatpush.xpose.msra.mxu0 0.0
    %2036 = vmatpush.xpose.msra.mxu0 0.0
    %2037 = vmatpush.xpose.msra.mxu0 0.0
    %2038 = vmatpush.xpose.msra.mxu0 0.0
    %2039 = vmatpush.xpose.msra.mxu0 0.0
    %2040 = vmatpush.xpose.msra.mxu0 0.0
    %2041 = vmatpush.xpose.msra.mxu0 0.0
    %2042 = vmatpush.xpose.msra.mxu0 0.0
    %2043 = vmatpush.xpose.msra.mxu0 0.0
    %2044 = vmatpush.xpose.msra.mxu0 0.0
    %2045 = vmatpush.xpose.msra.mxu0 0.0
    %2046 = vmatpush.xpose.msra.mxu0 %v1823
    %2047 = vmatmul.f32.gmra.mxu0 %v2029
    %v2048 = vpop.f32.mrf.mxu0
    %v2049 = vadd.f32 0.0, %v2048
    %2050 = vdwg.mxu0
    %v2051 = vsel %vm1461, %v2049, -inf
    %2052 = vmax.xlane.f32.xlu0 %v2051
    %v2053 = vpop.xlane.xlu0 %2052
    %v2054 = vsub.f32 %v2049, %v2053
    %v2055 = vmul.f32 %v2054, 1.442695
    %v2056 = vpow.pop %v2055
    %v2057 = vsel %vm1461, %v2056, 0.0
    %2058 = vadd.xlane.f32.xlu0 %v2057
    %v2059 = vpop.xlane.xlu0 %2058
    %v2060 = vrcp.pop %v2059
    %v2061 = vmul.f32 %v2059, %v2060
    %v2062 = vsub.f32 1.0, %v2061
    %v2063 = vmul.f32 %v2060, %v2062
    %v2064 = vadd.f32 %v2060, %v2063
    %vm2065 = vweird.f32 %v2059
    %vm2066 = vweird.f32 %v2060
    %vm2067 = vmor %vm2065, %vm2066
    %v2068 = vsel %vm2067, %v2060, %v2064
    %v2069 = vand.u32 2147483647, %v2059
    %vm2070 = vcmp.eq.f32.partialorder %v2069, 8.507059e+37
    %v2071 = vand.u32 %v2059, 2147483648
    %v2072 = vor.u32 1.1754944e-38, %v2071
    %v2073 = vsel %vm2070, %v2072, %v2068
    %v2074 = vmul.f32 %v2056, %v2073
    %v2076 = vsel %vm1461, %v2074, 0
    %2078 = vmatpush.msra.mxu0 0.0
    %2079 = vmatpush.msra.mxu0 0.0
    %2080 = vmatpush.msra.mxu0 0.0
    %2081 = vmatpush.msra.mxu0 0.0
    %2082 = vmatpush.msra.mxu0 0.0
    %2083 = vmatpush.msra.mxu0 0.0
    %2084 = vmatpush.msra.mxu0 0.0
    %2085 = vmatpush.msra.mxu0 0.0
    %2086 = vmatpush.msra.mxu0 0.0
    %2087 = vmatpush.msra.mxu0 0.0
    %2088 = vmatpush.msra.mxu0 0.0
    %2089 = vmatpush.msra.mxu0 0.0
    %2090 = vmatpush.msra.mxu0 0.0
    %2091 = vmatpush.msra.mxu0 0.0
    %2092 = vmatpush.msra.mxu0 0.0
    %2093 = vmatpush.msra.mxu0 %v56
    %2094 = vmatmul.f32.gmra.mxu0 %v2076
    %v2095 = vpop.f32.mrf.mxu0
    %v2096 = vadd.f32 0.0, %v2095
    %2097 = vdwg.mxu0
    %v2098 = vsub.f32 %v1507, %v1820
    %v2099 = vsub.f32 %v1578, %v1916
    %v2100 = vsub.f32 %v1649, %v2006
    %v2101 = vsub.f32 %v1720, %v2096
    %v2102 = vmul.f32 %v1507, %v1820
    %v2103 = vmul.f32 %v1578, %v1916
    %v2104 = vmul.f32 %v1649, %v2006
    %v2105 = vmul.f32 %v1720, %v2096
    %2110 = vrot.lane.b32.xlu0 %v1820, 32
    %v2111 = vpop.permute.xlu0 %2110
    %2112 = vrot.lane.b32.xlu0 %v1916, 32
    %v2113 = vpop.permute.xlu0 %2112
    %2114 = vrot.lane.b32.xlu0 %v2006, 32
    %v2115 = vpop.permute.xlu0 %2114
    %2116 = vrot.lane.b32.xlu0 %v2096, 32
    %v2117 = vpop.permute.xlu0 %2116
    %2126 = vrot.lane.b32.xlu0 %v2098, 64
    %v2127 = vpop.permute.xlu0 %2126
    %2128 = vrot.lane.b32.xlu0 %v2099, 64
    %v2129 = vpop.permute.xlu0 %2128
    %2130 = vrot.lane.b32.xlu0 %v2100, 64
    %v2131 = vpop.permute.xlu0 %2130
    %2132 = vrot.lane.b32.xlu0 %v2101, 64
    %v2133 = vpop.permute.xlu0 %2132
    %2142 = vrot.lane.b32.xlu0 %v2102, 96
    %v2143 = vpop.permute.xlu0 %2142
    %2144 = vrot.lane.b32.xlu0 %v2103, 96
    %v2145 = vpop.permute.xlu0 %2144
    %2146 = vrot.lane.b32.xlu0 %v2104, 96
    %v2147 = vpop.permute.xlu0 %2146
    %2148 = vrot.lane.b32.xlu0 %v2105, 96
    %v2149 = vpop.permute.xlu0 %2148
    %v2154 = vsel %vm178, %v1507, %v2111
    %v2155 = vsel %vm178, %v1578, %v2113
    %v2156 = vsel %vm178, %v1649, %v2115
    %v2157 = vsel %vm178, %v1720, %v2117
    %vm2158 = vcmask 523264
    %v2159 = vsel %vm2158, %v2154, %v2127
    %v2160 = vsel %vm2158, %v2155, %v2129
    %v2161 = vsel %vm2158, %v2156, %v2131
    %v2162 = vsel %vm2158, %v2157, %v2133
    %vm2163 = vcmask 785408
    %v2164 = vsel %vm2163, %v2159, %v2143
    %v2165 = vsel %vm2163, %v2160, %v2145
    %v2166 = vsel %vm2163, %v2161, %v2147
    %v2167 = vsel %vm2163, %v2162, %v2149
    %v2168 = vld [vmem:[%s7] sm:$0xff]
    %v2169 = vld [vmem:[%s7 + $0x8] sm:$0xff]
    %v2170 = vld [vmem:[%s7 + $0x10] sm:$0xff]
    %v2171 = vld [vmem:[%s7 + $0x18] sm:$0xff]
    %v2172 = vld [vmem:[%s7 + $0x20] sm:$0xff]
    %v2173 = vld [vmem:[%s7 + $0x28] sm:$0xff]
    %v2174 = vld [vmem:[%s7 + $0x30] sm:$0xff]
    %v2175 = vld [vmem:[%s7 + $0x38] sm:$0xff]
    %v2176 = vld [vmem:[%s7 + $0x40] sm:$0xff]
    %v2177 = vld [vmem:[%s7 + $0x48] sm:$0xff]
    %v2178 = vld [vmem:[%s7 + $0x50] sm:$0xff]
    %v2179 = vld [vmem:[%s7 + $0x58] sm:$0xff]
    %v2180 = vld [vmem:[%s7 + $0x60] sm:$0xff]
    %v2181 = vld [vmem:[%s7 + $0x68] sm:$0xff]
    %v2182 = vld [vmem:[%s7 + $0x70] sm:$0xff]
    %v2183 = vld [vmem:[%s7 + $0x78] sm:$0xff]
    %v2184 = vld [vmem:[%s8] sm:$0x1]
    %v2186 = vperm.slane %v2184, 0
    %2188 = vmatpush.msra.mxu0 %v2183
    %2189 = vmatpush.msra.mxu0 %v2182
    %2190 = vmatpush.msra.mxu0 %v2181
    %2191 = vmatpush.msra.mxu0 %v2180
    %2192 = vmatpush.msra.mxu0 %v2179
    %2193 = vmatpush.msra.mxu0 %v2178
    %2194 = vmatpush.msra.mxu0 %v2177
    %2195 = vmatpush.msra.mxu0 %v2176
    %2196 = vmatpush.msra.mxu0 %v2175
    %2197 = vmatpush.msra.mxu0 %v2174
    %2198 = vmatpush.msra.mxu0 %v2173
    %2199 = vmatpush.msra.mxu0 %v2172
    %2200 = vmatpush.msra.mxu0 %v2171
    %2201 = vmatpush.msra.mxu0 %v2170
    %2202 = vmatpush.msra.mxu0 %v2169
    %2203 = vmatpush.msra.mxu0 %v2168
    %2204 = vmatmul.f32.gmra.mxu0 %v2164
    %v2205 = vpop.f32.mrf.mxu0
    %v2206 = vadd.f32 %v2186, %v2205
    %2207 = vmatmul.f32.gmra.mxu0 %v2165
    %v2208 = vpop.f32.mrf.mxu0
    %v2209 = vadd.f32 %v2186, %v2208
    %2210 = vmatmul.f32.gmra.mxu0 %v2166
    %v2211 = vpop.f32.mrf.mxu0
    %v2212 = vadd.f32 %v2186, %v2211
    %2213 = vmatmul.f32.gmra.mxu0 %v2167
    %v2214 = vpop.f32.mrf.mxu0
    %v2215 = vadd.f32 %v2186, %v2214
    %2216 = vdwg.mxu0
    %v2217 = vmax.f32 %v2206, 0.0
    %v2218 = vmax.f32 %v2209, 0.0
    %v2219 = vmax.f32 %v2212, 0.0
    %v2220 = vmax.f32 %v2215, 0.0
    %2225 = vrot.lane.b32.xlu0 %v2217, 32
    %v2226 = vpop.permute.xlu0 %2225
    %2227 = vrot.lane.b32.xlu0 %v2218, 32
    %v2228 = vpop.permute.xlu0 %2227
    %2229 = vrot.lane.b32.xlu0 %v2219, 32
    %v2230 = vpop.permute.xlu0 %2229
    %2231 = vrot.lane.b32.xlu0 %v2220, 32
    %v2232 = vpop.permute.xlu0 %2231
    %v2237 = vsel %vm178, %v54, %v2226
    %v2238 = vsel %vm178, %v56, %v2228
    %v2239 = vsel %vm178, %v57, %v2230
    %v2240 = vsel %vm178, %v59, %v2232
    %v2241 = vld [vmem:[%s9] sm:$0xff]
    %v2242 = vld [vmem:[%s9 + $0x8] sm:$0xff]
    %v2243 = vld [vmem:[%s9 + $0x10] sm:$0xff]
    %v2244 = vld [vmem:[%s9 + $0x18] sm:$0xff]
    %v2245 = vld [vmem:[%s9 + $0x20] sm:$0xff]
    %v2246 = vld [vmem:[%s9 + $0x28] sm:$0xff]
    %v2247 = vld [vmem:[%s9 + $0x30] sm:$0xff]
    %v2248 = vld [vmem:[%s9 + $0x38] sm:$0xff]
    %v2249 = vld [vmem:[%s10] sm:$0x1]
    %v2251 = vperm.slane %v2249, 0
    %v2254 = vsel %vm2158, %v2237, 0
    %v2257 = vsel %vm2158, %v2238, 0
    %v2260 = vsel %vm2158, %v2239, 0
    %v2263 = vsel %vm2158, %v2240, 0
    %2265 = vmatpush.msra.mxu0 0.0
    %2266 = vmatpush.msra.mxu0 0.0
    %2267 = vmatpush.msra.mxu0 0.0
    %2268 = vmatpush.msra.mxu0 0.0
    %2269 = vmatpush.msra.mxu0 0.0
    %2270 = vmatpush.msra.mxu0 0.0
    %2271 = vmatpush.msra.mxu0 0.0
    %2272 = vmatpush.msra.mxu0 0.0
    %2273 = vmatpush.msra.mxu0 %v2248
    %2274 = vmatpush.msra.mxu0 %v2247
    %2275 = vmatpush.msra.mxu0 %v2246
    %2276 = vmatpush.msra.mxu0 %v2245
    %2277 = vmatpush.msra.mxu0 %v2244
    %2278 = vmatpush.msra.mxu0 %v2243
    %2279 = vmatpush.msra.mxu0 %v2242
    %2280 = vmatpush.msra.mxu0 %v2241
    %2281 = vmatmul.f32.gmra.mxu0 %v2254
    %v2282 = vpop.f32.mrf.mxu0
    %v2283 = vadd.f32 %v2251, %v2282
    %2284 = vmatmul.f32.gmra.mxu0 %v2257
    %v2285 = vpop.f32.mrf.mxu0
    %v2286 = vadd.f32 %v2251, %v2285
    %2287 = vmatmul.f32.gmra.mxu0 %v2260
    %v2288 = vpop.f32.mrf.mxu0
    %v2289 = vadd.f32 %v2251, %v2288
    %2290 = vmatmul.f32.gmra.mxu0 %v2263
    %v2291 = vpop.f32.mrf.mxu0
    %v2292 = vadd.f32 %v2251, %v2291
    %2293 = vdwg.mxu0
    %v2294 = vxor.u32 %v2283, 2147483648
    %v2295 = vxor.u32 %v2286, 2147483648
    %v2296 = vxor.u32 %v2289, 2147483648
    %v2297 = vxor.u32 %v2292, 2147483648
    %v2298 = vmul.f32 %v2294, 1.442695
    %v2299 = vpow.pop %v2298
    %v2300 = vmul.f32 %v2295, 1.442695
    %v2301 = vpow.pop %v2300
    %v2302 = vmul.f32 %v2296, 1.442695
    %v2303 = vpow.pop %v2302
    %v2304 = vmul.f32 %v2297, 1.442695
    %v2305 = vpow.pop %v2304
    %v2306 = vadd.f32 %v2299, 1.0
    %v2307 = vadd.f32 %v2301, 1.0
    %v2308 = vadd.f32 %v2303, 1.0
    %v2309 = vadd.f32 %v2305, 1.0
    %v2310 = vrcp.pop %v2306
    %v2311 = vmul.f32 %v2306, %v2310
    %v2312 = vsub.f32 1.0, %v2311
    %v2313 = vmul.f32 %v2310, %v2312
    %v2314 = vadd.f32 %v2310, %v2313
    %vm2315 = vweird.f32 %v2306
    %vm2316 = vweird.f32 %v2310
    %vm2317 = vmor %vm2315, %vm2316
    %v2318 = vsel %vm2317, %v2310, %v2314
    %v2319 = vand.u32 2147483647, %v2306
    %vm2320 = vcmp.eq.f32.partialorder %v2319, 8.507059e+37
    %v2321 = vand.u32 %v2306, 2147483648
    %v2322 = vor.u32 1.1754944e-38, %v2321
    %v2323 = vsel %vm2320, %v2322, %v2318
    %v2324 = vmul.f32 1.0, %v2323
    %v2325 = vrcp.pop %v2307
    %v2326 = vmul.f32 %v2307, %v2325
    %v2327 = vsub.f32 1.0, %v2326
    %v2328 = vmul.f32 %v2325, %v2327
    %v2329 = vadd.f32 %v2325, %v2328
    %vm2330 = vweird.f32 %v2307
    %vm2331 = vweird.f32 %v2325
    %vm2332 = vmor %vm2330, %vm2331
    %v2333 = vsel %vm2332, %v2325, %v2329
    %v2334 = vand.u32 2147483647, %v2307
    %vm2335 = vcmp.eq.f32.partialorder %v2334, 8.507059e+37
    %v2336 = vand.u32 %v2307, 2147483648
    %v2337 = vor.u32 1.1754944e-38, %v2336
    %v2338 = vsel %vm2335, %v2337, %v2333
    %v2339 = vmul.f32 1.0, %v2338
    %v2340 = vrcp.pop %v2308
    %v2341 = vmul.f32 %v2308, %v2340
    %v2342 = vsub.f32 1.0, %v2341
    %v2343 = vmul.f32 %v2340, %v2342
    %v2344 = vadd.f32 %v2340, %v2343
    %vm2345 = vweird.f32 %v2308
    %vm2346 = vweird.f32 %v2340
    %vm2347 = vmor %vm2345, %vm2346
    %v2348 = vsel %vm2347, %v2340, %v2344
    %v2349 = vand.u32 2147483647, %v2308
    %vm2350 = vcmp.eq.f32.partialorder %v2349, 8.507059e+37
    %v2351 = vand.u32 %v2308, 2147483648
    %v2352 = vor.u32 1.1754944e-38, %v2351
    %v2353 = vsel %vm2350, %v2352, %v2348
    %v2354 = vmul.f32 1.0, %v2353
    %v2355 = vrcp.pop %v2309
    %v2356 = vmul.f32 %v2309, %v2355
    %v2357 = vsub.f32 1.0, %v2356
    %v2358 = vmul.f32 %v2355, %v2357
    %v2359 = vadd.f32 %v2355, %v2358
    %vm2360 = vweird.f32 %v2309
    %vm2361 = vweird.f32 %v2355
    %vm2362 = vmor %vm2360, %vm2361
    %v2363 = vsel %vm2362, %v2355, %v2359
    %v2364 = vand.u32 2147483647, %v2309
    %vm2365 = vcmp.eq.f32.partialorder %v2364, 8.507059e+37
    %v2366 = vand.u32 %v2309, 2147483648
    %v2367 = vor.u32 1.1754944e-38, %v2366
    %v2368 = vsel %vm2365, %v2367, %v2363
    %v2369 = vmul.f32 1.0, %v2368
    %v2370 = vmul.f32 %v2324, %v2217
    %v2371 = vmul.f32 %v2339, %v2218
    %v2372 = vmul.f32 %v2354, %v2219
    %v2373 = vmul.f32 %v2369, %v2220
    %v2374 = vsub.f32 1.0, %v2324
    %v2375 = vsub.f32 1.0, %v2339
    %v2376 = vsub.f32 1.0, %v2354
    %v2377 = vsub.f32 1.0, %v2369
    %v2378 = vmul.f32 %v2374, %v54
    %v2379 = vmul.f32 %v2375, %v56
    %v2380 = vmul.f32 %v2376, %v57
    %v2381 = vmul.f32 %v2377, %v59
    %v2382 = vadd.f32 %v2370, %v2378
    %v2383 = vadd.f32 %v2371, %v2379
    %v2384 = vadd.f32 %v2372, %v2380
    %v2385 = vadd.f32 %v2373, %v2381
    %v2386 = vld [vmem:[%s11] sm:$0x1]
    %v2388 = vsel %vm178, %v2386, 0
    %v2391 = vsel %vm178, %v2382, 0
    %2393 = vmatpush.xpose.msra.mxu0 0.0
    %2394 = vmatpush.xpose.msra.mxu0 0.0
    %2395 = vmatpush.xpose.msra.mxu0 0.0
    %2396 = vmatpush.xpose.msra.mxu0 0.0
    %2397 = vmatpush.xpose.msra.mxu0 0.0
    %2398 = vmatpush.xpose.msra.mxu0 0.0
    %2399 = vmatpush.xpose.msra.mxu0 0.0
    %2400 = vmatpush.xpose.msra.mxu0 0.0
    %2401 = vmatpush.xpose.msra.mxu0 0.0
    %2402 = vmatpush.xpose.msra.mxu0 0.0
    %2403 = vmatpush.xpose.msra.mxu0 0.0
    %2404 = vmatpush.xpose.msra.mxu0 0.0
    %2405 = vmatpush.xpose.msra.mxu0 0.0
    %2406 = vmatpush.xpose.msra.mxu0 0.0
    %2407 = vmatpush.xpose.msra.mxu0 0.0
    %2408 = vmatpush.xpose.msra.mxu0 %v2391
    %2409 = vmatmul.f32.gmra.mxu0 %v2388
    %v2410 = vpop.f32.mrf.mxu0
    %v2411 = vadd.f32 0.0, %v2410
    %2412 = vdwg.mxu0
    %vm2413 = vcmask 57344
    %v2414 = vsel %vm2413, %v2411, -inf
    %2415 = vmax.xlane.f32.xlu0 %v2414
    %v2416 = vpop.xlane.xlu0 %2415
    %v2417 = vsub.f32 %v2411, %v2416
    %v2418 = vmul.f32 %v2417, 1.442695
    %v2419 = vpow.pop %v2418
    %v2420 = vsel %vm2413, %v2419, 0.0
    %2421 = vadd.xlane.f32.xlu0 %v2420
    %v2422 = vpop.xlane.xlu0 %2421
    %v2423 = vrcp.pop %v2422
    %v2424 = vmul.f32 %v2422, %v2423
    %v2425 = vsub.f32 1.0, %v2424
    %v2426 = vmul.f32 %v2423, %v2425
    %v2427 = vadd.f32 %v2423, %v2426
    %vm2428 = vweird.f32 %v2422
    %vm2429 = vweird.f32 %v2423
    %vm2430 = vmor %vm2428, %vm2429
    %v2431 = vsel %vm2430, %v2423, %v2427
    %v2432 = vand.u32 2147483647, %v2422
    %vm2433 = vcmp.eq.f32.partialorder %v2432, 8.507059e+37
    %v2434 = vand.u32 %v2422, 2147483648
    %v2435 = vor.u32 1.1754944e-38, %v2434
    %v2436 = vsel %vm2433, %v2435, %v2431
    %v2437 = vmul.f32 %v2419, %v2436
    %v2439 = vsel %vm1461, %v2437, 0
    %2441 = vmatpush.msra.mxu0 0.0
    %2442 = vmatpush.msra.mxu0 0.0
    %2443 = vmatpush.msra.mxu0 0.0
    %2444 = vmatpush.msra.mxu0 0.0
    %2445 = vmatpush.msra.mxu0 0.0
    %2446 = vmatpush.msra.mxu0 0.0
    %2447 = vmatpush.msra.mxu0 0.0
    %2448 = vmatpush.msra.mxu0 0.0
    %2449 = vmatpush.msra.mxu0 0.0
    %2450 = vmatpush.msra.mxu0 0.0
    %2451 = vmatpush.msra.mxu0 0.0
    %2452 = vmatpush.msra.mxu0 0.0
    %2453 = vmatpush.msra.mxu0 0.0
    %2454 = vmatpush.msra.mxu0 0.0
    %2455 = vmatpush.msra.mxu0 0.0
    %2456 = vmatpush.msra.mxu0 %v2382
    %2457 = vmatmul.f32.gmra.mxu0 %v2439
    %v2458 = vpop.f32.mrf.mxu0
    %v2459 = vadd.f32 0.0, %v2458
    %2460 = vdwg.mxu0
    %v2462 = vsel %vm178, %v2383, 0
    %2464 = vmatpush.xpose.msra.mxu0 0.0
    %2465 = vmatpush.xpose.msra.mxu0 0.0
    %2466 = vmatpush.xpose.msra.mxu0 0.0
    %2467 = vmatpush.xpose.msra.mxu0 0.0
    %2468 = vmatpush.xpose.msra.mxu0 0.0
    %2469 = vmatpush.xpose.msra.mxu0 0.0
    %2470 = vmatpush.xpose.msra.mxu0 0.0
    %2471 = vmatpush.xpose.msra.mxu0 0.0
    %2472 = vmatpush.xpose.msra.mxu0 0.0
    %2473 = vmatpush.xpose.msra.mxu0 0.0
    %2474 = vmatpush.xpose.msra.mxu0 0.0
    %2475 = vmatpush.xpose.msra.mxu0 0.0
    %2476 = vmatpush.xpose.msra.mxu0 0.0
    %2477 = vmatpush.xpose.msra.mxu0 0.0
    %2478 = vmatpush.xpose.msra.mxu0 0.0
    %2479 = vmatpush.xpose.msra.mxu0 %v2462
    %2480 = vmatmul.f32.gmra.mxu0 %v2388
    %v2481 = vpop.f32.mrf.mxu0
    %v2482 = vadd.f32 0.0, %v2481
    %2483 = vdwg.mxu0
    %v2484 = vsel %vm2413, %v2482, -inf
    %2485 = vmax.xlane.f32.xlu0 %v2484
    %v2486 = vpop.xlane.xlu0 %2485
    %v2487 = vsub.f32 %v2482, %v2486
    %v2488 = vmul.f32 %v2487, 1.442695
    %v2489 = vpow.pop %v2488
    %v2490 = vsel %vm2413, %v2489, 0.0
    %2491 = vadd.xlane.f32.xlu0 %v2490
    %v2492 = vpop.xlane.xlu0 %2491
    %v2493 = vrcp.pop %v2492
    %v2494 = vmul.f32 %v2492, %v2493
    %v2495 = vsub.f32 1.0, %v2494
    %v2496 = vmul.f32 %v2493, %v2495
    %v2497 = vadd.f32 %v2493, %v2496
    %vm2498 = vweird.f32 %v2492
    %vm2499 = vweird.f32 %v2493
    %vm2500 = vmor %vm2498, %vm2499
    %v2501 = vsel %vm2500, %v2493, %v2497
    %v2502 = vand.u32 2147483647, %v2492
    %vm2503 = vcmp.eq.f32.partialorder %v2502, 8.507059e+37
    %v2504 = vand.u32 %v2492, 2147483648
    %v2505 = vor.u32 1.1754944e-38, %v2504
    %v2506 = vsel %vm2503, %v2505, %v2501
    %v2507 = vmul.f32 %v2489, %v2506
    %v2509 = vsel %vm1461, %v2507, 0
    %2511 = vmatpush.msra.mxu0 0.0
    %2512 = vmatpush.msra.mxu0 0.0
    %2513 = vmatpush.msra.mxu0 0.0
    %2514 = vmatpush.msra.mxu0 0.0
    %2515 = vmatpush.msra.mxu0 0.0
    %2516 = vmatpush.msra.mxu0 0.0
    %2517 = vmatpush.msra.mxu0 0.0
    %2518 = vmatpush.msra.mxu0 0.0
    %2519 = vmatpush.msra.mxu0 0.0
    %2520 = vmatpush.msra.mxu0 0.0
    %2521 = vmatpush.msra.mxu0 0.0
    %2522 = vmatpush.msra.mxu0 0.0
    %2523 = vmatpush.msra.mxu0 0.0
    %2524 = vmatpush.msra.mxu0 0.0
    %2525 = vmatpush.msra.mxu0 0.0
    %2526 = vmatpush.msra.mxu0 %v2383
    %2527 = vmatmul.f32.gmra.mxu0 %v2509
    %v2528 = vpop.f32.mrf.mxu0
    %v2529 = vadd.f32 0.0, %v2528
    %2530 = vdwg.mxu0
    %v2532 = vsel %vm178, %v2384, 0
    %2534 = vmatpush.xpose.msra.mxu0 0.0
    %2535 = vmatpush.xpose.msra.mxu0 0.0
    %2536 = vmatpush.xpose.msra.mxu0 0.0
    %2537 = vmatpush.xpose.msra.mxu0 0.0
    %2538 = vmatpush.xpose.msra.mxu0 0.0
    %2539 = vmatpush.xpose.msra.mxu0 0.0
    %2540 = vmatpush.xpose.msra.mxu0 0.0
    %2541 = vmatpush.xpose.msra.mxu0 0.0
    %2542 = vmatpush.xpose.msra.mxu0 0.0
    %2543 = vmatpush.xpose.msra.mxu0 0.0
    %2544 = vmatpush.xpose.msra.mxu0 0.0
    %2545 = vmatpush.xpose.msra.mxu0 0.0
    %2546 = vmatpush.xpose.msra.mxu0 0.0
    %2547 = vmatpush.xpose.msra.mxu0 0.0
    %2548 = vmatpush.xpose.msra.mxu0 0.0
    %2549 = vmatpush.xpose.msra.mxu0 %v2532
    %2550 = vmatmul.f32.gmra.mxu0 %v2388
    %v2551 = vpop.f32.mrf.mxu0
    %v2552 = vadd.f32 0.0, %v2551
    %2553 = vdwg.mxu0
    %v2554 = vsel %vm2413, %v2552, -inf
    %2555 = vmax.xlane.f32.xlu0 %v2554
    %v2556 = vpop.xlane.xlu0 %2555
    %v2557 = vsub.f32 %v2552, %v2556
    %v2558 = vmul.f32 %v2557, 1.442695
    %v2559 = vpow.pop %v2558
    %v2560 = vsel %vm2413, %v2559, 0.0
    %2561 = vadd.xlane.f32.xlu0 %v2560
    %v2562 = vpop.xlane.xlu0 %2561
    %v2563 = vrcp.pop %v2562
    %v2564 = vmul.f32 %v2562, %v2563
    %v2565 = vsub.f32 1.0, %v2564
    %v2566 = vmul.f32 %v2563, %v2565
    %v2567 = vadd.f32 %v2563, %v2566
    %vm2568 = vweird.f32 %v2562
    %vm2569 = vweird.f32 %v2563
    %vm2570 = vmor %vm2568, %vm2569
    %v2571 = vsel %vm2570, %v2563, %v2567
    %v2572 = vand.u32 2147483647, %v2562
    %vm2573 = vcmp.eq.f32.partialorder %v2572, 8.507059e+37
    %v2574 = vand.u32 %v2562, 2147483648
    %v2575 = vor.u32 1.1754944e-38, %v2574
    %v2576 = vsel %vm2573, %v2575, %v2571
    %v2577 = vmul.f32 %v2559, %v2576
    %v2579 = vsel %vm1461, %v2577, 0
    %2581 = vmatpush.msra.mxu0 0.0
    %2582 = vmatpush.msra.mxu0 0.0
    %2583 = vmatpush.msra.mxu0 0.0
    %2584 = vmatpush.msra.mxu0 0.0
    %2585 = vmatpush.msra.mxu0 0.0
    %2586 = vmatpush.msra.mxu0 0.0
    %2587 = vmatpush.msra.mxu0 0.0
    %2588 = vmatpush.msra.mxu0 0.0
    %2589 = vmatpush.msra.mxu0 0.0
    %2590 = vmatpush.msra.mxu0 0.0
    %2591 = vmatpush.msra.mxu0 0.0
    %2592 = vmatpush.msra.mxu0 0.0
    %2593 = vmatpush.msra.mxu0 0.0
    %2594 = vmatpush.msra.mxu0 0.0
    %2595 = vmatpush.msra.mxu0 0.0
    %2596 = vmatpush.msra.mxu0 %v2384
    %2597 = vmatmul.f32.gmra.mxu0 %v2579
    %v2598 = vpop.f32.mrf.mxu0
    %v2599 = vadd.f32 0.0, %v2598
    %2600 = vdwg.mxu0
    %v2602 = vsel %vm178, %v2385, 0
    %2604 = vmatpush.xpose.msra.mxu0 0.0
    %2605 = vmatpush.xpose.msra.mxu0 0.0
    %2606 = vmatpush.xpose.msra.mxu0 0.0
    %2607 = vmatpush.xpose.msra.mxu0 0.0
    %2608 = vmatpush.xpose.msra.mxu0 0.0
    %2609 = vmatpush.xpose.msra.mxu0 0.0
    %2610 = vmatpush.xpose.msra.mxu0 0.0
    %2611 = vmatpush.xpose.msra.mxu0 0.0
    %2612 = vmatpush.xpose.msra.mxu0 0.0
    %2613 = vmatpush.xpose.msra.mxu0 0.0
    %2614 = vmatpush.xpose.msra.mxu0 0.0
    %2615 = vmatpush.xpose.msra.mxu0 0.0
    %2616 = vmatpush.xpose.msra.mxu0 0.0
    %2617 = vmatpush.xpose.msra.mxu0 0.0
    %2618 = vmatpush.xpose.msra.mxu0 0.0
    %2619 = vmatpush.xpose.msra.mxu0 %v2602
    %2620 = vmatmul.f32.gmra.mxu0 %v2388
    %v2621 = vpop.f32.mrf.mxu0
    %v2622 = vadd.f32 0.0, %v2621
    %2623 = vdwg.mxu0
    %v2624 = vsel %vm2413, %v2622, -inf
    %2625 = vmax.xlane.f32.xlu0 %v2624
    %v2626 = vpop.xlane.xlu0 %2625
    %v2627 = vsub.f32 %v2622, %v2626
    %v2628 = vmul.f32 %v2627, 1.442695
    %v2629 = vpow.pop %v2628
    %v2630 = vsel %vm2413, %v2629, 0.0
    %2631 = vadd.xlane.f32.xlu0 %v2630
    %v2632 = vpop.xlane.xlu0 %2631
    %v2633 = vrcp.pop %v2632
    %v2634 = vmul.f32 %v2632, %v2633
    %v2635 = vsub.f32 1.0, %v2634
    %v2636 = vmul.f32 %v2633, %v2635
    %v2637 = vadd.f32 %v2633, %v2636
    %vm2638 = vweird.f32 %v2632
    %vm2639 = vweird.f32 %v2633
    %vm2640 = vmor %vm2638, %vm2639
    %v2641 = vsel %vm2640, %v2633, %v2637
    %v2642 = vand.u32 2147483647, %v2632
    %vm2643 = vcmp.eq.f32.partialorder %v2642, 8.507059e+37
    %v2644 = vand.u32 %v2632, 2147483648
    %v2645 = vor.u32 1.1754944e-38, %v2644
    %v2646 = vsel %vm2643, %v2645, %v2641
    %v2647 = vmul.f32 %v2629, %v2646
    %v2649 = vsel %vm1461, %v2647, 0
    %2651 = vmatpush.msra.mxu0 0.0
    %2652 = vmatpush.msra.mxu0 0.0
    %2653 = vmatpush.msra.mxu0 0.0
    %2654 = vmatpush.msra.mxu0 0.0
    %2655 = vmatpush.msra.mxu0 0.0
    %2656 = vmatpush.msra.mxu0 0.0
    %2657 = vmatpush.msra.mxu0 0.0
    %2658 = vmatpush.msra.mxu0 0.0
    %2659 = vmatpush.msra.mxu0 0.0
    %2660 = vmatpush.msra.mxu0 0.0
    %2661 = vmatpush.msra.mxu0 0.0
    %2662 = vmatpush.msra.mxu0 0.0
    %2663 = vmatpush.msra.mxu0 0.0
    %2664 = vmatpush.msra.mxu0 0.0
    %2665 = vmatpush.msra.mxu0 0.0
    %2666 = vmatpush.msra.mxu0 %v2385
    %2667 = vmatmul.f32.gmra.mxu0 %v2649
    %v2668 = vpop.f32.mrf.mxu0
    %v2669 = vadd.f32 0.0, %v2668
    %2670 = vdwg.mxu0
    %v2672 = vrot.slane %v2529, 7
    %v2674 = vsel %vm112, %v2459, %v2672
    %v2676 = vrot.slane %v2669, 7
    %v2678 = vsel %vm112, %v2599, %v2676
    %v2679 = vsub.f32 %v2674, %v2678
    %v2680 = vmul.f32 %v2674, %v2678
    %2682 = vrot.lane.b32.xlu0 %v2678, 32
    %v2683 = vpop.permute.xlu0 %2682
    %2686 = vrot.lane.b32.xlu0 %v2679, 64
    %v2687 = vpop.permute.xlu0 %2686
    %2690 = vrot.lane.b32.xlu0 %v2680, 96
    %v2691 = vpop.permute.xlu0 %2690
    %v2693 = vsel %vm178, %v2674, %v2683
    %v2694 = vsel %vm2158, %v2693, %v2687
    %v2695 = vsel %vm2163, %v2694, %v2691
    %v2696 = vld [vmem:[%s12] sm:$0xff]
    %v2697 = vld [vmem:[%s12 + $0x8] sm:$0xff]
    %v2698 = vld [vmem:[%s12 + $0x10] sm:$0xff]
    %v2699 = vld [vmem:[%s12 + $0x18] sm:$0xff]
    %v2700 = vld [vmem:[%s12 + $0x20] sm:$0xff]
    %v2701 = vld [vmem:[%s12 + $0x28] sm:$0xff]
    %v2702 = vld [vmem:[%s12 + $0x30] sm:$0xff]
    %v2703 = vld [vmem:[%s12 + $0x38] sm:$0xff]
    %v2704 = vld [vmem:[%s12 + $0x40] sm:$0xff]
    %v2705 = vld [vmem:[%s12 + $0x48] sm:$0xff]
    %v2706 = vld [vmem:[%s12 + $0x50] sm:$0xff]
    %v2707 = vld [vmem:[%s12 + $0x58] sm:$0xff]
    %v2708 = vld [vmem:[%s12 + $0x60] sm:$0xff]
    %v2709 = vld [vmem:[%s12 + $0x68] sm:$0xff]
    %v2710 = vld [vmem:[%s12 + $0x70] sm:$0xff]
    %v2711 = vld [vmem:[%s12 + $0x78] sm:$0xff]
    %v2712 = vld [vmem:[%s13] sm:$0x1]
    %v2714 = vperm.slane %v2712, 0
    %2716 = vmatpush.msra.mxu0 %v2711
    %2717 = vmatpush.msra.mxu0 %v2710
    %2718 = vmatpush.msra.mxu0 %v2709
    %2719 = vmatpush.msra.mxu0 %v2708
    %2720 = vmatpush.msra.mxu0 %v2707
    %2721 = vmatpush.msra.mxu0 %v2706
    %2722 = vmatpush.msra.mxu0 %v2705
    %2723 = vmatpush.msra.mxu0 %v2704
    %2724 = vmatpush.msra.mxu0 %v2703
    %2725 = vmatpush.msra.mxu0 %v2702
    %2726 = vmatpush.msra.mxu0 %v2701
    %2727 = vmatpush.msra.mxu0 %v2700
    %2728 = vmatpush.msra.mxu0 %v2699
    %2729 = vmatpush.msra.mxu0 %v2698
    %2730 = vmatpush.msra.mxu0 %v2697
    %2731 = vmatpush.msra.mxu0 %v2696
    %2732 = vmatmul.f32.gmra.mxu0 %v2695
    %v2733 = vpop.f32.mrf.mxu0
    %v2734 = vadd.f32 %v2714, %v2733
    %2735 = vdwg.mxu0
    %v2736 = vmax.f32 %v2734, 0.0
    %v2737 = vld [vmem:[%s14] sm:$0xff]
    %v2738 = vld [vmem:[%s14 + $0x8] sm:$0xff]
    %v2739 = vld [vmem:[%s14 + $0x10] sm:$0xff]
    %v2740 = vld [vmem:[%s14 + $0x18] sm:$0xff]
    %v2741 = vld [vmem:[%s15] sm:$0x1]
    %v2743 = vperm.slane %v2741, 0
    %v2746 = vsel %vm178, %v2736, 0
    %2748 = vmatpush.msra.mxu0 0.0
    %2749 = vmatpush.msra.mxu0 0.0
    %2750 = vmatpush.msra.mxu0 0.0
    %2751 = vmatpush.msra.mxu0 0.0
    %2752 = vmatpush.msra.mxu0 0.0
    %2753 = vmatpush.msra.mxu0 0.0
    %2754 = vmatpush.msra.mxu0 0.0
    %2755 = vmatpush.msra.mxu0 0.0
    %2756 = vmatpush.msra.mxu0 0.0
    %2757 = vmatpush.msra.mxu0 0.0
    %2758 = vmatpush.msra.mxu0 0.0
    %2759 = vmatpush.msra.mxu0 0.0
    %2760 = vmatpush.msra.mxu0 %v2740
    %2761 = vmatpush.msra.mxu0 %v2739
    %2762 = vmatpush.msra.mxu0 %v2738
    %2763 = vmatpush.msra.mxu0 %v2737
    %2764 = vmatmul.f32.gmra.mxu0 %v2746
    %v2765 = vpop.f32.mrf.mxu0
    %v2766 = vadd.f32 %v2743, %v2765
    %2767 = vdwg.mxu0
    %vm2768 = vcmask 9216
    %v2769 = vsel %vm2768, %v2766, -inf
    %2770 = vmax.xlane.f32.xlu0 %v2769
    %v2771 = vpop.xlane.xlu0 %2770
    %v2772 = vsub.f32 %v2766, %v2771
    %v2773 = vmul.f32 %v2772, 1.442695
    %v2774 = vpow.pop %v2773
    %v2775 = vsel %vm2768, %v2774, 0.0
    %2776 = vadd.xlane.f32.xlu0 %v2775
    %v2777 = vpop.xlane.xlu0 %2776
    %v2778 = vlog2.pop %v2777
    %v2779 = vmul.f32 %v2778, 0.6931472
    %v2780 = vsub.f32 %v2772, %v2779
    %2781 = vst.msk [vmem:[#allocation2] sm:$0x3] %vm2768, %v2780
    // Predicated region
    $region66: #{mcan_forward.1} parent=1 // pred_check
      _
    $region67: #{mcan_forward.1} parent=1 // pred_check_branch
      %2783 = sbr.rel (0) target = $region69
    $region68: #{mcan_forward.1} parent=1 // pred_region
      %2785 = vsyncadd [#allocation3], 0
      %s2787 = sshll.u32 [#allocation2], 4
      %s2788 = int_to_ptr.vmem [resolvable:$true] %s2787
      %s2789 = sshll.u32 %s16, 4
      %s2790 = int_to_ptr.hbm [resolvable:$true] %s2789
      %2792 = dma.vmem_to_hbm [thread:$0]  %s2788, 32, %s2790, [#allocation3]
    $region69: #{mcan_forward.1} parent=1 // pred_fallthru
      _
    // Predicated region
    $region70: #{mcan_forward.1} parent=1 // pred_check
      _
    $region71: #{mcan_forward.1} parent=1 // pred_check_branch
      %2794 = sbr.rel (0) target = $region73
    $region72: #{mcan_forward.1} parent=1 // pred_region
      %2796 = dma.done [#allocation3], 32
    $region73: #{mcan_forward.1} parent=1 // pred_fallthru
      _
    %2797 = vsyncpa [#allocation3], 1

</llo_original>
